<compile_context>
chip_gen: v5e
topology: v5e:2x2
jax: 0.10.0
libtpu: 0.0.40
codegen_flags: <defaults>
</compile_context>

<pallas_src>
import functools

import jax
import jax.numpy as jnp
import numpy as np
from jax import lax
from jax.experimental import pallas as pl
from jax.experimental.pallas import tpu as pltpu


# --------------------------------------------------------------------------
# Width-only bilinear resize as a fixed matmul matrix (host-side constant).
# --------------------------------------------------------------------------
def _resize_matrix(w_in, w_out):
    j = jnp.arange(w_out, dtype=jnp.float32)
    src = (j + 0.5) * (float(w_in) / float(w_out)) - 0.5
    s0 = jnp.floor(src)
    frac = src - s0
    i0 = jnp.clip(s0, 0, w_in - 1).astype(jnp.int32)
    i1 = jnp.clip(s0 + 1.0, 0, w_in - 1).astype(jnp.int32)
    cols = jnp.arange(w_out)
    R = jnp.zeros((w_in, w_out), jnp.float32)
    R = R.at[i0, cols].add(1.0 - frac)
    R = R.at[i1, cols].add(frac)
    return R


def _pick_tq(H, W2p, n_max=4096):
    """Output-row tile height: multiple of 8 dividing H, TQ*W2p <= n_max lanes."""
    cap = max(n_max // W2p, 8)
    start = 8 * (min(H, cap) // 8)
    for tq in range(start, 7, -8):
        if H % tq == 0:
            return tq
    if H % 8 == 0:
        return 8
    return H  # single tile; block == full dim is always legal


# --------------------------------------------------------------------------
# Fused kernel: warp (grid_sample + mask) -> width up-resize.
# Grid = (frame b, output-row-tile t), both axes parallel.
# --------------------------------------------------------------------------
def _warp_kernel(xmt_ref, coord_ref, rup_ref, o_ref, *,
                 C, H, W, W2, W2r, W2p, TQ):
    N = TQ * W2p  # flattened output-tile pixels, kept in the lane axis

    cc = coord_ref[...]                       # (2, N): precomputed source coords
    ix = cc[0:1, :]                           # unnormalized grid_sample x coord
    iy = cc[1:2, :]                           # unnormalized grid_sample y coord

    x0f = jnp.floor(ix)
    y0f = jnp.floor(iy)
    wx = ix - x0f
    wy = iy - y0f
    x1f = x0f + 1.0
    y1f = y0f + 1.0

    # zeros padding_mode: out-of-range corners get zero weight (not clamped).
    in_x0 = ((x0f >= 0.0) & (x0f <= float(W2 - 1))).astype(jnp.float32)
    in_x1 = ((x1f >= 0.0) & (x1f <= float(W2 - 1))).astype(jnp.float32)
    in_y0 = ((y0f >= 0.0) & (y0f <= float(H - 1))).astype(jnp.float32)
    in_y1 = ((y1f >= 0.0) & (y1f <= float(H - 1))).astype(jnp.float32)

    wx0 = (1.0 - wx) * in_x0
    wx1 = wx * in_x1
    wy0 = (1.0 - wy) * in_y0
    wy1 = wy * in_y1

    # mask = grid_sample(ones); mask[mask<0.9999]=0; mask[mask>0]=1
    mask = (((wy0 + wy1) * (wx0 + wx1)) >= 0.9999).astype(jnp.float32)   # (1, N)

    # y-direction one-hot interp weights -> MXU RHS (contraction over H).
    y0i = y0f.astype(jnp.int32)
    y1i = y1f.astype(jnp.int32)
    h_iota = lax.broadcasted_iota(jnp.int32, (H, N), 0)
    Wy = (jnp.where(h_iota == y0i, wy0, 0.0) +
          jnp.where(h_iota == y1i, wy1, 0.0))                            # (H, N)

    # x-direction one-hot interp weights (VPU), 0.9999 mask folded in.
    x0i = x0f.astype(jnp.int32)
    x1i = x1f.astype(jnp.int32)
    w_iota = lax.broadcasted_iota(jnp.int32, (W2r, N), 0)
    Wx = (jnp.where(w_iota == x0i, wx0, 0.0) +
          jnp.where(w_iota == x1i, wx1, 0.0)) * mask                     # (W2r, N)

    # MXU: y-interp of every half-width source column at every output pixel.
    # K = H fills the 256-deep MXU better than K = 128, and M = C*W2r streams
    # ~half the rows of the old C*H formulation.
    yint = jnp.dot(xmt_ref[...], Wy,
                   preferred_element_type=jnp.float32)                   # (C*W2r, N)

    # Per channel: x-combine (mul + sublane reduce), reassemble lanes -> rows.
    rows = []
    for c in range(C):
        wc = jnp.sum(yint[c * W2r:(c + 1) * W2r, :] * Wx,
                     axis=0, keepdims=True)                              # (1, N)
        rows.extend(wc[:, r * W2p:(r + 1) * W2p] for r in range(TQ))
    warped = jnp.concatenate(rows, axis=0)                               # (C*TQ, W2p)

    # Single fused width-upsample matmul for all channels.
    up = jnp.dot(warped, rup_ref[...],
                 preferred_element_type=jnp.float32)                     # (C*TQ, W)
    for c in range(C):
        o_ref[c] = up[c * TQ:(c + 1) * TQ, :]


# --------------------------------------------------------------------------
# Full Model2.forward
# --------------------------------------------------------------------------
def model2_forward(x, attn):
    # x: (B, 3, H, W) float32 NCHW; attn: (B, H, W) float32 (torch views it as
    # (B, 1, H, W)).  Original runs at B=5, H=W=224; this scales with H, W.
    B, C, H, W = x.shape
    W2 = W // 2
    W2p = ((W2 + 127) // 128) * 128           # lane-dense padded half width
    W2r = ((W2 + 7) // 8) * 8                 # sublane-aligned half width
    TQ = _pick_tq(H, W2p)
    T = H // TQ
    N = TQ * W2p

    x = x.astype(jnp.float32)
    attn = attn.reshape(B, H, W).astype(jnp.float32)

    Rd = _resize_matrix(W, W2)                # (W,  W2)
    Ru = _resize_matrix(W2, W)                # (W2, W )
    Rup_p = jnp.zeros((W2p, W), jnp.float32).at[:W2, :].set(Ru)

    hi = lax.Precision.HIGHEST
    # (1)+(2): width-only bilinear downsample done as tiny XLA einsums so the
    # Pallas grid needs no per-frame scratch and can be fully parallel (v7x).
    x_mid = jnp.einsum('bchw,wv->bchv', x, Rd, precision=hi)        # (B,C,H,W2)
    a = jnp.einsum('bhw,wv->bhv', attn, Rd, precision=hi) * float(W - W2)

    # Half-width image, transposed so the interp matmul contracts over H.
    if W2r > W2:
        x_mid = jnp.pad(x_mid, ((0, 0), (0, 0), (0, 0), (0, W2r - W2)))
    x_mid_t = x_mid.transpose(0, 1, 3, 2).reshape(B, C * W2r, H)    # (B, C*W2r, H)

    # (3)+(4a): per-pixel unnormalized grid_sample coordinates, pre-flattened so
    # every grid step reads one lane-dense (2, TQ*W2p) tile (hoists the per-tile
    # iota / flatten plumbing out of the kernel).  cumsum over the size-1
    # channel dim is the identity.  `flow = cat([a, zeros], 3)` is never used.
    a_p = jnp.pad(a, ((0, 0), (0, 0), (0, W2p - W2)))               # (B, H, W2p)
    jj = jnp.arange(W2p, dtype=jnp.float32)[None, None, :]
    ii = jnp.arange(H, dtype=jnp.float32)[None, :, None]
    sx = float(W2) / float(max(W2 - 1, 1))
    sy = float(H) / float(max(H - 1, 1))
    ix = ((jj + a_p) * sx - 0.5).reshape(B, T, N)
    iy = ((ii + a_p) * sy - 0.5).reshape(B, T, N)
    coords = jnp.stack([ix, iy], axis=2)                            # (B, T, 2, N)

    kernel = functools.partial(_warp_kernel, C=C, H=H, W=W, W2=W2,
                               W2r=W2r, W2p=W2p, TQ=TQ)
    out = pl.pallas_call(
        kernel,
        out_shape=jax.ShapeDtypeStruct((B, C, H, W), jnp.float32),
        grid_spec=pltpu.PrefetchScalarGridSpec(
            num_scalar_prefetch=0,
            grid=(B, T),
            in_specs=[
                # whole (transposed) half-width frame; t-invariant block index
                # -> DMA'd once per frame.
                pl.BlockSpec((None, C * W2r, H), lambda b, t: (b, 0, 0)),
                # flattened source-coordinate tile for this row-tile.
                pl.BlockSpec((None, None, 2, N), lambda b, t: (b, t, 0, 0)),
                # width-upsample matrix (grid-invariant).
                pl.BlockSpec((W2p, W), lambda b, t: (0, 0)),
            ],
            out_specs=pl.BlockSpec((None, C, TQ, W), lambda b, t: (b, 0, t, 0)),
        ),
        compiler_params=pltpu.CompilerParams(
            dimension_semantics=("parallel", "parallel"),
            vmem_limit_bytes=48 * 1024 * 1024,
        ),
    )(x_mid_t, coords, Rup_p)
    return out


# --------------------------------------------------------------------------
# Pure-JAX (non-Pallas) reference of the same forward pass, for validation.
# --------------------------------------------------------------------------
def _model2_forward_ref(x, attn):
    B, C, H, W = x.shape
    W2 = W // 2
    Rd = _resize_matrix(W, W2)
    Ru = _resize_matrix(W2, W)
    hi = jax.lax.Precision.HIGHEST
    x_mid = jnp.einsum('bchw,wv->bchv', x, Rd, precision=hi)
    a = jnp.einsum('bhw,wv->bhv', attn.reshape(B, H, W), Rd, precision=hi)
    a = a * float(W - W2)
    ii = jnp.arange(H, dtype=jnp.float32)[None, :, None]
    jj = jnp.arange(W2, dtype=jnp.float32)[None, None, :]
    ix = (jj + a) * (float(W2) / float(max(W2 - 1, 1))) - 0.5
    iy = (ii + a) * (float(H) / float(max(H - 1, 1))) - 0.5
    x0 = jnp.floor(ix)
    y0 = jnp.floor(iy)
    wx = ix - x0
    wy = iy - y0
    xm_flat = x_mid.reshape(B, C, H * W2)
    acc = jnp.zeros((B, C, H, W2), jnp.float32)
    wsum = jnp.zeros((B, H, W2), jnp.float32)
    for dy, dx in ((0, 0), (0, 1), (1, 0), (1, 1)):
        yf = y0 + dy
        xf = x0 + dx
        w = (wy if dy else (1.0 - wy)) * (wx if dx else (1.0 - wx))
        inb = (xf >= 0) & (xf <= W2 - 1) & (yf >= 0) & (yf <= H - 1)
        w = jnp.where(inb, w, 0.0)
        yi = jnp.clip(yf, 0, H - 1).astype(jnp.int32)
        xi = jnp.clip(xf, 0, W2 - 1).astype(jnp.int32)
        idx = jnp.broadcast_to((yi * W2 + xi).reshape(B, 1, H * W2),
                               (B, C, H * W2))
        g = jnp.take_along_axis(xm_flat, idx, axis=2).reshape(B, C, H, W2)
        acc = acc + w[:, None, :, :] * g
        wsum = wsum + w
    mask = (wsum >= 0.9999).astype(jnp.float32)
    warped = acc * mask[:, None, :, :]
    return jnp.einsum('bchv,vw->bchw', warped, Ru, precision=hi)


if __name__ == "__main__":
    # Forward uses no learned parameters, so the only inputs are x and attn.
    B, C, H, W = 5, 3, 32, 32        # small stand-in for (5, 3, 224, 224)
    key = jax.random.PRNGKey(0)
    kx, ka = jax.random.split(key)
    x = jax.random.normal(kx, (B, C, H, W), dtype=jnp.float32)
    attn = jax.random.uniform(ka, (B, H, W), dtype=jnp.float32)

    out = jax.block_until_ready(jax.jit(model2_forward)(x, attn))
    assert out.shape == (B, C, H, W) and out.dtype == jnp.float32

    ref = jax.block_until_ready(jax.jit(_model2_forward_ref)(x, attn))
    out_np, ref_np = np.asarray(out), np.asarray(ref)
    # The 0.9999 mask threshold in warp() is a hard discontinuity, so a handful
    # of boundary pixels may legitimately flip under fp reordering; everything
    # else must agree tightly.
    bad = np.abs(out_np - ref_np) > (2e-3 + 2e-3 * np.abs(ref_np))
    assert bad.mean() <= 1e-3, f"kernel/ref mismatch fraction {bad.mean():.2e}"
    print("KERNEL_OK")
</pallas_src>

<mosaic_0001>
module attributes {stable_mosaic.version = 11 : i64} {
  func.func @_warp_kernel(%arg0: i32, %arg1: i32, %arg2: memref<1x48x32xf32, #tpu.memory_space<vmem>>, %arg3: memref<1x1x2x4096xf32, #tpu.memory_space<vmem>>, %arg4: memref<128x32xf32, #tpu.memory_space<vmem>>, %arg5: memref<1x3x32x32xf32, #tpu.memory_space<vmem>>) attributes {dimension_semantics = [#tpu.dimension_semantics<parallel>, #tpu.dimension_semantics<parallel>], iteration_bounds = array<i64: 5, 1>, scalar_prefetch = 0 : i64, scratch_operands = 0 : i64, tpu.core_type = #tpu.core_type<tc>, window_params = [{transform_indices = @transform_0, window_bounds = array<i64: 1, 48, 32>}, {transform_indices = @transform_1, window_bounds = array<i64: 1, 1, 2, 4096>}, {pipeline_mode = #tpu.pipeline_mode<synchronous>, transform_indices = @transform_2, window_bounds = array<i64: 128, 32>}, {transform_indices = @transform_3, window_bounds = array<i64: 1, 3, 32, 32>}]} {
    %c0 = arith.constant 0 : index
    %c0_0 = arith.constant 0 : index
    %c0_1 = arith.constant 0 : index
    %c0_2 = arith.constant 0 : index
    %0 = vector.load %arg3[%c0, %c0_0, %c0_1, %c0_2] : memref<1x1x2x4096xf32, #tpu.memory_space<vmem>>, vector<1x1x2x4096xf32>
    %1 = vector.shape_cast %0 : vector<1x1x2x4096xf32> to vector<2x4096xf32>
    %2 = vector.extract_strided_slice %1 {offsets = [0, 0], sizes = [1, 4096], strides = [1, 1]} : vector<2x4096xf32> to vector<1x4096xf32>
    %3 = vector.extract_strided_slice %1 {offsets = [1, 0], sizes = [1, 4096], strides = [1, 1]} : vector<2x4096xf32> to vector<1x4096xf32>
    %4 = math.floor %2 : vector<1x4096xf32>
    %5 = math.floor %3 : vector<1x4096xf32>
    %6 = arith.subf %2, %4 : vector<1x4096xf32>
    %7 = arith.subf %3, %5 : vector<1x4096xf32>
    %cst = arith.constant 1.000000e+00 : f32
    %8 = vector.broadcast %cst : f32 to vector<1x4096xf32>
    %9 = arith.addf %4, %8 : vector<1x4096xf32>
    %cst_3 = arith.constant 1.000000e+00 : f32
    %10 = vector.broadcast %cst_3 : f32 to vector<1x4096xf32>
    %11 = arith.addf %5, %10 : vector<1x4096xf32>
    %cst_4 = arith.constant 0.000000e+00 : f32
    %12 = vector.broadcast %cst_4 : f32 to vector<1x4096xf32>
    %13 = arith.cmpf oge, %4, %12 : vector<1x4096xf32>
    %cst_5 = arith.constant 1.500000e+01 : f32
    %14 = vector.broadcast %cst_5 : f32 to vector<1x4096xf32>
    %15 = arith.cmpf ole, %4, %14 : vector<1x4096xf32>
    %16 = arith.andi %13, %15 : vector<1x4096xi1>
    %17 = arith.extui %16 : vector<1x4096xi1> to vector<1x4096xi32>
    %18 = arith.sitofp %17 : vector<1x4096xi32> to vector<1x4096xf32>
    %cst_6 = arith.constant 0.000000e+00 : f32
    %19 = vector.broadcast %cst_6 : f32 to vector<1x4096xf32>
    %20 = arith.cmpf oge, %9, %19 : vector<1x4096xf32>
    %cst_7 = arith.constant 1.500000e+01 : f32
    %21 = vector.broadcast %cst_7 : f32 to vector<1x4096xf32>
    %22 = arith.cmpf ole, %9, %21 : vector<1x4096xf32>
    %23 = arith.andi %20, %22 : vector<1x4096xi1>
    %24 = arith.extui %23 : vector<1x4096xi1> to vector<1x4096xi32>
    %25 = arith.sitofp %24 : vector<1x4096xi32> to vector<1x4096xf32>
    %cst_8 = arith.constant 0.000000e+00 : f32
    %26 = vector.broadcast %cst_8 : f32 to vector<1x4096xf32>
    %27 = arith.cmpf oge, %5, %26 : vector<1x4096xf32>
    %cst_9 = arith.constant 3.100000e+01 : f32
    %28 = vector.broadcast %cst_9 : f32 to vector<1x4096xf32>
    %29 = arith.cmpf ole, %5, %28 : vector<1x4096xf32>
    %30 = arith.andi %27, %29 : vector<1x4096xi1>
    %31 = arith.extui %30 : vector<1x4096xi1> to vector<1x4096xi32>
    %32 = arith.sitofp %31 : vector<1x4096xi32> to vector<1x4096xf32>
    %cst_10 = arith.constant 0.000000e+00 : f32
    %33 = vector.broadcast %cst_10 : f32 to vector<1x4096xf32>
    %34 = arith.cmpf oge, %11, %33 : vector<1x4096xf32>
    %cst_11 = arith.constant 3.100000e+01 : f32
    %35 = vector.broadcast %cst_11 : f32 to vector<1x4096xf32>
    %36 = arith.cmpf ole, %11, %35 : vector<1x4096xf32>
    %37 = arith.andi %34, %36 : vector<1x4096xi1>
    %38 = arith.extui %37 : vector<1x4096xi1> to vector<1x4096xi32>
    %39 = arith.sitofp %38 : vector<1x4096xi32> to vector<1x4096xf32>
    %cst_12 = arith.constant 1.000000e+00 : f32
    %40 = vector.broadcast %cst_12 : f32 to vector<1x4096xf32>
    %41 = arith.subf %40, %6 : vector<1x4096xf32>
    %42 = arith.mulf %41, %18 : vector<1x4096xf32>
    %43 = arith.mulf %6, %25 : vector<1x4096xf32>
    %cst_13 = arith.constant 1.000000e+00 : f32
    %44 = vector.broadcast %cst_13 : f32 to vector<1x4096xf32>
    %45 = arith.subf %44, %7 : vector<1x4096xf32>
    %46 = arith.mulf %45, %32 : vector<1x4096xf32>
    %47 = arith.mulf %7, %39 : vector<1x4096xf32>
    %48 = arith.addf %46, %47 : vector<1x4096xf32>
    %49 = arith.addf %42, %43 : vector<1x4096xf32>
    %50 = arith.mulf %48, %49 : vector<1x4096xf32>
    %cst_14 = arith.constant 0.999899983 : f32
    %51 = vector.broadcast %cst_14 : f32 to vector<1x4096xf32>
    %52 = arith.cmpf oge, %50, %51 : vector<1x4096xf32>
    %53 = arith.extui %52 : vector<1x4096xi1> to vector<1x4096xi32>
    %54 = arith.sitofp %53 : vector<1x4096xi32> to vector<1x4096xf32>
    %55 = arith.fptosi %5 : vector<1x4096xf32> to vector<1x4096xi32>
    %56 = arith.fptosi %11 : vector<1x4096xf32> to vector<1x4096xi32>
    %57 = tpu.iota {dimensions = array<i32: 0>} : vector<32x4096xi32>
    %58 = vector.broadcast %55 : vector<1x4096xi32> to vector<32x4096xi32>
    %59 = arith.cmpi eq, %57, %58 : vector<32x4096xi32>
    %cst_15 = arith.constant 0.000000e+00 : f32
    %60 = vector.shape_cast %46 : vector<1x4096xf32> to vector<1x4096xf32>
    %61 = vector.broadcast %60 : vector<1x4096xf32> to vector<32x4096xf32>
    %62 = vector.broadcast %cst_15 : f32 to vector<32x4096xf32>
    %63 = arith.select %59, %61, %62 : vector<32x4096xi1>, vector<32x4096xf32>
    %64 = vector.broadcast %56 : vector<1x4096xi32> to vector<32x4096xi32>
    %65 = arith.cmpi eq, %57, %64 : vector<32x4096xi32>
    %cst_16 = arith.constant 0.000000e+00 : f32
    %66 = vector.shape_cast %47 : vector<1x4096xf32> to vector<1x4096xf32>
    %67 = vector.broadcast %66 : vector<1x4096xf32> to vector<32x4096xf32>
    %68 = vector.broadcast %cst_16 : f32 to vector<32x4096xf32>
    %69 = arith.select %65, %67, %68 : vector<32x4096xi1>, vector<32x4096xf32>
    %70 = arith.addf %63, %69 : vector<32x4096xf32>
    %71 = arith.fptosi %4 : vector<1x4096xf32> to vector<1x4096xi32>
    %72 = arith.fptosi %9 : vector<1x4096xf32> to vector<1x4096xi32>
    %73 = tpu.iota {dimensions = array<i32: 0>} : vector<16x4096xi32>
    %74 = vector.broadcast %71 : vector<1x4096xi32> to vector<16x4096xi32>
    %75 = arith.cmpi eq, %73, %74 : vector<16x4096xi32>
    %cst_17 = arith.constant 0.000000e+00 : f32
    %76 = vector.shape_cast %42 : vector<1x4096xf32> to vector<1x4096xf32>
    %77 = vector.broadcast %76 : vector<1x4096xf32> to vector<16x4096xf32>
    %78 = vector.broadcast %cst_17 : f32 to vector<16x4096xf32>
    %79 = arith.select %75, %77, %78 : vector<16x4096xi1>, vector<16x4096xf32>
    %80 = vector.broadcast %72 : vector<1x4096xi32> to vector<16x4096xi32>
    %81 = arith.cmpi eq, %73, %80 : vector<16x4096xi32>
    %cst_18 = arith.constant 0.000000e+00 : f32
    %82 = vector.shape_cast %43 : vector<1x4096xf32> to vector<1x4096xf32>
    %83 = vector.broadcast %82 : vector<1x4096xf32> to vector<16x4096xf32>
    %84 = vector.broadcast %cst_18 : f32 to vector<16x4096xf32>
    %85 = arith.select %81, %83, %84 : vector<16x4096xi1>, vector<16x4096xf32>
    %86 = arith.addf %79, %85 : vector<16x4096xf32>
    %87 = vector.broadcast %54 : vector<1x4096xf32> to vector<16x4096xf32>
    %88 = arith.mulf %86, %87 : vector<16x4096xf32>
    %c0_19 = arith.constant 0 : index
    %c0_20 = arith.constant 0 : index
    %c0_21 = arith.constant 0 : index
    %89 = vector.load %arg2[%c0_19, %c0_20, %c0_21] : memref<1x48x32xf32, #tpu.memory_space<vmem>>, vector<1x48x32xf32>
    %90 = vector.shape_cast %89 : vector<1x48x32xf32> to vector<48x32xf32>
    %cst_22 = arith.constant dense<0.000000e+00> : vector<48x4096xf32>
    %91 = tpu.matmul %90, %70, %cst_22 {dimension_numbers = #tpu.dot_dimension_numbers<[1], [0], [0], [1], [0, 0, 1, 1], [], []>} : vector<48x32xf32>, vector<32x4096xf32>, vector<48x4096xf32> -> vector<48x4096xf32>
    %92 = vector.extract_strided_slice %91 {offsets = [0, 0], sizes = [16, 4096], strides = [1, 1]} : vector<48x4096xf32> to vector<16x4096xf32>
    %93 = arith.mulf %92, %88 : vector<16x4096xf32>
    %cst_23 = arith.constant dense<0.000000e+00> : vector<4096xf32>
    %94 = vector.multi_reduction <add>, %93, %cst_23 [0] : vector<16x4096xf32> to vector<4096xf32>
    %95 = vector.shape_cast %94 : vector<4096xf32> to vector<1x4096xf32>
    %96 = vector.extract_strided_slice %95 {offsets = [0, 0], sizes = [1, 128], strides = [1, 1]} : vector<1x4096xf32> to vector<1x128xf32>
    %97 = vector.extract_strided_slice %95 {offsets = [0, 128], sizes = [1, 128], strides = [1, 1]} : vector<1x4096xf32> to vector<1x128xf32>
    %98 = vector.extract_strided_slice %95 {offsets = [0, 256], sizes = [1, 128], strides = [1, 1]} : vector<1x4096xf32> to vector<1x128xf32>
    %99 = vector.extract_strided_slice %95 {offsets = [0, 384], sizes = [1, 128], strides = [1, 1]} : vector<1x4096xf32> to vector<1x128xf32>
    %100 = vector.extract_strided_slice %95 {offsets = [0, 512], sizes = [1, 128], strides = [1, 1]} : vector<1x4096xf32> to vector<1x128xf32>
    %101 = vector.extract_strided_slice %95 {offsets = [0, 640], sizes = [1, 128], strides = [1, 1]} : vector<1x4096xf32> to vector<1x128xf32>
    %102 = vector.extract_strided_slice %95 {offsets = [0, 768], sizes = [1, 128], strides = [1, 1]} : vector<1x4096xf32> to vector<1x128xf32>
    %103 = vector.extract_strided_slice %95 {offsets = [0, 896], sizes = [1, 128], strides = [1, 1]} : vector<1x4096xf32> to vector<1x128xf32>
    %104 = vector.extract_strided_slice %95 {offsets = [0, 1024], sizes = [1, 128], strides = [1, 1]} : vector<1x4096xf32> to vector<1x128xf32>
    %105 = vector.extract_strided_slice %95 {offsets = [0, 1152], sizes = [1, 128], strides = [1, 1]} : vector<1x4096xf32> to vector<1x128xf32>
    %106 = vector.extract_strided_slice %95 {offsets = [0, 1280], sizes = [1, 128], strides = [1, 1]} : vector<1x4096xf32> to vector<1x128xf32>
    %107 = vector.extract_strided_slice %95 {offsets = [0, 1408], sizes = [1, 128], strides = [1, 1]} : vector<1x4096xf32> to vector<1x128xf32>
    %108 = vector.extract_strided_slice %95 {offsets = [0, 1536], sizes = [1, 128], strides = [1, 1]} : vector<1x4096xf32> to vector<1x128xf32>
    %109 = vector.extract_strided_slice %95 {offsets = [0, 1664], sizes = [1, 128], strides = [1, 1]} : vector<1x4096xf32> to vector<1x128xf32>
    %110 = vector.extract_strided_slice %95 {offsets = [0, 1792], sizes = [1, 128], strides = [1, 1]} : vector<1x4096xf32> to vector<1x128xf32>
    %111 = vector.extract_strided_slice %95 {offsets = [0, 1920], sizes = [1, 128], strides = [1, 1]} : vector<1x4096xf32> to vector<1x128xf32>
    %112 = vector.extract_strided_slice %95 {offsets = [0, 2048], sizes = [1, 128], strides = [1, 1]} : vector<1x4096xf32> to vector<1x128xf32>
    %113 = vector.extract_strided_slice %95 {offsets = [0, 2176], sizes = [1, 128], strides = [1, 1]} : vector<1x4096xf32> to vector<1x128xf32>
    %114 = vector.extract_strided_slice %95 {offsets = [0, 2304], sizes = [1, 128], strides = [1, 1]} : vector<1x4096xf32> to vector<1x128xf32>
    %115 = vector.extract_strided_slice %95 {offsets = [0, 2432], sizes = [1, 128], strides = [1, 1]} : vector<1x4096xf32> to vector<1x128xf32>
    %116 = vector.extract_strided_slice %95 {offsets = [0, 2560], sizes = [1, 128], strides = [1, 1]} : vector<1x4096xf32> to vector<1x128xf32>
    %117 = vector.extract_strided_slice %95 {offsets = [0, 2688], sizes = [1, 128], strides = [1, 1]} : vector<1x4096xf32> to vector<1x128xf32>
    %118 = vector.extract_strided_slice %95 {offsets = [0, 2816], sizes = [1, 128], strides = [1, 1]} : vector<1x4096xf32> to vector<1x128xf32>
    %119 = vector.extract_strided_slice %95 {offsets = [0, 2944], sizes = [1, 128], strides = [1, 1]} : vector<1x4096xf32> to vector<1x128xf32>
    %120 = vector.extract_strided_slice %95 {offsets = [0, 3072], sizes = [1, 128], strides = [1, 1]} : vector<1x4096xf32> to vector<1x128xf32>
    %121 = vector.extract_strided_slice %95 {offsets = [0, 3200], sizes = [1, 128], strides = [1, 1]} : vector<1x4096xf32> to vector<1x128xf32>
    %122 = vector.extract_strided_slice %95 {offsets = [0, 3328], sizes = [1, 128], strides = [1, 1]} : vector<1x4096xf32> to vector<1x128xf32>
    %123 = vector.extract_strided_slice %95 {offsets = [0, 3456], sizes = [1, 128], strides = [1, 1]} : vector<1x4096xf32> to vector<1x128xf32>
    %124 = vector.extract_strided_slice %95 {offsets = [0, 3584], sizes = [1, 128], strides = [1, 1]} : vector<1x4096xf32> to vector<1x128xf32>
    %125 = vector.extract_strided_slice %95 {offsets = [0, 3712], sizes = [1, 128], strides = [1, 1]} : vector<1x4096xf32> to vector<1x128xf32>
    %126 = vector.extract_strided_slice %95 {offsets = [0, 3840], sizes = [1, 128], strides = [1, 1]} : vector<1x4096xf32> to vector<1x128xf32>
    %127 = vector.extract_strided_slice %95 {offsets = [0, 3968], sizes = [1, 128], strides = [1, 1]} : vector<1x4096xf32> to vector<1x128xf32>
    %128 = vector.extract_strided_slice %91 {offsets = [16, 0], sizes = [16, 4096], strides = [1, 1]} : vector<48x4096xf32> to vector<16x4096xf32>
    %129 = arith.mulf %128, %88 : vector<16x4096xf32>
    %cst_24 = arith.constant dense<0.000000e+00> : vector<4096xf32>
    %130 = vector.multi_reduction <add>, %129, %cst_24 [0] : vector<16x4096xf32> to vector<4096xf32>
    %131 = vector.shape_cast %130 : vector<4096xf32> to vector<1x4096xf32>
    %132 = vector.extract_strided_slice %131 {offsets = [0, 0], sizes = [1, 128], strides = [1, 1]} : vector<1x4096xf32> to vector<1x128xf32>
    %133 = vector.extract_strided_slice %131 {offsets = [0, 128], sizes = [1, 128], strides = [1, 1]} : vector<1x4096xf32> to vector<1x128xf32>
    %134 = vector.extract_strided_slice %131 {offsets = [0, 256], sizes = [1, 128], strides = [1, 1]} : vector<1x4096xf32> to vector<1x128xf32>
    %135 = vector.extract_strided_slice %131 {offsets = [0, 384], sizes = [1, 128], strides = [1, 1]} : vector<1x4096xf32> to vector<1x128xf32>
    %136 = vector.extract_strided_slice %131 {offsets = [0, 512], sizes = [1, 128], strides = [1, 1]} : vector<1x4096xf32> to vector<1x128xf32>
    %137 = vector.extract_strided_slice %131 {offsets = [0, 640], sizes = [1, 128], strides = [1, 1]} : vector<1x4096xf32> to vector<1x128xf32>
    %138 = vector.extract_strided_slice %131 {offsets = [0, 768], sizes = [1, 128], strides = [1, 1]} : vector<1x4096xf32> to vector<1x128xf32>
    %139 = vector.extract_strided_slice %131 {offsets = [0, 896], sizes = [1, 128], strides = [1, 1]} : vector<1x4096xf32> to vector<1x128xf32>
    %140 = vector.extract_strided_slice %131 {offsets = [0, 1024], sizes = [1, 128], strides = [1, 1]} : vector<1x4096xf32> to vector<1x128xf32>
    %141 = vector.extract_strided_slice %131 {offsets = [0, 1152], sizes = [1, 128], strides = [1, 1]} : vector<1x4096xf32> to vector<1x128xf32>
    %142 = vector.extract_strided_slice %131 {offsets = [0, 1280], sizes = [1, 128], strides = [1, 1]} : vector<1x4096xf32> to vector<1x128xf32>
    %143 = vector.extract_strided_slice %131 {offsets = [0, 1408], sizes = [1, 128], strides = [1, 1]} : vector<1x4096xf32> to vector<1x128xf32>
    %144 = vector.extract_strided_slice %131 {offsets = [0, 1536], sizes = [1, 128], strides = [1, 1]} : vector<1x4096xf32> to vector<1x128xf32>
    %145 = vector.extract_strided_slice %131 {offsets = [0, 1664], sizes = [1, 128], strides = [1, 1]} : vector<1x4096xf32> to vector<1x128xf32>
    %146 = vector.extract_strided_slice %131 {offsets = [0, 1792], sizes = [1, 128], strides = [1, 1]} : vector<1x4096xf32> to vector<1x128xf32>
    %147 = vector.extract_strided_slice %131 {offsets = [0, 1920], sizes = [1, 128], strides = [1, 1]} : vector<1x4096xf32> to vector<1x128xf32>
    %148 = vector.extract_strided_slice %131 {offsets = [0, 2048], sizes = [1, 128], strides = [1, 1]} : vector<1x4096xf32> to vector<1x128xf32>
    %149 = vector.extract_strided_slice %131 {offsets = [0, 2176], sizes = [1, 128], strides = [1, 1]} : vector<1x4096xf32> to vector<1x128xf32>
    %150 = vector.extract_strided_slice %131 {offsets = [0, 2304], sizes = [1, 128], strides = [1, 1]} : vector<1x4096xf32> to vector<1x128xf32>
    %151 = vector.extract_strided_slice %131 {offsets = [0, 2432], sizes = [1, 128], strides = [1, 1]} : vector<1x4096xf32> to vector<1x128xf32>
    %152 = vector.extract_strided_slice %131 {offsets = [0, 2560], sizes = [1, 128], strides = [1, 1]} : vector<1x4096xf32> to vector<1x128xf32>
    %153 = vector.extract_strided_slice %131 {offsets = [0, 2688], sizes = [1, 128], strides = [1, 1]} : vector<1x4096xf32> to vector<1x128xf32>
    %154 = vector.extract_strided_slice %131 {offsets = [0, 2816], sizes = [1, 128], strides = [1, 1]} : vector<1x4096xf32> to vector<1x128xf32>
    %155 = vector.extract_strided_slice %131 {offsets = [0, 2944], sizes = [1, 128], strides = [1, 1]} : vector<1x4096xf32> to vector<1x128xf32>
    %156 = vector.extract_strided_slice %131 {offsets = [0, 3072], sizes = [1, 128], strides = [1, 1]} : vector<1x4096xf32> to vector<1x128xf32>
    %157 = vector.extract_strided_slice %131 {offsets = [0, 3200], sizes = [1, 128], strides = [1, 1]} : vector<1x4096xf32> to vector<1x128xf32>
    %158 = vector.extract_strided_slice %131 {offsets = [0, 3328], sizes = [1, 128], strides = [1, 1]} : vector<1x4096xf32> to vector<1x128xf32>
    %159 = vector.extract_strided_slice %131 {offsets = [0, 3456], sizes = [1, 128], strides = [1, 1]} : vector<1x4096xf32> to vector<1x128xf32>
    %160 = vector.extract_strided_slice %131 {offsets = [0, 3584], sizes = [1, 128], strides = [1, 1]} : vector<1x4096xf32> to vector<1x128xf32>
    %161 = vector.extract_strided_slice %131 {offsets = [0, 3712], sizes = [1, 128], strides = [1, 1]} : vector<1x4096xf32> to vector<1x128xf32>
    %162 = vector.extract_strided_slice %131 {offsets = [0, 3840], sizes = [1, 128], strides = [1, 1]} : vector<1x4096xf32> to vector<1x128xf32>
    %163 = vector.extract_strided_slice %131 {offsets = [0, 3968], sizes = [1, 128], strides = [1, 1]} : vector<1x4096xf32> to vector<1x128xf32>
    %164 = vector.extract_strided_slice %91 {offsets = [32, 0], sizes = [16, 4096], strides = [1, 1]} : vector<48x4096xf32> to vector<16x4096xf32>
    %165 = arith.mulf %164, %88 : vector<16x4096xf32>
    %cst_25 = arith.constant dense<0.000000e+00> : vector<4096xf32>
    %166 = vector.multi_reduction <add>, %165, %cst_25 [0] : vector<16x4096xf32> to vector<4096xf32>
    %167 = vector.shape_cast %166 : vector<4096xf32> to vector<1x4096xf32>
    %168 = vector.extract_strided_slice %167 {offsets = [0, 0], sizes = [1, 128], strides = [1, 1]} : vector<1x4096xf32> to vector<1x128xf32>
    %169 = vector.extract_strided_slice %167 {offsets = [0, 128], sizes = [1, 128], strides = [1, 1]} : vector<1x4096xf32> to vector<1x128xf32>
    %170 = vector.extract_strided_slice %167 {offsets = [0, 256], sizes = [1, 128], strides = [1, 1]} : vector<1x4096xf32> to vector<1x128xf32>
    %171 = vector.extract_strided_slice %167 {offsets = [0, 384], sizes = [1, 128], strides = [1, 1]} : vector<1x4096xf32> to vector<1x128xf32>
    %172 = vector.extract_strided_slice %167 {offsets = [0, 512], sizes = [1, 128], strides = [1, 1]} : vector<1x4096xf32> to vector<1x128xf32>
    %173 = vector.extract_strided_slice %167 {offsets = [0, 640], sizes = [1, 128], strides = [1, 1]} : vector<1x4096xf32> to vector<1x128xf32>
    %174 = vector.extract_strided_slice %167 {offsets = [0, 768], sizes = [1, 128], strides = [1, 1]} : vector<1x4096xf32> to vector<1x128xf32>
    %175 = vector.extract_strided_slice %167 {offsets = [0, 896], sizes = [1, 128], strides = [1, 1]} : vector<1x4096xf32> to vector<1x128xf32>
    %176 = vector.extract_strided_slice %167 {offsets = [0, 1024], sizes = [1, 128], strides = [1, 1]} : vector<1x4096xf32> to vector<1x128xf32>
    %177 = vector.extract_strided_slice %167 {offsets = [0, 1152], sizes = [1, 128], strides = [1, 1]} : vector<1x4096xf32> to vector<1x128xf32>
    %178 = vector.extract_strided_slice %167 {offsets = [0, 1280], sizes = [1, 128], strides = [1, 1]} : vector<1x4096xf32> to vector<1x128xf32>
    %179 = vector.extract_strided_slice %167 {offsets = [0, 1408], sizes = [1, 128], strides = [1, 1]} : vector<1x4096xf32> to vector<1x128xf32>
    %180 = vector.extract_strided_slice %167 {offsets = [0, 1536], sizes = [1, 128], strides = [1, 1]} : vector<1x4096xf32> to vector<1x128xf32>
    %181 = vector.extract_strided_slice %167 {offsets = [0, 1664], sizes = [1, 128], strides = [1, 1]} : vector<1x4096xf32> to vector<1x128xf32>
    %182 = vector.extract_strided_slice %167 {offsets = [0, 1792], sizes = [1, 128], strides = [1, 1]} : vector<1x4096xf32> to vector<1x128xf32>
    %183 = vector.extract_strided_slice %167 {offsets = [0, 1920], sizes = [1, 128], strides = [1, 1]} : vector<1x4096xf32> to vector<1x128xf32>
    %184 = vector.extract_strided_slice %167 {offsets = [0, 2048], sizes = [1, 128], strides = [1, 1]} : vector<1x4096xf32> to vector<1x128xf32>
    %185 = vector.extract_strided_slice %167 {offsets = [0, 2176], sizes = [1, 128], strides = [1, 1]} : vector<1x4096xf32> to vector<1x128xf32>
    %186 = vector.extract_strided_slice %167 {offsets = [0, 2304], sizes = [1, 128], strides = [1, 1]} : vector<1x4096xf32> to vector<1x128xf32>
    %187 = vector.extract_strided_slice %167 {offsets = [0, 2432], sizes = [1, 128], strides = [1, 1]} : vector<1x4096xf32> to vector<1x128xf32>
    %188 = vector.extract_strided_slice %167 {offsets = [0, 2560], sizes = [1, 128], strides = [1, 1]} : vector<1x4096xf32> to vector<1x128xf32>
    %189 = vector.extract_strided_slice %167 {offsets = [0, 2688], sizes = [1, 128], strides = [1, 1]} : vector<1x4096xf32> to vector<1x128xf32>
    %190 = vector.extract_strided_slice %167 {offsets = [0, 2816], sizes = [1, 128], strides = [1, 1]} : vector<1x4096xf32> to vector<1x128xf32>
    %191 = vector.extract_strided_slice %167 {offsets = [0, 2944], sizes = [1, 128], strides = [1, 1]} : vector<1x4096xf32> to vector<1x128xf32>
    %192 = vector.extract_strided_slice %167 {offsets = [0, 3072], sizes = [1, 128], strides = [1, 1]} : vector<1x4096xf32> to vector<1x128xf32>
    %193 = vector.extract_strided_slice %167 {offsets = [0, 3200], sizes = [1, 128], strides = [1, 1]} : vector<1x4096xf32> to vector<1x128xf32>
    %194 = vector.extract_strided_slice %167 {offsets = [0, 3328], sizes = [1, 128], strides = [1, 1]} : vector<1x4096xf32> to vector<1x128xf32>
    %195 = vector.extract_strided_slice %167 {offsets = [0, 3456], sizes = [1, 128], strides = [1, 1]} : vector<1x4096xf32> to vector<1x128xf32>
    %196 = vector.extract_strided_slice %167 {offsets = [0, 3584], sizes = [1, 128], strides = [1, 1]} : vector<1x4096xf32> to vector<1x128xf32>
    %197 = vector.extract_strided_slice %167 {offsets = [0, 3712], sizes = [1, 128], strides = [1, 1]} : vector<1x4096xf32> to vector<1x128xf32>
    %198 = vector.extract_strided_slice %167 {offsets = [0, 3840], sizes = [1, 128], strides = [1, 1]} : vector<1x4096xf32> to vector<1x128xf32>
    %199 = vector.extract_strided_slice %167 {offsets = [0, 3968], sizes = [1, 128], strides = [1, 1]} : vector<1x4096xf32> to vector<1x128xf32>
    %200 = tpu.concatenate %96, %97, %98, %99, %100, %101, %102, %103, %104, %105, %106, %107, %108, %109, %110, %111 in 0 : vector<1x128xf32>, vector<1x128xf32>, vector<1x128xf32>, vector<1x128xf32>, vector<1x128xf32>, vector<1x128xf32>, vector<1x128xf32>, vector<1x128xf32>, vector<1x128xf32>, vector<1x128xf32>, vector<1x128xf32>, vector<1x128xf32>, vector<1x128xf32>, vector<1x128xf32>, vector<1x128xf32>, vector<1x128xf32> -> vector<16x128xf32>
    %201 = tpu.concatenate %112, %113, %114, %115, %116, %117, %118, %119, %120, %121, %122, %123, %124, %125, %126, %127 in 0 : vector<1x128xf32>, vector<1x128xf32>, vector<1x128xf32>, vector<1x128xf32>, vector<1x128xf32>, vector<1x128xf32>, vector<1x128xf32>, vector<1x128xf32>, vector<1x128xf32>, vector<1x128xf32>, vector<1x128xf32>, vector<1x128xf32>, vector<1x128xf32>, vector<1x128xf32>, vector<1x128xf32>, vector<1x128xf32> -> vector<16x128xf32>
    %202 = tpu.concatenate %132, %133, %134, %135, %136, %137, %138, %139, %140, %141, %142, %143, %144, %145, %146, %147 in 0 : vector<1x128xf32>, vector<1x128xf32>, vector<1x128xf32>, vector<1x128xf32>, vector<1x128xf32>, vector<1x128xf32>, vector<1x128xf32>, vector<1x128xf32>, vector<1x128xf32>, vector<1x128xf32>, vector<1x128xf32>, vector<1x128xf32>, vector<1x128xf32>, vector<1x128xf32>, vector<1x128xf32>, vector<1x128xf32> -> vector<16x128xf32>
    %203 = tpu.concatenate %148, %149, %150, %151, %152, %153, %154, %155, %156, %157, %158, %159, %160, %161, %162, %163 in 0 : vector<1x128xf32>, vector<1x128xf32>, vector<1x128xf32>, vector<1x128xf32>, vector<1x128xf32>, vector<1x128xf32>, vector<1x128xf32>, vector<1x128xf32>, vector<1x128xf32>, vector<1x128xf32>, vector<1x128xf32>, vector<1x128xf32>, vector<1x128xf32>, vector<1x128xf32>, vector<1x128xf32>, vector<1x128xf32> -> vector<16x128xf32>
    %204 = tpu.concatenate %168, %169, %170, %171, %172, %173, %174, %175, %176, %177, %178, %179, %180, %181, %182, %183 in 0 : vector<1x128xf32>, vector<1x128xf32>, vector<1x128xf32>, vector<1x128xf32>, vector<1x128xf32>, vector<1x128xf32>, vector<1x128xf32>, vector<1x128xf32>, vector<1x128xf32>, vector<1x128xf32>, vector<1x128xf32>, vector<1x128xf32>, vector<1x128xf32>, vector<1x128xf32>, vector<1x128xf32>, vector<1x128xf32> -> vector<16x128xf32>
    %205 = tpu.concatenate %184, %185, %186, %187, %188, %189, %190, %191, %192, %193, %194, %195, %196, %197, %198, %199 in 0 : vector<1x128xf32>, vector<1x128xf32>, vector<1x128xf32>, vector<1x128xf32>, vector<1x128xf32>, vector<1x128xf32>, vector<1x128xf32>, vector<1x128xf32>, vector<1x128xf32>, vector<1x128xf32>, vector<1x128xf32>, vector<1x128xf32>, vector<1x128xf32>, vector<1x128xf32>, vector<1x128xf32>, vector<1x128xf32> -> vector<16x128xf32>
    %206 = tpu.concatenate %200, %201, %202, %203, %204, %205 in 0 : vector<16x128xf32>, vector<16x128xf32>, vector<16x128xf32>, vector<16x128xf32>, vector<16x128xf32>, vector<16x128xf32> -> vector<96x128xf32>
    %c0_26 = arith.constant 0 : index
    %c0_27 = arith.constant 0 : index
    %207 = vector.load %arg4[%c0_26, %c0_27] : memref<128x32xf32, #tpu.memory_space<vmem>>, vector<128x32xf32>
    %cst_28 = arith.constant dense<0.000000e+00> : vector<96x32xf32>
    %208 = tpu.matmul %206, %207, %cst_28 {dimension_numbers = #tpu.dot_dimension_numbers<[1], [0], [0], [1], [0, 0, 1, 1], [], []>} : vector<96x128xf32>, vector<128x32xf32>, vector<96x32xf32> -> vector<96x32xf32>
    %209 = vector.extract_strided_slice %208 {offsets = [0, 0], sizes = [32, 32], strides = [1, 1]} : vector<96x32xf32> to vector<32x32xf32>
    %c0_29 = arith.constant 0 : index
    %c0_30 = arith.constant 0 : index
    %c0_31 = arith.constant 0 : index
    %c0_32 = arith.constant 0 : index
    %210 = vector.load %arg5[%c0_29, %c0_30, %c0_31, %c0_32] : memref<1x3x32x32xf32, #tpu.memory_space<vmem>>, vector<1x1x32x32xf32>
    %211 = vector.shape_cast %210 : vector<1x1x32x32xf32> to vector<32x32xf32>
    %212 = vector.shape_cast %209 : vector<32x32xf32> to vector<1x1x32x32xf32>
    tpu.vector_store %arg5[%c0_29, %c0_30, %c0_31, %c0_32], %212 {strides = array<i32>} : memref<1x3x32x32xf32, #tpu.memory_space<vmem>>, vector<1x1x32x32xf32>,
    %213 = vector.extract_strided_slice %208 {offsets = [32, 0], sizes = [32, 32], strides = [1, 1]} : vector<96x32xf32> to vector<32x32xf32>
    %c0_33 = arith.constant 0 : index
    %c1 = arith.constant 1 : index
    %c0_34 = arith.constant 0 : index
    %c0_35 = arith.constant 0 : index
    %214 = vector.load %arg5[%c0_33, %c1, %c0_34, %c0_35] : memref<1x3x32x32xf32, #tpu.memory_space<vmem>>, vector<1x1x32x32xf32>
    %215 = vector.shape_cast %214 : vector<1x1x32x32xf32> to vector<32x32xf32>
    %216 = vector.shape_cast %213 : vector<32x32xf32> to vector<1x1x32x32xf32>
    tpu.vector_store %arg5[%c0_33, %c1, %c0_34, %c0_35], %216 {strides = array<i32>} : memref<1x3x32x32xf32, #tpu.memory_space<vmem>>, vector<1x1x32x32xf32>,
    %217 = vector.extract_strided_slice %208 {offsets = [64, 0], sizes = [32, 32], strides = [1, 1]} : vector<96x32xf32> to vector<32x32xf32>
    %c0_36 = arith.constant 0 : index
    %c2 = arith.constant 2 : index
    %c0_37 = arith.constant 0 : index
    %c0_38 = arith.constant 0 : index
    %218 = vector.load %arg5[%c0_36, %c2, %c0_37, %c0_38] : memref<1x3x32x32xf32, #tpu.memory_space<vmem>>, vector<1x1x32x32xf32>
    %219 = vector.shape_cast %218 : vector<1x1x32x32xf32> to vector<32x32xf32>
    %220 = vector.shape_cast %217 : vector<32x32xf32> to vector<1x1x32x32xf32>
    tpu.vector_store %arg5[%c0_36, %c2, %c0_37, %c0_38], %220 {strides = array<i32>} : memref<1x3x32x32xf32, #tpu.memory_space<vmem>>, vector<1x1x32x32xf32>,
    return
  }
  func.func @transform_0(%arg0: i32, %arg1: i32) -> (i32, i32, i32) {
    %c0_i32 = arith.constant 0 : i32
    %c0_i32_0 = arith.constant 0 : i32
    %c0_i32_1 = arith.constant 0 : i32
    return %arg0, %c0_i32, %c0_i32_0 : i32, i32, i32
  }
  func.func @transform_1(%arg0: i32, %arg1: i32) -> (i32, i32, i32, i32) {
    %c0_i32 = arith.constant 0 : i32
    %c0_i32_0 = arith.constant 0 : i32
    %c0_i32_1 = arith.constant 0 : i32
    return %arg0, %arg1, %c0_i32, %c0_i32_0 : i32, i32, i32, i32
  }
  func.func @transform_2(%arg0: i32, %arg1: i32) -> (i32, i32) {
    %c0_i32 = arith.constant 0 : i32
    %c0_i32_0 = arith.constant 0 : i32
    %c0_i32_1 = arith.constant 0 : i32
    return %c0_i32, %c0_i32_0 : i32, i32
  }
  func.func @transform_3(%arg0: i32, %arg1: i32) -> (i32, i32, i32, i32) {
    %c0_i32 = arith.constant 0 : i32
    %c0_i32_0 = arith.constant 0 : i32
    %c0_i32_1 = arith.constant 0 : i32
    return %arg0, %c0_i32, %arg1, %c0_i32_0 : i32, i32, i32, i32
  }
}

</mosaic_0001>

<llo_original>
// kernel: model2_forward.1
$region0: #{model2_forward.1}
  #allocation0 [shape = 'u32[]', space=smem, size = 0x4, offset = 0x4, fixed_abs, tag = 'smem constant byte address 0x4 - core index']
  #allocation1 [shape = 'u32[72,128]{1,0:T(1,128)}', space=vmem, size = 0x9000, scoped, tag = 'internal scratch']
  %s0 = inlined_call_operand.vmem [shape: f32[5,48,32], index: 0, kind: input, shape index: {}]
  %s1 = inlined_call_operand.vmem [shape: f32[5,1,2,4096], index: 1, kind: input, shape index: {}]
  %s2 = inlined_call_operand.vmem [shape: f32[128,32], index: 2, kind: input, shape index: {}]
  %s3 = inlined_call_operand.hbm [shape: f32[5,3,32,32], index: 3, kind: output, shape index: {}]
  %s4 = sld [smem:[#allocation0]]
  $region45: #{model2_forward.1} parent=0
    _
  %s6 = ssub.s32 1, %s4
  %s7 = scalar_select 0, %s6, %s4
  $region1: #{model2_forward.1} parent=0
    #allocation2 [shape = 'u8[98304]{0}', space=vmem, size = 0x18000, scoped, tag = 'output window, operand 0']
    #allocation3 [shape = 's32[2]{0}', space=sflag, size = 0x8, scoped, tag = 'scoped memory for model2_forward.1']
    %8 = vsyncpa [#allocation3], 0
    %s9 = scalar_lea.sflag [#allocation3], 1
    %10 = vsyncpa %s9, 0
    loop: start=0, step=1, limit=7
    $region2: #{model2_forward.1} parent=1 // loop_pre_header
      _
    $region3: #{model2_forward.1} parent=1 // loop_header
      %s12 = sphi 0, %s16
      %p13 = scmp.ge.s32.totalorder %s12, 7
      %s19 = sphi 0, %s31
      %s20 = sphi 0, %s27
      %s21 = sphi 0, %s19
      %s22 = sphi 0, %s20
      %s23 = sphi 0, %s21
      %s24 = sphi 0, %s22
      %s34 = sphi 0, %s36
      %s37 = sphi 0, %s34
      %s38 = sphi 0, %s37
      %s54 = sphi 0, %s38
      %s62 = sphi 0, %s64
      %s65 = sphi 0, %s62
      %s66 = sphi 0, %s65
      %s82 = sphi 0, %s66
      %s86 = sphi 0, %s86
      %s88 = sphi 0, %s86
      %s89 = sphi 0, %s88
      %s103 = sphi 0, %s89
      %s111 = sphi 0, %s113
      %s114 = sphi 0, %s111
      %s115 = sphi 0, %s114
      %s131 = sphi 0, %s115
    $region4: #{model2_forward.1} parent=1 // loop_header_branch
      %15 = sbr.rel (%p13) target = $region8
    $region5: #{model2_forward.1} parent=1 // loop_body
      %s17 = ssub.s32 %s12, 1
      %s18 = ssub.s32 %s12, 2
      %s25 = sadd.s32 1, %s20
      %p26 = scmp.ge.s32.totalorder %s25, 1
      %s27 = scalar_select %p26, 0, %s25
      %s28 = sadd.s32 1, %s19
      %s29 = scalar_select %p26, %s28, %s19
      %p30 = scmp.ge.s32.totalorder %s29, 5
      %s31 = scalar_select %p30, 0, %s29
      %s32 = ssub.s32 %s19, %s31
      %p33 = scmp.eq.s32.totalorder %s32, 0
      %s35 = sadd.s32 %s34, 1
      %s36 = scalar_select %p33, %s34, %s35
      %p39 = pneg %p33
      %p40 = scmp.eq.s32.totalorder %s12, 4
      %p41 = por %p39, %p40
      %p42 = scmp.ne.s32.totalorder %s34, %s37
      %p43 = scmp.eq.s32.totalorder %s12, 0
      %p44 = por %p42, %p43
      %p45 = scmp.ne.s32.totalorder %s34, %s37
      %p46 = scmp.eq.s32.totalorder %s17, 4
      %p47 = por %p45, %p46
      %p48 = scmp.ne.s32.totalorder %s37, %s38
      %p49 = scmp.eq.s32.totalorder %s17, 0
      %p50 = por %p48, %p49
      %p51 = scmp.ne.s32.totalorder %s37, %s38
      %p52 = scmp.eq.s32.totalorder %s18, 4
      %p53 = por %p51, %p52
      %p55 = scmp.ne.s32.totalorder %s38, %s54
      %p56 = scmp.eq.s32.totalorder %s18, 0
      %p57 = por %p55, %p56
      %s58 = ssub.s32 %s19, %s31
      %s59 = ssub.s32 %s20, %s27
      %s60 = sor.u32 %s58, %s59
      %p61 = scmp.eq.s32.totalorder %s60, 0
      %s63 = sadd.s32 %s62, 1
      %s64 = scalar_select %p61, %s62, %s63
      %p67 = pneg %p61
      %p68 = scmp.eq.s32.totalorder %s12, 4
      %p69 = por %p67, %p68
      %p70 = scmp.ne.s32.totalorder %s62, %s65
      %p71 = scmp.eq.s32.totalorder %s12, 0
      %p72 = por %p70, %p71
      %p73 = scmp.ne.s32.totalorder %s62, %s65
      %p74 = scmp.eq.s32.totalorder %s17, 4
      %p75 = por %p73, %p74
      %p76 = scmp.ne.s32.totalorder %s65, %s66
      %p77 = scmp.eq.s32.totalorder %s17, 0
      %p78 = por %p76, %p77
      %p79 = scmp.ne.s32.totalorder %s65, %s66
      %p80 = scmp.eq.s32.totalorder %s18, 4
      %p81 = por %p79, %p80
      %p83 = scmp.ne.s32.totalorder %s66, %s82
      %p84 = scmp.eq.s32.totalorder %s18, 0
      %p85 = por %p83, %p84
      %s87 = sadd.s32 %s86, 1
      %p90 = scmp.eq.s32.totalorder %s12, 4
      %p91 = scmp.ne.s32.totalorder %s86, %s88
      %p92 = scmp.eq.s32.totalorder %s12, 0
      %p93 = por %p91, %p92
      %p94 = scmp.ne.s32.totalorder %s86, %s88
      %p95 = scmp.eq.s32.totalorder %s17, 4
      %p96 = por %p94, %p95
      %p97 = scmp.ne.s32.totalorder %s88, %s89
      %p98 = scmp.eq.s32.totalorder %s17, 0
      %p99 = por %p97, %p98
      %p100 = scmp.ne.s32.totalorder %s88, %s89
      %p101 = scmp.eq.s32.totalorder %s18, 4
      %p102 = por %p100, %p101
      %p104 = scmp.ne.s32.totalorder %s89, %s103
      %p105 = scmp.eq.s32.totalorder %s18, 0
      %p106 = por %p104, %p105
      %s107 = ssub.s32 %s19, %s31
      %s108 = ssub.s32 %s20, %s27
      %s109 = sor.u32 %s107, %s108
      %p110 = scmp.eq.s32.totalorder %s109, 0
      %s112 = sadd.s32 %s111, 1
      %s113 = scalar_select %p110, %s111, %s112
      %p116 = pneg %p110
      %p117 = scmp.eq.s32.totalorder %s12, 4
      %p118 = por %p116, %p117
      %p119 = scmp.ne.s32.totalorder %s111, %s114
      %p120 = scmp.eq.s32.totalorder %s12, 0
      %p121 = por %p119, %p120
      %p122 = scmp.ne.s32.totalorder %s111, %s114
      %p123 = scmp.eq.s32.totalorder %s17, 4
      %p124 = por %p122, %p123
      %p125 = scmp.ne.s32.totalorder %s114, %s115
      %p126 = scmp.eq.s32.totalorder %s17, 0
      %p127 = por %p125, %p126
      %p128 = scmp.ne.s32.totalorder %s114, %s115
      %p129 = scmp.eq.s32.totalorder %s18, 4
      %p130 = por %p128, %p129
      %p132 = scmp.ne.s32.totalorder %s115, %s131
      %p133 = scmp.eq.s32.totalorder %s18, 0
      %p134 = por %p132, %p133
      %p135 = scmp.le.s32.totalorder 1, %s12
      %p136 = scmp.lt.s32.totalorder %s12, 6
      %p137 = pnand %p135, %p136
      %p138 = pneg %p137
      // Predicated region
      $region9: #{model2_forward.1} parent=5 // pred_check
        _
      $region10: #{model2_forward.1} parent=5 // pred_check_branch
        %140 = sbr.rel (%p137) target = $region12
      $region11: #{model2_forward.1} parent=5 // pred_region
        %s141 = ssub.s32 %s12, 1
        // Predicated region
        $region13: #{model2_forward.1} parent=11 // pred_check
          %p142 = pneg %p99
        $region14: #{model2_forward.1} parent=11 // pred_check_branch
          %144 = sbr.rel (%p142) target = $region16
        $region15: #{model2_forward.1} parent=11 // pred_region
          _
        $region16: #{model2_forward.1} parent=11 // pred_fallthru
          _
      $region12: #{model2_forward.1} parent=5 // pred_fallthru
        _
      %p145 = scmp.lt.s32.totalorder %s12, 5
      // Predicated region
      $region17: #{model2_forward.1} parent=5 // pred_check
        %p146 = pneg %p145
      $region18: #{model2_forward.1} parent=5 // pred_check_branch
        %148 = sbr.rel (%p146) target = $region20
      $region19: #{model2_forward.1} parent=5 // pred_region
        // Predicated region
        $region21: #{model2_forward.1} parent=19 // pred_check
          %p149 = pneg %p44
        $region22: #{model2_forward.1} parent=19 // pred_check_branch
          %151 = sbr.rel (%p149) target = $region24
        $region23: #{model2_forward.1} parent=19 // pred_region
          %p152 = scmp.lt.s32.totalorder %s19, 4
          %s153 = scalar_select %p152, %s19, 4
          %s154 = smul.addr %s153, 6
          %s155 = smul.addr %s154, 8
          %s156 = scalar_lea.vmem %s0, %s155
        $region24: #{model2_forward.1} parent=19 // pred_fallthru
          _
        // Predicated region
        $region25: #{model2_forward.1} parent=19 // pred_check
          %p157 = pneg %p72
        $region26: #{model2_forward.1} parent=19 // pred_check_branch
          %159 = sbr.rel (%p157) target = $region28
        $region27: #{model2_forward.1} parent=19 // pred_region
          %p160 = scmp.lt.s32.totalorder %s19, 4
          %s161 = scalar_select %p160, %s19, 4
          %p162 = scmp.lt.s32.totalorder %s20, 0
          %s163 = scalar_select %p162, %s20, 0
          %s164 = smul.addr %s163, 32
          %s165 = smul.addr %s161, 32
          %s166 = sadd.s32 %s164, %s165
          %s167 = smul.addr %s166, 2
          %s168 = scalar_lea.vmem %s1, %s167
        $region28: #{model2_forward.1} parent=19 // pred_fallthru
          _
      $region20: #{model2_forward.1} parent=5 // pred_fallthru
        _
      %p169 = scmp.le.s32.totalorder 1, %s12
      %p170 = scmp.lt.s32.totalorder %s12, 6
      %p171 = pnand %p169, %p170
      %p172 = pneg %p171
      // Predicated region
      $region29: #{model2_forward.1} parent=5 // pred_check
        _
      $region30: #{model2_forward.1} parent=5 // pred_check_branch
        %174 = sbr.rel (%p171) target = $region32
      $region31: #{model2_forward.1} parent=5 // pred_region
        %s175 = ssub.s32 %s12, 1
        %p176 = scmp.lt.s32.totalorder %s21, 4
        %s177 = scalar_select %p176, %s21, 4
        %s178 = smul.addr %s177, 6
        %s179 = smul.addr %s178, 8
        %s180 = scalar_lea.vmem %s0, %s179
        %p181 = pneg %p50
        %p182 = pneg %p47
        %p183 = scmp.lt.s32.totalorder %s21, 4
        %s184 = scalar_select %p183, %s21, 4
        %p185 = scmp.lt.s32.totalorder %s22, 0
        %s186 = scalar_select %p185, %s22, 0
        %s187 = smul.addr %s186, 32
        %s188 = smul.addr %s184, 32
        %s189 = sadd.s32 %s187, %s188
        %s190 = smul.addr %s189, 2
        %s191 = scalar_lea.vmem %s1, %s190
        %p192 = pneg %p78
        %p193 = pneg %p75
        %p194 = pneg %p99
        %p195 = pneg %p96
        %p196 = pneg %p127
        %p197 = pneg %p124
        %s198 = sand.u32 %s114, 1
        %s199 = scalar_lea.sflag [#allocation3], %s198
        %s200 = sand.u32 %s114, 1
        %s201 = smul.addr %s200, 96
        %s202 = scalar_lea.vmem [#allocation2], %s201
        %p203 = scmp.lt.s32.totalorder %s21, 4
        %s204 = scalar_select %p203, %s21, 4
        %s205 = smul.addr %s204, 6
        %s206 = smul.addr %s205, 8
        %s207 = scalar_lea.vmem %s0, %s206
        %p208 = scmp.lt.s32.totalorder %s21, 4
        %s209 = scalar_select %p208, %s21, 4
        %p210 = scmp.lt.s32.totalorder %s22, 0
        %s211 = scalar_select %p210, %s22, 0
        %s212 = smul.addr %s211, 32
        %s213 = smul.addr %s209, 32
        %s214 = sadd.s32 %s212, %s213
        %s215 = smul.addr %s214, 2
        %s216 = scalar_lea.vmem %s1, %s215
        %s217 = smul.u32 4, %s22
        %v218 = vld [vmem:[%s216] sm:$0xff]
        %v219 = vld [vmem:[%s216 + $0x8] sm:$0xff]
        %v220 = vld [vmem:[%s216 + $0x10] sm:$0xff]
        %v221 = vld [vmem:[%s216 + $0x18] sm:$0xff]
        %v222 = vld [vmem:[%s216 + $0x20] sm:$0xff]
        %v223 = vld [vmem:[%s216 + $0x28] sm:$0xff]
        %v224 = vld [vmem:[%s216 + $0x30] sm:$0xff]
        %v225 = vld [vmem:[%s216 + $0x38] sm:$0xff]
        %v226 = vfloor.f32 %v218
        %v227 = vfloor.f32 %v219
        %v228 = vfloor.f32 %v220
        %v229 = vfloor.f32 %v221
        %v230 = vfloor.f32 %v222
        %v231 = vfloor.f32 %v223
        %v232 = vfloor.f32 %v224
        %v233 = vfloor.f32 %v225
        %v234 = vsub.f32 %v218, %v226
        %v235 = vsub.f32 %v219, %v227
        %v236 = vsub.f32 %v220, %v228
        %v237 = vsub.f32 %v221, %v229
        %v238 = vsub.f32 %v222, %v230
        %v239 = vsub.f32 %v223, %v231
        %v240 = vsub.f32 %v224, %v232
        %v241 = vsub.f32 %v225, %v233
        %v242 = vadd.f32 %v226, 1.0
        %v243 = vadd.f32 %v227, 1.0
        %v244 = vadd.f32 %v228, 1.0
        %v245 = vadd.f32 %v229, 1.0
        %v246 = vadd.f32 %v230, 1.0
        %v247 = vadd.f32 %v231, 1.0
        %v248 = vadd.f32 %v232, 1.0
        %v249 = vadd.f32 %v233, 1.0
        %vm250 = vcmp.ge.f32.partialorder %v226, 0.0
        %vm251 = vcmp.ge.f32.partialorder %v227, 0.0
        %vm252 = vcmp.ge.f32.partialorder %v228, 0.0
        %vm253 = vcmp.ge.f32.partialorder %v229, 0.0
        %vm254 = vcmp.ge.f32.partialorder %v230, 0.0
        %vm255 = vcmp.ge.f32.partialorder %v231, 0.0
        %vm256 = vcmp.ge.f32.partialorder %v232, 0.0
        %vm257 = vcmp.ge.f32.partialorder %v233, 0.0
        %vm258 = vcmp.le.f32.partialorder %v226, 15.0
        %vm259 = vcmp.le.f32.partialorder %v227, 15.0
        %vm260 = vcmp.le.f32.partialorder %v228, 15.0
        %vm261 = vcmp.le.f32.partialorder %v229, 15.0
        %vm262 = vcmp.le.f32.partialorder %v230, 15.0
        %vm263 = vcmp.le.f32.partialorder %v231, 15.0
        %vm264 = vcmp.le.f32.partialorder %v232, 15.0
        %vm265 = vcmp.le.f32.partialorder %v233, 15.0
        %vm266 = vmand %vm250, %vm258
        %vm267 = vmand %vm251, %vm259
        %vm268 = vmand %vm252, %vm260
        %vm269 = vmand %vm253, %vm261
        %vm270 = vmand %vm254, %vm262
        %vm271 = vmand %vm255, %vm263
        %vm272 = vmand %vm256, %vm264
        %vm273 = vmand %vm257, %vm265
        %v274 = vsel %vm266, 1, 0
        %v275 = vsel %vm267, 1, 0
        %v276 = vsel %vm268, 1, 0
        %v277 = vsel %vm269, 1, 0
        %v278 = vsel %vm270, 1, 0
        %v279 = vsel %vm271, 1, 0
        %v280 = vsel %vm272, 1, 0
        %v281 = vsel %vm273, 1, 0
        %v282 = vcvt.s32.f32 %v274
        %v283 = vcvt.s32.f32 %v275
        %v284 = vcvt.s32.f32 %v276
        %v285 = vcvt.s32.f32 %v277
        %v286 = vcvt.s32.f32 %v278
        %v287 = vcvt.s32.f32 %v279
        %v288 = vcvt.s32.f32 %v280
        %v289 = vcvt.s32.f32 %v281
        %vm290 = vcmp.ge.f32.partialorder %v242, 0.0
        %vm291 = vcmp.ge.f32.partialorder %v243, 0.0
        %vm292 = vcmp.ge.f32.partialorder %v244, 0.0
        %vm293 = vcmp.ge.f32.partialorder %v245, 0.0
        %vm294 = vcmp.ge.f32.partialorder %v246, 0.0
        %vm295 = vcmp.ge.f32.partialorder %v247, 0.0
        %vm296 = vcmp.ge.f32.partialorder %v248, 0.0
        %vm297 = vcmp.ge.f32.partialorder %v249, 0.0
        %vm298 = vcmp.le.f32.partialorder %v242, 15.0
        %vm299 = vcmp.le.f32.partialorder %v243, 15.0
        %vm300 = vcmp.le.f32.partialorder %v244, 15.0
        %vm301 = vcmp.le.f32.partialorder %v245, 15.0
        %vm302 = vcmp.le.f32.partialorder %v246, 15.0
        %vm303 = vcmp.le.f32.partialorder %v247, 15.0
        %vm304 = vcmp.le.f32.partialorder %v248, 15.0
        %vm305 = vcmp.le.f32.partialorder %v249, 15.0
        %vm306 = vmand %vm290, %vm298
        %vm307 = vmand %vm291, %vm299
        %vm308 = vmand %vm292, %vm300
        %vm309 = vmand %vm293, %vm301
        %vm310 = vmand %vm294, %vm302
        %vm311 = vmand %vm295, %vm303
        %vm312 = vmand %vm296, %vm304
        %vm313 = vmand %vm297, %vm305
        %v314 = vsel %vm306, 1, 0
        %v315 = vsel %vm307, 1, 0
        %v316 = vsel %vm308, 1, 0
        %v317 = vsel %vm309, 1, 0
        %v318 = vsel %vm310, 1, 0
        %v319 = vsel %vm311, 1, 0
        %v320 = vsel %vm312, 1, 0
        %v321 = vsel %vm313, 1, 0
        %v322 = vcvt.s32.f32 %v314
        %v323 = vcvt.s32.f32 %v315
        %v324 = vcvt.s32.f32 %v316
        %v325 = vcvt.s32.f32 %v317
        %v326 = vcvt.s32.f32 %v318
        %v327 = vcvt.s32.f32 %v319
        %v328 = vcvt.s32.f32 %v320
        %v329 = vcvt.s32.f32 %v321
        %vm330 = vcmp.le.f32.partialorder %v226, 31.0
        %vm331 = vcmp.le.f32.partialorder %v227, 31.0
        %vm332 = vcmp.le.f32.partialorder %v228, 31.0
        %vm333 = vcmp.le.f32.partialorder %v229, 31.0
        %vm334 = vcmp.le.f32.partialorder %v230, 31.0
        %vm335 = vcmp.le.f32.partialorder %v231, 31.0
        %vm336 = vcmp.le.f32.partialorder %v232, 31.0
        %vm337 = vcmp.le.f32.partialorder %v233, 31.0
        %vm338 = vmand %vm250, %vm330
        %vm339 = vmand %vm251, %vm331
        %vm340 = vmand %vm252, %vm332
        %vm341 = vmand %vm253, %vm333
        %vm342 = vmand %vm254, %vm334
        %vm343 = vmand %vm255, %vm335
        %vm344 = vmand %vm256, %vm336
        %vm345 = vmand %vm257, %vm337
        %v346 = vsel %vm338, 1, 0
        %v347 = vsel %vm339, 1, 0
        %v348 = vsel %vm340, 1, 0
        %v349 = vsel %vm341, 1, 0
        %v350 = vsel %vm342, 1, 0
        %v351 = vsel %vm343, 1, 0
        %v352 = vsel %vm344, 1, 0
        %v353 = vsel %vm345, 1, 0
        %v354 = vcvt.s32.f32 %v346
        %v355 = vcvt.s32.f32 %v347
        %v356 = vcvt.s32.f32 %v348
        %v357 = vcvt.s32.f32 %v349
        %v358 = vcvt.s32.f32 %v350
        %v359 = vcvt.s32.f32 %v351
        %v360 = vcvt.s32.f32 %v352
        %v361 = vcvt.s32.f32 %v353
        %vm362 = vcmp.le.f32.partialorder %v242, 31.0
        %vm363 = vcmp.le.f32.partialorder %v243, 31.0
        %vm364 = vcmp.le.f32.partialorder %v244, 31.0
        %vm365 = vcmp.le.f32.partialorder %v245, 31.0
        %vm366 = vcmp.le.f32.partialorder %v246, 31.0
        %vm367 = vcmp.le.f32.partialorder %v247, 31.0
        %vm368 = vcmp.le.f32.partialorder %v248, 31.0
        %vm369 = vcmp.le.f32.partialorder %v249, 31.0
        %vm370 = vmand %vm290, %vm362
        %vm371 = vmand %vm291, %vm363
        %vm372 = vmand %vm292, %vm364
        %vm373 = vmand %vm293, %vm365
        %vm374 = vmand %vm294, %vm366
        %vm375 = vmand %vm295, %vm367
        %vm376 = vmand %vm296, %vm368
        %vm377 = vmand %vm297, %vm369
        %v378 = vsel %vm370, 1, 0
        %v379 = vsel %vm371, 1, 0
        %v380 = vsel %vm372, 1, 0
        %v381 = vsel %vm373, 1, 0
        %v382 = vsel %vm374, 1, 0
        %v383 = vsel %vm375, 1, 0
        %v384 = vsel %vm376, 1, 0
        %v385 = vsel %vm377, 1, 0
        %v386 = vcvt.s32.f32 %v378
        %v387 = vcvt.s32.f32 %v379
        %v388 = vcvt.s32.f32 %v380
        %v389 = vcvt.s32.f32 %v381
        %v390 = vcvt.s32.f32 %v382
        %v391 = vcvt.s32.f32 %v383
        %v392 = vcvt.s32.f32 %v384
        %v393 = vcvt.s32.f32 %v385
        %v394 = vsub.f32 1.0, %v234
        %v395 = vsub.f32 1.0, %v235
        %v396 = vsub.f32 1.0, %v236
        %v397 = vsub.f32 1.0, %v237
        %v398 = vsub.f32 1.0, %v238
        %v399 = vsub.f32 1.0, %v239
        %v400 = vsub.f32 1.0, %v240
        %v401 = vsub.f32 1.0, %v241
        %v402 = vmul.f32 %v394, %v282
        %v403 = vmul.f32 %v395, %v283
        %v404 = vmul.f32 %v396, %v284
        %v405 = vmul.f32 %v397, %v285
        %v406 = vmul.f32 %v398, %v286
        %v407 = vmul.f32 %v399, %v287
        %v408 = vmul.f32 %v400, %v288
        %v409 = vmul.f32 %v401, %v289
        %v410 = vmul.f32 %v234, %v322
        %v411 = vmul.f32 %v235, %v323
        %v412 = vmul.f32 %v236, %v324
        %v413 = vmul.f32 %v237, %v325
        %v414 = vmul.f32 %v238, %v326
        %v415 = vmul.f32 %v239, %v327
        %v416 = vmul.f32 %v240, %v328
        %v417 = vmul.f32 %v241, %v329
        %v418 = vmul.f32 %v394, %v354
        %v419 = vmul.f32 %v395, %v355
        %v420 = vmul.f32 %v396, %v356
        %v421 = vmul.f32 %v397, %v357
        %v422 = vmul.f32 %v398, %v358
        %v423 = vmul.f32 %v399, %v359
        %v424 = vmul.f32 %v400, %v360
        %v425 = vmul.f32 %v401, %v361
        %v426 = vmul.f32 %v234, %v386
        %v427 = vmul.f32 %v235, %v387
        %v428 = vmul.f32 %v236, %v388
        %v429 = vmul.f32 %v237, %v389
        %v430 = vmul.f32 %v238, %v390
        %v431 = vmul.f32 %v239, %v391
        %v432 = vmul.f32 %v240, %v392
        %v433 = vmul.f32 %v241, %v393
        %v434 = vadd.f32 %v418, %v426
        %v435 = vadd.f32 %v419, %v427
        %v436 = vadd.f32 %v420, %v428
        %v437 = vadd.f32 %v421, %v429
        %v438 = vadd.f32 %v422, %v430
        %v439 = vadd.f32 %v423, %v431
        %v440 = vadd.f32 %v424, %v432
        %v441 = vadd.f32 %v425, %v433
        %v442 = vadd.f32 %v402, %v410
        %v443 = vadd.f32 %v403, %v411
        %v444 = vadd.f32 %v404, %v412
        %v445 = vadd.f32 %v405, %v413
        %v446 = vadd.f32 %v406, %v414
        %v447 = vadd.f32 %v407, %v415
        %v448 = vadd.f32 %v408, %v416
        %v449 = vadd.f32 %v409, %v417
        %v458 = vrot.slane %v442, 7
        %v459 = vrot.slane %v443, 7
        %v460 = vrot.slane %v444, 7
        %v461 = vrot.slane %v445, 7
        %v462 = vrot.slane %v446, 7
        %v463 = vrot.slane %v447, 7
        %v464 = vrot.slane %v448, 7
        %v465 = vrot.slane %v449, 7
        %v474 = vmul.f32 %v434, %v458
        %v475 = vmul.f32 %v435, %v459
        %v476 = vmul.f32 %v436, %v460
        %v477 = vmul.f32 %v437, %v461
        %v478 = vmul.f32 %v438, %v462
        %v479 = vmul.f32 %v439, %v463
        %v480 = vmul.f32 %v440, %v464
        %v481 = vmul.f32 %v441, %v465
        %vm482 = vcmp.ge.f32.partialorder %v474, 0.9999
        %vm483 = vcmp.ge.f32.partialorder %v475, 0.9999
        %vm484 = vcmp.ge.f32.partialorder %v476, 0.9999
        %vm485 = vcmp.ge.f32.partialorder %v477, 0.9999
        %vm486 = vcmp.ge.f32.partialorder %v478, 0.9999
        %vm487 = vcmp.ge.f32.partialorder %v479, 0.9999
        %vm488 = vcmp.ge.f32.partialorder %v480, 0.9999
        %vm489 = vcmp.ge.f32.partialorder %v481, 0.9999
        %v490 = vsel %vm482, 1, 0
        %v491 = vsel %vm483, 1, 0
        %v492 = vsel %vm484, 1, 0
        %v493 = vsel %vm485, 1, 0
        %v494 = vsel %vm486, 1, 0
        %v495 = vsel %vm487, 1, 0
        %v496 = vsel %vm488, 1, 0
        %v497 = vsel %vm489, 1, 0
        %v498 = vcvt.s32.f32 %v490
        %v499 = vcvt.s32.f32 %v491
        %v500 = vcvt.s32.f32 %v492
        %v501 = vcvt.s32.f32 %v493
        %v502 = vcvt.s32.f32 %v494
        %v503 = vcvt.s32.f32 %v495
        %v504 = vcvt.s32.f32 %v496
        %v505 = vcvt.s32.f32 %v497
        %v506 = vcvt.f32.s32.to.zero.pseudo %v226
        %v507 = vcvt.f32.s32.to.zero.pseudo %v227
        %v508 = vcvt.f32.s32.to.zero.pseudo %v228
        %v509 = vcvt.f32.s32.to.zero.pseudo %v229
        %v510 = vcvt.f32.s32.to.zero.pseudo %v230
        %v511 = vcvt.f32.s32.to.zero.pseudo %v231
        %v512 = vcvt.f32.s32.to.zero.pseudo %v232
        %v513 = vcvt.f32.s32.to.zero.pseudo %v233
        %v514 = vcvt.f32.s32.to.zero.pseudo %v242
        %v515 = vcvt.f32.s32.to.zero.pseudo %v243
        %v516 = vcvt.f32.s32.to.zero.pseudo %v244
        %v517 = vcvt.f32.s32.to.zero.pseudo %v245
        %v518 = vcvt.f32.s32.to.zero.pseudo %v246
        %v519 = vcvt.f32.s32.to.zero.pseudo %v247
        %v520 = vcvt.f32.s32.to.zero.pseudo %v248
        %v521 = vcvt.f32.s32.to.zero.pseudo %v249
        %v522 = vlaneseq
        %v523 = vshrl.u32 %v522, 7
        %v524 = vadd.s32 %v523, 8
        %v525 = vadd.s32 %v523, 16
        %v526 = vadd.s32 %v523, 24
        %v527 = vperm.slane %v506, 1
        %v528 = vperm.slane %v506, 3
        %v529 = vperm.slane %v506, 5
        %v530 = vperm.slane %v506, 7
        %v531 = vperm.slane %v507, 1
        %v532 = vperm.slane %v507, 3
        %v533 = vperm.slane %v507, 5
        %v534 = vperm.slane %v507, 7
        %v535 = vperm.slane %v508, 1
        %v536 = vperm.slane %v508, 3
        %v537 = vperm.slane %v508, 5
        %v538 = vperm.slane %v508, 7
        %v539 = vperm.slane %v509, 1
        %v540 = vperm.slane %v509, 3
        %v541 = vperm.slane %v509, 5
        %v542 = vperm.slane %v509, 7
        %v543 = vperm.slane %v510, 1
        %v544 = vperm.slane %v510, 3
        %v545 = vperm.slane %v510, 5
        %v546 = vperm.slane %v510, 7
        %v547 = vperm.slane %v511, 1
        %v548 = vperm.slane %v511, 3
        %v549 = vperm.slane %v511, 5
        %v550 = vperm.slane %v511, 7
        %v551 = vperm.slane %v512, 1
        %v552 = vperm.slane %v512, 3
        %v553 = vperm.slane %v512, 5
        %v554 = vperm.slane %v512, 7
        %v555 = vperm.slane %v513, 1
        %v556 = vperm.slane %v513, 3
        %v557 = vperm.slane %v513, 5
        %v558 = vperm.slane %v513, 7
        %v559 = vperm.slane %v527, 1
        %v560 = vperm.slane %v528, 1
        %v561 = vperm.slane %v529, 1
        %v562 = vperm.slane %v530, 1
        %v563 = vperm.slane %v531, 1
        %v564 = vperm.slane %v532, 1
        %v565 = vperm.slane %v533, 1
        %v566 = vperm.slane %v534, 1
        %v567 = vperm.slane %v535, 1
        %v568 = vperm.slane %v536, 1
        %v569 = vperm.slane %v537, 1
        %v570 = vperm.slane %v538, 1
        %v571 = vperm.slane %v539, 1
        %v572 = vperm.slane %v540, 1
        %v573 = vperm.slane %v541, 1
        %v574 = vperm.slane %v542, 1
        %v575 = vperm.slane %v543, 1
        %v576 = vperm.slane %v544, 1
        %v577 = vperm.slane %v545, 1
        %v578 = vperm.slane %v546, 1
        %v579 = vperm.slane %v547, 1
        %v580 = vperm.slane %v548, 1
        %v581 = vperm.slane %v549, 1
        %v582 = vperm.slane %v550, 1
        %v583 = vperm.slane %v551, 1
        %v584 = vperm.slane %v552, 1
        %v585 = vperm.slane %v553, 1
        %v586 = vperm.slane %v554, 1
        %v587 = vperm.slane %v555, 1
        %v588 = vperm.slane %v556, 1
        %v589 = vperm.slane %v557, 1
        %v590 = vperm.slane %v558, 1
        %vm591 = vcmp.eq.s32.totalorder %v523, %v559
        %vm592 = vcmp.eq.s32.totalorder %v523, %v560
        %vm593 = vcmp.eq.s32.totalorder %v523, %v561
        %vm594 = vcmp.eq.s32.totalorder %v523, %v562
        %vm595 = vcmp.eq.s32.totalorder %v523, %v563
        %vm596 = vcmp.eq.s32.totalorder %v523, %v564
        %vm597 = vcmp.eq.s32.totalorder %v523, %v565
        %vm598 = vcmp.eq.s32.totalorder %v523, %v566
        %vm599 = vcmp.eq.s32.totalorder %v523, %v567
        %vm600 = vcmp.eq.s32.totalorder %v523, %v568
        %vm601 = vcmp.eq.s32.totalorder %v523, %v569
        %vm602 = vcmp.eq.s32.totalorder %v523, %v570
        %vm603 = vcmp.eq.s32.totalorder %v523, %v571
        %vm604 = vcmp.eq.s32.totalorder %v523, %v572
        %vm605 = vcmp.eq.s32.totalorder %v523, %v573
        %vm606 = vcmp.eq.s32.totalorder %v523, %v574
        %vm607 = vcmp.eq.s32.totalorder %v523, %v575
        %vm608 = vcmp.eq.s32.totalorder %v523, %v576
        %vm609 = vcmp.eq.s32.totalorder %v523, %v577
        %vm610 = vcmp.eq.s32.totalorder %v523, %v578
        %vm611 = vcmp.eq.s32.totalorder %v523, %v579
        %vm612 = vcmp.eq.s32.totalorder %v523, %v580
        %vm613 = vcmp.eq.s32.totalorder %v523, %v581
        %vm614 = vcmp.eq.s32.totalorder %v523, %v582
        %vm615 = vcmp.eq.s32.totalorder %v523, %v583
        %vm616 = vcmp.eq.s32.totalorder %v523, %v584
        %vm617 = vcmp.eq.s32.totalorder %v523, %v585
        %vm618 = vcmp.eq.s32.totalorder %v523, %v586
        %vm619 = vcmp.eq.s32.totalorder %v523, %v587
        %vm620 = vcmp.eq.s32.totalorder %v523, %v588
        %vm621 = vcmp.eq.s32.totalorder %v523, %v589
        %vm622 = vcmp.eq.s32.totalorder %v523, %v590
        %vm623 = vcmp.eq.s32.totalorder %v524, %v559
        %vm624 = vcmp.eq.s32.totalorder %v524, %v560
        %vm625 = vcmp.eq.s32.totalorder %v524, %v561
        %vm626 = vcmp.eq.s32.totalorder %v524, %v562
        %vm627 = vcmp.eq.s32.totalorder %v524, %v563
        %vm628 = vcmp.eq.s32.totalorder %v524, %v564
        %vm629 = vcmp.eq.s32.totalorder %v524, %v565
        %vm630 = vcmp.eq.s32.totalorder %v524, %v566
        %vm631 = vcmp.eq.s32.totalorder %v524, %v567
        %vm632 = vcmp.eq.s32.totalorder %v524, %v568
        %vm633 = vcmp.eq.s32.totalorder %v524, %v569
        %vm634 = vcmp.eq.s32.totalorder %v524, %v570
        %vm635 = vcmp.eq.s32.totalorder %v524, %v571
        %vm636 = vcmp.eq.s32.totalorder %v524, %v572
        %vm637 = vcmp.eq.s32.totalorder %v524, %v573
        %vm638 = vcmp.eq.s32.totalorder %v524, %v574
        %vm639 = vcmp.eq.s32.totalorder %v524, %v575
        %vm640 = vcmp.eq.s32.totalorder %v524, %v576
        %vm641 = vcmp.eq.s32.totalorder %v524, %v577
        %vm642 = vcmp.eq.s32.totalorder %v524, %v578
        %vm643 = vcmp.eq.s32.totalorder %v524, %v579
        %vm644 = vcmp.eq.s32.totalorder %v524, %v580
        %vm645 = vcmp.eq.s32.totalorder %v524, %v581
        %vm646 = vcmp.eq.s32.totalorder %v524, %v582
        %vm647 = vcmp.eq.s32.totalorder %v524, %v583
        %vm648 = vcmp.eq.s32.totalorder %v524, %v584
        %vm649 = vcmp.eq.s32.totalorder %v524, %v585
        %vm650 = vcmp.eq.s32.totalorder %v524, %v586
        %vm651 = vcmp.eq.s32.totalorder %v524, %v587
        %vm652 = vcmp.eq.s32.totalorder %v524, %v588
        %vm653 = vcmp.eq.s32.totalorder %v524, %v589
        %vm654 = vcmp.eq.s32.totalorder %v524, %v590
        %vm655 = vcmp.eq.s32.totalorder %v525, %v559
        %vm656 = vcmp.eq.s32.totalorder %v525, %v560
        %vm657 = vcmp.eq.s32.totalorder %v525, %v561
        %vm658 = vcmp.eq.s32.totalorder %v525, %v562
        %vm659 = vcmp.eq.s32.totalorder %v525, %v563
        %vm660 = vcmp.eq.s32.totalorder %v525, %v564
        %vm661 = vcmp.eq.s32.totalorder %v525, %v565
        %vm662 = vcmp.eq.s32.totalorder %v525, %v566
        %vm663 = vcmp.eq.s32.totalorder %v525, %v567
        %vm664 = vcmp.eq.s32.totalorder %v525, %v568
        %vm665 = vcmp.eq.s32.totalorder %v525, %v569
        %vm666 = vcmp.eq.s32.totalorder %v525, %v570
        %vm667 = vcmp.eq.s32.totalorder %v525, %v571
        %vm668 = vcmp.eq.s32.totalorder %v525, %v572
        %vm669 = vcmp.eq.s32.totalorder %v525, %v573
        %vm670 = vcmp.eq.s32.totalorder %v525, %v574
        %vm671 = vcmp.eq.s32.totalorder %v525, %v575
        %vm672 = vcmp.eq.s32.totalorder %v525, %v576
        %vm673 = vcmp.eq.s32.totalorder %v525, %v577
        %vm674 = vcmp.eq.s32.totalorder %v525, %v578
        %vm675 = vcmp.eq.s32.totalorder %v525, %v579
        %vm676 = vcmp.eq.s32.totalorder %v525, %v580
        %vm677 = vcmp.eq.s32.totalorder %v525, %v581
        %vm678 = vcmp.eq.s32.totalorder %v525, %v582
        %vm679 = vcmp.eq.s32.totalorder %v525, %v583
        %vm680 = vcmp.eq.s32.totalorder %v525, %v584
        %vm681 = vcmp.eq.s32.totalorder %v525, %v585
        %vm682 = vcmp.eq.s32.totalorder %v525, %v586
        %vm683 = vcmp.eq.s32.totalorder %v525, %v587
        %vm684 = vcmp.eq.s32.totalorder %v525, %v588
        %vm685 = vcmp.eq.s32.totalorder %v525, %v589
        %vm686 = vcmp.eq.s32.totalorder %v525, %v590
        %vm687 = vcmp.eq.s32.totalorder %v526, %v559
        %vm688 = vcmp.eq.s32.totalorder %v526, %v560
        %vm689 = vcmp.eq.s32.totalorder %v526, %v561
        %vm690 = vcmp.eq.s32.totalorder %v526, %v562
        %vm691 = vcmp.eq.s32.totalorder %v526, %v563
        %vm692 = vcmp.eq.s32.totalorder %v526, %v564
        %vm693 = vcmp.eq.s32.totalorder %v526, %v565
        %vm694 = vcmp.eq.s32.totalorder %v526, %v566
        %vm695 = vcmp.eq.s32.totalorder %v526, %v567
        %vm696 = vcmp.eq.s32.totalorder %v526, %v568
        %vm697 = vcmp.eq.s32.totalorder %v526, %v569
        %vm698 = vcmp.eq.s32.totalorder %v526, %v570
        %vm699 = vcmp.eq.s32.totalorder %v526, %v571
        %vm700 = vcmp.eq.s32.totalorder %v526, %v572
        %vm701 = vcmp.eq.s32.totalorder %v526, %v573
        %vm702 = vcmp.eq.s32.totalorder %v526, %v574
        %vm703 = vcmp.eq.s32.totalorder %v526, %v575
        %vm704 = vcmp.eq.s32.totalorder %v526, %v576
        %vm705 = vcmp.eq.s32.totalorder %v526, %v577
        %vm706 = vcmp.eq.s32.totalorder %v526, %v578
        %vm707 = vcmp.eq.s32.totalorder %v526, %v579
        %vm708 = vcmp.eq.s32.totalorder %v526, %v580
        %vm709 = vcmp.eq.s32.totalorder %v526, %v581
        %vm710 = vcmp.eq.s32.totalorder %v526, %v582
        %vm711 = vcmp.eq.s32.totalorder %v526, %v583
        %vm712 = vcmp.eq.s32.totalorder %v526, %v584
        %vm713 = vcmp.eq.s32.totalorder %v526, %v585
        %vm714 = vcmp.eq.s32.totalorder %v526, %v586
        %vm715 = vcmp.eq.s32.totalorder %v526, %v587
        %vm716 = vcmp.eq.s32.totalorder %v526, %v588
        %vm717 = vcmp.eq.s32.totalorder %v526, %v589
        %vm718 = vcmp.eq.s32.totalorder %v526, %v590
        %v727 = vperm.slane %v418, 1
        %v728 = vperm.slane %v418, 3
        %v729 = vperm.slane %v418, 5
        %v730 = vperm.slane %v418, 7
        %v731 = vperm.slane %v419, 1
        %v732 = vperm.slane %v419, 3
        %v733 = vperm.slane %v419, 5
        %v734 = vperm.slane %v419, 7
        %v735 = vperm.slane %v420, 1
        %v736 = vperm.slane %v420, 3
        %v737 = vperm.slane %v420, 5
        %v738 = vperm.slane %v420, 7
        %v739 = vperm.slane %v421, 1
        %v740 = vperm.slane %v421, 3
        %v741 = vperm.slane %v421, 5
        %v742 = vperm.slane %v421, 7
        %v743 = vperm.slane %v422, 1
        %v744 = vperm.slane %v422, 3
        %v745 = vperm.slane %v422, 5
        %v746 = vperm.slane %v422, 7
        %v747 = vperm.slane %v423, 1
        %v748 = vperm.slane %v423, 3
        %v749 = vperm.slane %v423, 5
        %v750 = vperm.slane %v423, 7
        %v751 = vperm.slane %v424, 1
        %v752 = vperm.slane %v424, 3
        %v753 = vperm.slane %v424, 5
        %v754 = vperm.slane %v424, 7
        %v755 = vperm.slane %v425, 1
        %v756 = vperm.slane %v425, 3
        %v757 = vperm.slane %v425, 5
        %v758 = vperm.slane %v425, 7
        %v791 = vperm.slane %v727, 1
        %v792 = vperm.slane %v728, 1
        %v793 = vperm.slane %v729, 1
        %v794 = vperm.slane %v730, 1
        %v795 = vperm.slane %v731, 1
        %v796 = vperm.slane %v732, 1
        %v797 = vperm.slane %v733, 1
        %v798 = vperm.slane %v734, 1
        %v799 = vperm.slane %v735, 1
        %v800 = vperm.slane %v736, 1
        %v801 = vperm.slane %v737, 1
        %v802 = vperm.slane %v738, 1
        %v803 = vperm.slane %v739, 1
        %v804 = vperm.slane %v740, 1
        %v805 = vperm.slane %v741, 1
        %v806 = vperm.slane %v742, 1
        %v807 = vperm.slane %v743, 1
        %v808 = vperm.slane %v744, 1
        %v809 = vperm.slane %v745, 1
        %v810 = vperm.slane %v746, 1
        %v811 = vperm.slane %v747, 1
        %v812 = vperm.slane %v748, 1
        %v813 = vperm.slane %v749, 1
        %v814 = vperm.slane %v750, 1
        %v815 = vperm.slane %v751, 1
        %v816 = vperm.slane %v752, 1
        %v817 = vperm.slane %v753, 1
        %v818 = vperm.slane %v754, 1
        %v819 = vperm.slane %v755, 1
        %v820 = vperm.slane %v756, 1
        %v821 = vperm.slane %v757, 1
        %v822 = vperm.slane %v758, 1
        %v823 = vsel %vm591, %v791, 0.0
        %v824 = vsel %vm592, %v792, 0.0
        %v825 = vsel %vm593, %v793, 0.0
        %v826 = vsel %vm594, %v794, 0.0
        %v827 = vsel %vm595, %v795, 0.0
        %v828 = vsel %vm596, %v796, 0.0
        %v829 = vsel %vm597, %v797, 0.0
        %v830 = vsel %vm598, %v798, 0.0
        %v831 = vsel %vm599, %v799, 0.0
        %v832 = vsel %vm600, %v800, 0.0
        %v833 = vsel %vm601, %v801, 0.0
        %v834 = vsel %vm602, %v802, 0.0
        %v835 = vsel %vm603, %v803, 0.0
        %v836 = vsel %vm604, %v804, 0.0
        %v837 = vsel %vm605, %v805, 0.0
        %v838 = vsel %vm606, %v806, 0.0
        %v839 = vsel %vm607, %v807, 0.0
        %v840 = vsel %vm608, %v808, 0.0
        %v841 = vsel %vm609, %v809, 0.0
        %v842 = vsel %vm610, %v810, 0.0
        %v843 = vsel %vm611, %v811, 0.0
        %v844 = vsel %vm612, %v812, 0.0
        %v845 = vsel %vm613, %v813, 0.0
        %v846 = vsel %vm614, %v814, 0.0
        %v847 = vsel %vm615, %v815, 0.0
        %v848 = vsel %vm616, %v816, 0.0
        %v849 = vsel %vm617, %v817, 0.0
        %v850 = vsel %vm618, %v818, 0.0
        %v851 = vsel %vm619, %v819, 0.0
        %v852 = vsel %vm620, %v820, 0.0
        %v853 = vsel %vm621, %v821, 0.0
        %v854 = vsel %vm622, %v822, 0.0
        %v855 = vsel %vm623, %v791, 0.0
        %v856 = vsel %vm624, %v792, 0.0
        %v857 = vsel %vm625, %v793, 0.0
        %v858 = vsel %vm626, %v794, 0.0
        %v859 = vsel %vm627, %v795, 0.0
        %v860 = vsel %vm628, %v796, 0.0
        %v861 = vsel %vm629, %v797, 0.0
        %v862 = vsel %vm630, %v798, 0.0
        %v863 = vsel %vm631, %v799, 0.0
        %v864 = vsel %vm632, %v800, 0.0
        %v865 = vsel %vm633, %v801, 0.0
        %v866 = vsel %vm634, %v802, 0.0
        %v867 = vsel %vm635, %v803, 0.0
        %v868 = vsel %vm636, %v804, 0.0
        %v869 = vsel %vm637, %v805, 0.0
        %v870 = vsel %vm638, %v806, 0.0
        %v871 = vsel %vm639, %v807, 0.0
        %v872 = vsel %vm640, %v808, 0.0
        %v873 = vsel %vm641, %v809, 0.0
        %v874 = vsel %vm642, %v810, 0.0
        %v875 = vsel %vm643, %v811, 0.0
        %v876 = vsel %vm644, %v812, 0.0
        %v877 = vsel %vm645, %v813, 0.0
        %v878 = vsel %vm646, %v814, 0.0
        %v879 = vsel %vm647, %v815, 0.0
        %v880 = vsel %vm648, %v816, 0.0
        %v881 = vsel %vm649, %v817, 0.0
        %v882 = vsel %vm650, %v818, 0.0
        %v883 = vsel %vm651, %v819, 0.0
        %v884 = vsel %vm652, %v820, 0.0
        %v885 = vsel %vm653, %v821, 0.0
        %v886 = vsel %vm654, %v822, 0.0
        %v887 = vsel %vm655, %v791, 0.0
        %v888 = vsel %vm656, %v792, 0.0
        %v889 = vsel %vm657, %v793, 0.0
        %v890 = vsel %vm658, %v794, 0.0
        %v891 = vsel %vm659, %v795, 0.0
        %v892 = vsel %vm660, %v796, 0.0
        %v893 = vsel %vm661, %v797, 0.0
        %v894 = vsel %vm662, %v798, 0.0
        %v895 = vsel %vm663, %v799, 0.0
        %v896 = vsel %vm664, %v800, 0.0
        %v897 = vsel %vm665, %v801, 0.0
        %v898 = vsel %vm666, %v802, 0.0
        %v899 = vsel %vm667, %v803, 0.0
        %v900 = vsel %vm668, %v804, 0.0
        %v901 = vsel %vm669, %v805, 0.0
        %v902 = vsel %vm670, %v806, 0.0
        %v903 = vsel %vm671, %v807, 0.0
        %v904 = vsel %vm672, %v808, 0.0
        %v905 = vsel %vm673, %v809, 0.0
        %v906 = vsel %vm674, %v810, 0.0
        %v907 = vsel %vm675, %v811, 0.0
        %v908 = vsel %vm676, %v812, 0.0
        %v909 = vsel %vm677, %v813, 0.0
        %v910 = vsel %vm678, %v814, 0.0
        %v911 = vsel %vm679, %v815, 0.0
        %v912 = vsel %vm680, %v816, 0.0
        %v913 = vsel %vm681, %v817, 0.0
        %v914 = vsel %vm682, %v818, 0.0
        %v915 = vsel %vm683, %v819, 0.0
        %v916 = vsel %vm684, %v820, 0.0
        %v917 = vsel %vm685, %v821, 0.0
        %v918 = vsel %vm686, %v822, 0.0
        %v919 = vsel %vm687, %v791, 0.0
        %v920 = vsel %vm688, %v792, 0.0
        %v921 = vsel %vm689, %v793, 0.0
        %v922 = vsel %vm690, %v794, 0.0
        %v923 = vsel %vm691, %v795, 0.0
        %v924 = vsel %vm692, %v796, 0.0
        %v925 = vsel %vm693, %v797, 0.0
        %v926 = vsel %vm694, %v798, 0.0
        %v927 = vsel %vm695, %v799, 0.0
        %v928 = vsel %vm696, %v800, 0.0
        %v929 = vsel %vm697, %v801, 0.0
        %v930 = vsel %vm698, %v802, 0.0
        %v931 = vsel %vm699, %v803, 0.0
        %v932 = vsel %vm700, %v804, 0.0
        %v933 = vsel %vm701, %v805, 0.0
        %v934 = vsel %vm702, %v806, 0.0
        %v935 = vsel %vm703, %v807, 0.0
        %v936 = vsel %vm704, %v808, 0.0
        %v937 = vsel %vm705, %v809, 0.0
        %v938 = vsel %vm706, %v810, 0.0
        %v939 = vsel %vm707, %v811, 0.0
        %v940 = vsel %vm708, %v812, 0.0
        %v941 = vsel %vm709, %v813, 0.0
        %v942 = vsel %vm710, %v814, 0.0
        %v943 = vsel %vm711, %v815, 0.0
        %v944 = vsel %vm712, %v816, 0.0
        %v945 = vsel %vm713, %v817, 0.0
        %v946 = vsel %vm714, %v818, 0.0
        %v947 = vsel %vm715, %v819, 0.0
        %v948 = vsel %vm716, %v820, 0.0
        %v949 = vsel %vm717, %v821, 0.0
        %v950 = vsel %vm718, %v822, 0.0
        %v951 = vperm.slane %v514, 1
        %v952 = vperm.slane %v514, 3
        %v953 = vperm.slane %v514, 5
        %v954 = vperm.slane %v514, 7
        %v955 = vperm.slane %v515, 1
        %v956 = vperm.slane %v515, 3
        %v957 = vperm.slane %v515, 5
        %v958 = vperm.slane %v515, 7
        %v959 = vperm.slane %v516, 1
        %v960 = vperm.slane %v516, 3
        %v961 = vperm.slane %v516, 5
        %v962 = vperm.slane %v516, 7
        %v963 = vperm.slane %v517, 1
        %v964 = vperm.slane %v517, 3
        %v965 = vperm.slane %v517, 5
        %v966 = vperm.slane %v517, 7
        %v967 = vperm.slane %v518, 1
        %v968 = vperm.slane %v518, 3
        %v969 = vperm.slane %v518, 5
        %v970 = vperm.slane %v518, 7
        %v971 = vperm.slane %v519, 1
        %v972 = vperm.slane %v519, 3
        %v973 = vperm.slane %v519, 5
        %v974 = vperm.slane %v519, 7
        %v975 = vperm.slane %v520, 1
        %v976 = vperm.slane %v520, 3
        %v977 = vperm.slane %v520, 5
        %v978 = vperm.slane %v520, 7
        %v979 = vperm.slane %v521, 1
        %v980 = vperm.slane %v521, 3
        %v981 = vperm.slane %v521, 5
        %v982 = vperm.slane %v521, 7
        %v983 = vperm.slane %v951, 1
        %v984 = vperm.slane %v952, 1
        %v985 = vperm.slane %v953, 1
        %v986 = vperm.slane %v954, 1
        %v987 = vperm.slane %v955, 1
        %v988 = vperm.slane %v956, 1
        %v989 = vperm.slane %v957, 1
        %v990 = vperm.slane %v958, 1
        %v991 = vperm.slane %v959, 1
        %v992 = vperm.slane %v960, 1
        %v993 = vperm.slane %v961, 1
        %v994 = vperm.slane %v962, 1
        %v995 = vperm.slane %v963, 1
        %v996 = vperm.slane %v964, 1
        %v997 = vperm.slane %v965, 1
        %v998 = vperm.slane %v966, 1
        %v999 = vperm.slane %v967, 1
        %v1000 = vperm.slane %v968, 1
        %v1001 = vperm.slane %v969, 1
        %v1002 = vperm.slane %v970, 1
        %v1003 = vperm.slane %v971, 1
        %v1004 = vperm.slane %v972, 1
        %v1005 = vperm.slane %v973, 1
        %v1006 = vperm.slane %v974, 1
        %v1007 = vperm.slane %v975, 1
        %v1008 = vperm.slane %v976, 1
        %v1009 = vperm.slane %v977, 1
        %v1010 = vperm.slane %v978, 1
        %v1011 = vperm.slane %v979, 1
        %v1012 = vperm.slane %v980, 1
        %v1013 = vperm.slane %v981, 1
        %v1014 = vperm.slane %v982, 1
        %vm1015 = vcmp.eq.s32.totalorder %v523, %v983
        %vm1016 = vcmp.eq.s32.totalorder %v523, %v984
        %vm1017 = vcmp.eq.s32.totalorder %v523, %v985
        %vm1018 = vcmp.eq.s32.totalorder %v523, %v986
        %vm1019 = vcmp.eq.s32.totalorder %v523, %v987
        %vm1020 = vcmp.eq.s32.totalorder %v523, %v988
        %vm1021 = vcmp.eq.s32.totalorder %v523, %v989
        %vm1022 = vcmp.eq.s32.totalorder %v523, %v990
        %vm1023 = vcmp.eq.s32.totalorder %v523, %v991
        %vm1024 = vcmp.eq.s32.totalorder %v523, %v992
        %vm1025 = vcmp.eq.s32.totalorder %v523, %v993
        %vm1026 = vcmp.eq.s32.totalorder %v523, %v994
        %vm1027 = vcmp.eq.s32.totalorder %v523, %v995
        %vm1028 = vcmp.eq.s32.totalorder %v523, %v996
        %vm1029 = vcmp.eq.s32.totalorder %v523, %v997
        %vm1030 = vcmp.eq.s32.totalorder %v523, %v998
        %vm1031 = vcmp.eq.s32.totalorder %v523, %v999
        %vm1032 = vcmp.eq.s32.totalorder %v523, %v1000
        %vm1033 = vcmp.eq.s32.totalorder %v523, %v1001
        %vm1034 = vcmp.eq.s32.totalorder %v523, %v1002
        %vm1035 = vcmp.eq.s32.totalorder %v523, %v1003
        %vm1036 = vcmp.eq.s32.totalorder %v523, %v1004
        %vm1037 = vcmp.eq.s32.totalorder %v523, %v1005
        %vm1038 = vcmp.eq.s32.totalorder %v523, %v1006
        %vm1039 = vcmp.eq.s32.totalorder %v523, %v1007
        %vm1040 = vcmp.eq.s32.totalorder %v523, %v1008
        %vm1041 = vcmp.eq.s32.totalorder %v523, %v1009
        %vm1042 = vcmp.eq.s32.totalorder %v523, %v1010
        %vm1043 = vcmp.eq.s32.totalorder %v523, %v1011
        %vm1044 = vcmp.eq.s32.totalorder %v523, %v1012
        %vm1045 = vcmp.eq.s32.totalorder %v523, %v1013
        %vm1046 = vcmp.eq.s32.totalorder %v523, %v1014
        %vm1047 = vcmp.eq.s32.totalorder %v524, %v983
        %vm1048 = vcmp.eq.s32.totalorder %v524, %v984
        %vm1049 = vcmp.eq.s32.totalorder %v524, %v985
        %vm1050 = vcmp.eq.s32.totalorder %v524, %v986
        %vm1051 = vcmp.eq.s32.totalorder %v524, %v987
        %vm1052 = vcmp.eq.s32.totalorder %v524, %v988
        %vm1053 = vcmp.eq.s32.totalorder %v524, %v989
        %vm1054 = vcmp.eq.s32.totalorder %v524, %v990
        %vm1055 = vcmp.eq.s32.totalorder %v524, %v991
        %vm1056 = vcmp.eq.s32.totalorder %v524, %v992
        %vm1057 = vcmp.eq.s32.totalorder %v524, %v993
        %vm1058 = vcmp.eq.s32.totalorder %v524, %v994
        %vm1059 = vcmp.eq.s32.totalorder %v524, %v995
        %vm1060 = vcmp.eq.s32.totalorder %v524, %v996
        %vm1061 = vcmp.eq.s32.totalorder %v524, %v997
        %vm1062 = vcmp.eq.s32.totalorder %v524, %v998
        %vm1063 = vcmp.eq.s32.totalorder %v524, %v999
        %vm1064 = vcmp.eq.s32.totalorder %v524, %v1000
        %vm1065 = vcmp.eq.s32.totalorder %v524, %v1001
        %vm1066 = vcmp.eq.s32.totalorder %v524, %v1002
        %vm1067 = vcmp.eq.s32.totalorder %v524, %v1003
        %vm1068 = vcmp.eq.s32.totalorder %v524, %v1004
        %vm1069 = vcmp.eq.s32.totalorder %v524, %v1005
        %vm1070 = vcmp.eq.s32.totalorder %v524, %v1006
        %vm1071 = vcmp.eq.s32.totalorder %v524, %v1007
        %vm1072 = vcmp.eq.s32.totalorder %v524, %v1008
        %vm1073 = vcmp.eq.s32.totalorder %v524, %v1009
        %vm1074 = vcmp.eq.s32.totalorder %v524, %v1010
        %vm1075 = vcmp.eq.s32.totalorder %v524, %v1011
        %vm1076 = vcmp.eq.s32.totalorder %v524, %v1012
        %vm1077 = vcmp.eq.s32.totalorder %v524, %v1013
        %vm1078 = vcmp.eq.s32.totalorder %v524, %v1014
        %vm1079 = vcmp.eq.s32.totalorder %v525, %v983
        %vm1080 = vcmp.eq.s32.totalorder %v525, %v984
        %vm1081 = vcmp.eq.s32.totalorder %v525, %v985
        %vm1082 = vcmp.eq.s32.totalorder %v525, %v986
        %vm1083 = vcmp.eq.s32.totalorder %v525, %v987
        %vm1084 = vcmp.eq.s32.totalorder %v525, %v988
        %vm1085 = vcmp.eq.s32.totalorder %v525, %v989
        %vm1086 = vcmp.eq.s32.totalorder %v525, %v990
        %vm1087 = vcmp.eq.s32.totalorder %v525, %v991
        %vm1088 = vcmp.eq.s32.totalorder %v525, %v992
        %vm1089 = vcmp.eq.s32.totalorder %v525, %v993
        %vm1090 = vcmp.eq.s32.totalorder %v525, %v994
        %vm1091 = vcmp.eq.s32.totalorder %v525, %v995
        %vm1092 = vcmp.eq.s32.totalorder %v525, %v996
        %vm1093 = vcmp.eq.s32.totalorder %v525, %v997
        %vm1094 = vcmp.eq.s32.totalorder %v525, %v998
        %vm1095 = vcmp.eq.s32.totalorder %v525, %v999
        %vm1096 = vcmp.eq.s32.totalorder %v525, %v1000
        %vm1097 = vcmp.eq.s32.totalorder %v525, %v1001
        %vm1098 = vcmp.eq.s32.totalorder %v525, %v1002
        %vm1099 = vcmp.eq.s32.totalorder %v525, %v1003
        %vm1100 = vcmp.eq.s32.totalorder %v525, %v1004
        %vm1101 = vcmp.eq.s32.totalorder %v525, %v1005
        %vm1102 = vcmp.eq.s32.totalorder %v525, %v1006
        %vm1103 = vcmp.eq.s32.totalorder %v525, %v1007
        %vm1104 = vcmp.eq.s32.totalorder %v525, %v1008
        %vm1105 = vcmp.eq.s32.totalorder %v525, %v1009
        %vm1106 = vcmp.eq.s32.totalorder %v525, %v1010
        %vm1107 = vcmp.eq.s32.totalorder %v525, %v1011
        %vm1108 = vcmp.eq.s32.totalorder %v525, %v1012
        %vm1109 = vcmp.eq.s32.totalorder %v525, %v1013
        %vm1110 = vcmp.eq.s32.totalorder %v525, %v1014
        %vm1111 = vcmp.eq.s32.totalorder %v526, %v983
        %vm1112 = vcmp.eq.s32.totalorder %v526, %v984
        %vm1113 = vcmp.eq.s32.totalorder %v526, %v985
        %vm1114 = vcmp.eq.s32.totalorder %v526, %v986
        %vm1115 = vcmp.eq.s32.totalorder %v526, %v987
        %vm1116 = vcmp.eq.s32.totalorder %v526, %v988
        %vm1117 = vcmp.eq.s32.totalorder %v526, %v989
        %vm1118 = vcmp.eq.s32.totalorder %v526, %v990
        %vm1119 = vcmp.eq.s32.totalorder %v526, %v991
        %vm1120 = vcmp.eq.s32.totalorder %v526, %v992
        %vm1121 = vcmp.eq.s32.totalorder %v526, %v993
        %vm1122 = vcmp.eq.s32.totalorder %v526, %v994
        %vm1123 = vcmp.eq.s32.totalorder %v526, %v995
        %vm1124 = vcmp.eq.s32.totalorder %v526, %v996
        %vm1125 = vcmp.eq.s32.totalorder %v526, %v997
        %vm1126 = vcmp.eq.s32.totalorder %v526, %v998
        %vm1127 = vcmp.eq.s32.totalorder %v526, %v999
        %vm1128 = vcmp.eq.s32.totalorder %v526, %v1000
        %vm1129 = vcmp.eq.s32.totalorder %v526, %v1001
        %vm1130 = vcmp.eq.s32.totalorder %v526, %v1002
        %vm1131 = vcmp.eq.s32.totalorder %v526, %v1003
        %vm1132 = vcmp.eq.s32.totalorder %v526, %v1004
        %vm1133 = vcmp.eq.s32.totalorder %v526, %v1005
        %vm1134 = vcmp.eq.s32.totalorder %v526, %v1006
        %vm1135 = vcmp.eq.s32.totalorder %v526, %v1007
        %vm1136 = vcmp.eq.s32.totalorder %v526, %v1008
        %vm1137 = vcmp.eq.s32.totalorder %v526, %v1009
        %vm1138 = vcmp.eq.s32.totalorder %v526, %v1010
        %vm1139 = vcmp.eq.s32.totalorder %v526, %v1011
        %vm1140 = vcmp.eq.s32.totalorder %v526, %v1012
        %vm1141 = vcmp.eq.s32.totalorder %v526, %v1013
        %vm1142 = vcmp.eq.s32.totalorder %v526, %v1014
        %v1151 = vperm.slane %v426, 1
        %v1152 = vperm.slane %v426, 3
        %v1153 = vperm.slane %v426, 5
        %v1154 = vperm.slane %v426, 7
        %v1155 = vperm.slane %v427, 1
        %v1156 = vperm.slane %v427, 3
        %v1157 = vperm.slane %v427, 5
        %v1158 = vperm.slane %v427, 7
        %v1159 = vperm.slane %v428, 1
        %v1160 = vperm.slane %v428, 3
        %v1161 = vperm.slane %v428, 5
        %v1162 = vperm.slane %v428, 7
        %v1163 = vperm.slane %v429, 1
        %v1164 = vperm.slane %v429, 3
        %v1165 = vperm.slane %v429, 5
        %v1166 = vperm.slane %v429, 7
        %v1167 = vperm.slane %v430, 1
        %v1168 = vperm.slane %v430, 3
        %v1169 = vperm.slane %v430, 5
        %v1170 = vperm.slane %v430, 7
        %v1171 = vperm.slane %v431, 1
        %v1172 = vperm.slane %v431, 3
        %v1173 = vperm.slane %v431, 5
        %v1174 = vperm.slane %v431, 7
        %v1175 = vperm.slane %v432, 1
        %v1176 = vperm.slane %v432, 3
        %v1177 = vperm.slane %v432, 5
        %v1178 = vperm.slane %v432, 7
        %v1179 = vperm.slane %v433, 1
        %v1180 = vperm.slane %v433, 3
        %v1181 = vperm.slane %v433, 5
        %v1182 = vperm.slane %v433, 7
        %v1215 = vperm.slane %v1151, 1
        %v1216 = vperm.slane %v1152, 1
        %v1217 = vperm.slane %v1153, 1
        %v1218 = vperm.slane %v1154, 1
        %v1219 = vperm.slane %v1155, 1
        %v1220 = vperm.slane %v1156, 1
        %v1221 = vperm.slane %v1157, 1
        %v1222 = vperm.slane %v1158, 1
        %v1223 = vperm.slane %v1159, 1
        %v1224 = vperm.slane %v1160, 1
        %v1225 = vperm.slane %v1161, 1
        %v1226 = vperm.slane %v1162, 1
        %v1227 = vperm.slane %v1163, 1
        %v1228 = vperm.slane %v1164, 1
        %v1229 = vperm.slane %v1165, 1
        %v1230 = vperm.slane %v1166, 1
        %v1231 = vperm.slane %v1167, 1
        %v1232 = vperm.slane %v1168, 1
        %v1233 = vperm.slane %v1169, 1
        %v1234 = vperm.slane %v1170, 1
        %v1235 = vperm.slane %v1171, 1
        %v1236 = vperm.slane %v1172, 1
        %v1237 = vperm.slane %v1173, 1
        %v1238 = vperm.slane %v1174, 1
        %v1239 = vperm.slane %v1175, 1
        %v1240 = vperm.slane %v1176, 1
        %v1241 = vperm.slane %v1177, 1
        %v1242 = vperm.slane %v1178, 1
        %v1243 = vperm.slane %v1179, 1
        %v1244 = vperm.slane %v1180, 1
        %v1245 = vperm.slane %v1181, 1
        %v1246 = vperm.slane %v1182, 1
        %v1247 = vsel %vm1015, %v1215, 0.0
        %v1248 = vsel %vm1016, %v1216, 0.0
        %v1249 = vsel %vm1017, %v1217, 0.0
        %v1250 = vsel %vm1018, %v1218, 0.0
        %v1251 = vsel %vm1019, %v1219, 0.0
        %v1252 = vsel %vm1020, %v1220, 0.0
        %v1253 = vsel %vm1021, %v1221, 0.0
        %v1254 = vsel %vm1022, %v1222, 0.0
        %v1255 = vsel %vm1023, %v1223, 0.0
        %v1256 = vsel %vm1024, %v1224, 0.0
        %v1257 = vsel %vm1025, %v1225, 0.0
        %v1258 = vsel %vm1026, %v1226, 0.0
        %v1259 = vsel %vm1027, %v1227, 0.0
        %v1260 = vsel %vm1028, %v1228, 0.0
        %v1261 = vsel %vm1029, %v1229, 0.0
        %v1262 = vsel %vm1030, %v1230, 0.0
        %v1263 = vsel %vm1031, %v1231, 0.0
        %v1264 = vsel %vm1032, %v1232, 0.0
        %v1265 = vsel %vm1033, %v1233, 0.0
        %v1266 = vsel %vm1034, %v1234, 0.0
        %v1267 = vsel %vm1035, %v1235, 0.0
        %v1268 = vsel %vm1036, %v1236, 0.0
        %v1269 = vsel %vm1037, %v1237, 0.0
        %v1270 = vsel %vm1038, %v1238, 0.0
        %v1271 = vsel %vm1039, %v1239, 0.0
        %v1272 = vsel %vm1040, %v1240, 0.0
        %v1273 = vsel %vm1041, %v1241, 0.0
        %v1274 = vsel %vm1042, %v1242, 0.0
        %v1275 = vsel %vm1043, %v1243, 0.0
        %v1276 = vsel %vm1044, %v1244, 0.0
        %v1277 = vsel %vm1045, %v1245, 0.0
        %v1278 = vsel %vm1046, %v1246, 0.0
        %v1279 = vsel %vm1047, %v1215, 0.0
        %v1280 = vsel %vm1048, %v1216, 0.0
        %v1281 = vsel %vm1049, %v1217, 0.0
        %v1282 = vsel %vm1050, %v1218, 0.0
        %v1283 = vsel %vm1051, %v1219, 0.0
        %v1284 = vsel %vm1052, %v1220, 0.0
        %v1285 = vsel %vm1053, %v1221, 0.0
        %v1286 = vsel %vm1054, %v1222, 0.0
        %v1287 = vsel %vm1055, %v1223, 0.0
        %v1288 = vsel %vm1056, %v1224, 0.0
        %v1289 = vsel %vm1057, %v1225, 0.0
        %v1290 = vsel %vm1058, %v1226, 0.0
        %v1291 = vsel %vm1059, %v1227, 0.0
        %v1292 = vsel %vm1060, %v1228, 0.0
        %v1293 = vsel %vm1061, %v1229, 0.0
        %v1294 = vsel %vm1062, %v1230, 0.0
        %v1295 = vsel %vm1063, %v1231, 0.0
        %v1296 = vsel %vm1064, %v1232, 0.0
        %v1297 = vsel %vm1065, %v1233, 0.0
        %v1298 = vsel %vm1066, %v1234, 0.0
        %v1299 = vsel %vm1067, %v1235, 0.0
        %v1300 = vsel %vm1068, %v1236, 0.0
        %v1301 = vsel %vm1069, %v1237, 0.0
        %v1302 = vsel %vm1070, %v1238, 0.0
        %v1303 = vsel %vm1071, %v1239, 0.0
        %v1304 = vsel %vm1072, %v1240, 0.0
        %v1305 = vsel %vm1073, %v1241, 0.0
        %v1306 = vsel %vm1074, %v1242, 0.0
        %v1307 = vsel %vm1075, %v1243, 0.0
        %v1308 = vsel %vm1076, %v1244, 0.0
        %v1309 = vsel %vm1077, %v1245, 0.0
        %v1310 = vsel %vm1078, %v1246, 0.0
        %v1311 = vsel %vm1079, %v1215, 0.0
        %v1312 = vsel %vm1080, %v1216, 0.0
        %v1313 = vsel %vm1081, %v1217, 0.0
        %v1314 = vsel %vm1082, %v1218, 0.0
        %v1315 = vsel %vm1083, %v1219, 0.0
        %v1316 = vsel %vm1084, %v1220, 0.0
        %v1317 = vsel %vm1085, %v1221, 0.0
        %v1318 = vsel %vm1086, %v1222, 0.0
        %v1319 = vsel %vm1087, %v1223, 0.0
        %v1320 = vsel %vm1088, %v1224, 0.0
        %v1321 = vsel %vm1089, %v1225, 0.0
        %v1322 = vsel %vm1090, %v1226, 0.0
        %v1323 = vsel %vm1091, %v1227, 0.0
        %v1324 = vsel %vm1092, %v1228, 0.0
        %v1325 = vsel %vm1093, %v1229, 0.0
        %v1326 = vsel %vm1094, %v1230, 0.0
        %v1327 = vsel %vm1095, %v1231, 0.0
        %v1328 = vsel %vm1096, %v1232, 0.0
        %v1329 = vsel %vm1097, %v1233, 0.0
        %v1330 = vsel %vm1098, %v1234, 0.0
        %v1331 = vsel %vm1099, %v1235, 0.0
        %v1332 = vsel %vm1100, %v1236, 0.0
        %v1333 = vsel %vm1101, %v1237, 0.0
        %v1334 = vsel %vm1102, %v1238, 0.0
        %v1335 = vsel %vm1103, %v1239, 0.0
        %v1336 = vsel %vm1104, %v1240, 0.0
        %v1337 = vsel %vm1105, %v1241, 0.0
        %v1338 = vsel %vm1106, %v1242, 0.0
        %v1339 = vsel %vm1107, %v1243, 0.0
        %v1340 = vsel %vm1108, %v1244, 0.0
        %v1341 = vsel %vm1109, %v1245, 0.0
        %v1342 = vsel %vm1110, %v1246, 0.0
        %v1343 = vsel %vm1111, %v1215, 0.0
        %v1344 = vsel %vm1112, %v1216, 0.0
        %v1345 = vsel %vm1113, %v1217, 0.0
        %v1346 = vsel %vm1114, %v1218, 0.0
        %v1347 = vsel %vm1115, %v1219, 0.0
        %v1348 = vsel %vm1116, %v1220, 0.0
        %v1349 = vsel %vm1117, %v1221, 0.0
        %v1350 = vsel %vm1118, %v1222, 0.0
        %v1351 = vsel %vm1119, %v1223, 0.0
        %v1352 = vsel %vm1120, %v1224, 0.0
        %v1353 = vsel %vm1121, %v1225, 0.0
        %v1354 = vsel %vm1122, %v1226, 0.0
        %v1355 = vsel %vm1123, %v1227, 0.0
        %v1356 = vsel %vm1124, %v1228, 0.0
        %v1357 = vsel %vm1125, %v1229, 0.0
        %v1358 = vsel %vm1126, %v1230, 0.0
        %v1359 = vsel %vm1127, %v1231, 0.0
        %v1360 = vsel %vm1128, %v1232, 0.0
        %v1361 = vsel %vm1129, %v1233, 0.0
        %v1362 = vsel %vm1130, %v1234, 0.0
        %v1363 = vsel %vm1131, %v1235, 0.0
        %v1364 = vsel %vm1132, %v1236, 0.0
        %v1365 = vsel %vm1133, %v1237, 0.0
        %v1366 = vsel %vm1134, %v1238, 0.0
        %v1367 = vsel %vm1135, %v1239, 0.0
        %v1368 = vsel %vm1136, %v1240, 0.0
        %v1369 = vsel %vm1137, %v1241, 0.0
        %v1370 = vsel %vm1138, %v1242, 0.0
        %v1371 = vsel %vm1139, %v1243, 0.0
        %v1372 = vsel %vm1140, %v1244, 0.0
        %v1373 = vsel %vm1141, %v1245, 0.0
        %v1374 = vsel %vm1142, %v1246, 0.0
        %v1375 = vadd.f32 %v823, %v1247
        %v1376 = vadd.f32 %v824, %v1248
        %v1377 = vadd.f32 %v825, %v1249
        %v1378 = vadd.f32 %v826, %v1250
        %v1379 = vadd.f32 %v827, %v1251
        %v1380 = vadd.f32 %v828, %v1252
        %v1381 = vadd.f32 %v829, %v1253
        %v1382 = vadd.f32 %v830, %v1254
        %v1383 = vadd.f32 %v831, %v1255
        %v1384 = vadd.f32 %v832, %v1256
        %v1385 = vadd.f32 %v833, %v1257
        %v1386 = vadd.f32 %v834, %v1258
        %v1387 = vadd.f32 %v835, %v1259
        %v1388 = vadd.f32 %v836, %v1260
        %v1389 = vadd.f32 %v837, %v1261
        %v1390 = vadd.f32 %v838, %v1262
        %v1391 = vadd.f32 %v839, %v1263
        %v1392 = vadd.f32 %v840, %v1264
        %v1393 = vadd.f32 %v841, %v1265
        %v1394 = vadd.f32 %v842, %v1266
        %v1395 = vadd.f32 %v843, %v1267
        %v1396 = vadd.f32 %v844, %v1268
        %v1397 = vadd.f32 %v845, %v1269
        %v1398 = vadd.f32 %v846, %v1270
        %v1399 = vadd.f32 %v847, %v1271
        %v1400 = vadd.f32 %v848, %v1272
        %v1401 = vadd.f32 %v849, %v1273
        %v1402 = vadd.f32 %v850, %v1274
        %v1403 = vadd.f32 %v851, %v1275
        %v1404 = vadd.f32 %v852, %v1276
        %v1405 = vadd.f32 %v853, %v1277
        %v1406 = vadd.f32 %v854, %v1278
        %v1407 = vadd.f32 %v855, %v1279
        %v1408 = vadd.f32 %v856, %v1280
        %v1409 = vadd.f32 %v857, %v1281
        %v1410 = vadd.f32 %v858, %v1282
        %v1411 = vadd.f32 %v859, %v1283
        %v1412 = vadd.f32 %v860, %v1284
        %v1413 = vadd.f32 %v861, %v1285
        %v1414 = vadd.f32 %v862, %v1286
        %v1415 = vadd.f32 %v863, %v1287
        %v1416 = vadd.f32 %v864, %v1288
        %v1417 = vadd.f32 %v865, %v1289
        %v1418 = vadd.f32 %v866, %v1290
        %v1419 = vadd.f32 %v867, %v1291
        %v1420 = vadd.f32 %v868, %v1292
        %v1421 = vadd.f32 %v869, %v1293
        %v1422 = vadd.f32 %v870, %v1294
        %v1423 = vadd.f32 %v871, %v1295
        %v1424 = vadd.f32 %v872, %v1296
        %v1425 = vadd.f32 %v873, %v1297
        %v1426 = vadd.f32 %v874, %v1298
        %v1427 = vadd.f32 %v875, %v1299
        %v1428 = vadd.f32 %v876, %v1300
        %v1429 = vadd.f32 %v877, %v1301
        %v1430 = vadd.f32 %v878, %v1302
        %v1431 = vadd.f32 %v879, %v1303
        %v1432 = vadd.f32 %v880, %v1304
        %v1433 = vadd.f32 %v881, %v1305
        %v1434 = vadd.f32 %v882, %v1306
        %v1435 = vadd.f32 %v883, %v1307
        %v1436 = vadd.f32 %v884, %v1308
        %v1437 = vadd.f32 %v885, %v1309
        %v1438 = vadd.f32 %v886, %v1310
        %v1439 = vadd.f32 %v887, %v1311
        %v1440 = vadd.f32 %v888, %v1312
        %v1441 = vadd.f32 %v889, %v1313
        %v1442 = vadd.f32 %v890, %v1314
        %v1443 = vadd.f32 %v891, %v1315
        %v1444 = vadd.f32 %v892, %v1316
        %v1445 = vadd.f32 %v893, %v1317
        %v1446 = vadd.f32 %v894, %v1318
        %v1447 = vadd.f32 %v895, %v1319
        %v1448 = vadd.f32 %v896, %v1320
        %v1449 = vadd.f32 %v897, %v1321
        %v1450 = vadd.f32 %v898, %v1322
        %v1451 = vadd.f32 %v899, %v1323
        %v1452 = vadd.f32 %v900, %v1324
        %v1453 = vadd.f32 %v901, %v1325
        %v1454 = vadd.f32 %v902, %v1326
        %v1455 = vadd.f32 %v903, %v1327
        %v1456 = vadd.f32 %v904, %v1328
        %v1457 = vadd.f32 %v905, %v1329
        %v1458 = vadd.f32 %v906, %v1330
        %v1459 = vadd.f32 %v907, %v1331
        %v1460 = vadd.f32 %v908, %v1332
        %v1461 = vadd.f32 %v909, %v1333
        %v1462 = vadd.f32 %v910, %v1334
        %v1463 = vadd.f32 %v911, %v1335
        %v1464 = vadd.f32 %v912, %v1336
        %v1465 = vadd.f32 %v913, %v1337
        %v1466 = vadd.f32 %v914, %v1338
        %v1467 = vadd.f32 %v915, %v1339
        %v1468 = vadd.f32 %v916, %v1340
        %v1469 = vadd.f32 %v917, %v1341
        %v1470 = vadd.f32 %v918, %v1342
        %v1471 = vadd.f32 %v919, %v1343
        %v1472 = vadd.f32 %v920, %v1344
        %v1473 = vadd.f32 %v921, %v1345
        %v1474 = vadd.f32 %v922, %v1346
        %v1475 = vadd.f32 %v923, %v1347
        %v1476 = vadd.f32 %v924, %v1348
        %v1477 = vadd.f32 %v925, %v1349
        %v1478 = vadd.f32 %v926, %v1350
        %v1479 = vadd.f32 %v927, %v1351
        %v1480 = vadd.f32 %v928, %v1352
        %v1481 = vadd.f32 %v929, %v1353
        %v1482 = vadd.f32 %v930, %v1354
        %v1483 = vadd.f32 %v931, %v1355
        %v1484 = vadd.f32 %v932, %v1356
        %v1485 = vadd.f32 %v933, %v1357
        %v1486 = vadd.f32 %v934, %v1358
        %v1487 = vadd.f32 %v935, %v1359
        %v1488 = vadd.f32 %v936, %v1360
        %v1489 = vadd.f32 %v937, %v1361
        %v1490 = vadd.f32 %v938, %v1362
        %v1491 = vadd.f32 %v939, %v1363
        %v1492 = vadd.f32 %v940, %v1364
        %v1493 = vadd.f32 %v941, %v1365
        %v1494 = vadd.f32 %v942, %v1366
        %v1495 = vadd.f32 %v943, %v1367
        %v1496 = vadd.f32 %v944, %v1368
        %v1497 = vadd.f32 %v945, %v1369
        %v1498 = vadd.f32 %v946, %v1370
        %v1499 = vadd.f32 %v947, %v1371
        %v1500 = vadd.f32 %v948, %v1372
        %v1501 = vadd.f32 %v949, %v1373
        %v1502 = vadd.f32 %v950, %v1374
        %v1503 = vperm.slane %v506, 0
        %v1504 = vperm.slane %v506, 2
        %v1505 = vperm.slane %v506, 4
        %v1506 = vperm.slane %v506, 6
        %v1507 = vperm.slane %v507, 0
        %v1508 = vperm.slane %v507, 2
        %v1509 = vperm.slane %v507, 4
        %v1510 = vperm.slane %v507, 6
        %v1511 = vperm.slane %v508, 0
        %v1512 = vperm.slane %v508, 2
        %v1513 = vperm.slane %v508, 4
        %v1514 = vperm.slane %v508, 6
        %v1515 = vperm.slane %v509, 0
        %v1516 = vperm.slane %v509, 2
        %v1517 = vperm.slane %v509, 4
        %v1518 = vperm.slane %v509, 6
        %v1519 = vperm.slane %v510, 0
        %v1520 = vperm.slane %v510, 2
        %v1521 = vperm.slane %v510, 4
        %v1522 = vperm.slane %v510, 6
        %v1523 = vperm.slane %v511, 0
        %v1524 = vperm.slane %v511, 2
        %v1525 = vperm.slane %v511, 4
        %v1526 = vperm.slane %v511, 6
        %v1527 = vperm.slane %v512, 0
        %v1528 = vperm.slane %v512, 2
        %v1529 = vperm.slane %v512, 4
        %v1530 = vperm.slane %v512, 6
        %v1531 = vperm.slane %v513, 0
        %v1532 = vperm.slane %v513, 2
        %v1533 = vperm.slane %v513, 4
        %v1534 = vperm.slane %v513, 6
        %v1535 = vperm.slane %v1503, 0
        %v1536 = vperm.slane %v1504, 0
        %v1537 = vperm.slane %v1505, 0
        %v1538 = vperm.slane %v1506, 0
        %v1539 = vperm.slane %v1507, 0
        %v1540 = vperm.slane %v1508, 0
        %v1541 = vperm.slane %v1509, 0
        %v1542 = vperm.slane %v1510, 0
        %v1543 = vperm.slane %v1511, 0
        %v1544 = vperm.slane %v1512, 0
        %v1545 = vperm.slane %v1513, 0
        %v1546 = vperm.slane %v1514, 0
        %v1547 = vperm.slane %v1515, 0
        %v1548 = vperm.slane %v1516, 0
        %v1549 = vperm.slane %v1517, 0
        %v1550 = vperm.slane %v1518, 0
        %v1551 = vperm.slane %v1519, 0
        %v1552 = vperm.slane %v1520, 0
        %v1553 = vperm.slane %v1521, 0
        %v1554 = vperm.slane %v1522, 0
        %v1555 = vperm.slane %v1523, 0
        %v1556 = vperm.slane %v1524, 0
        %v1557 = vperm.slane %v1525, 0
        %v1558 = vperm.slane %v1526, 0
        %v1559 = vperm.slane %v1527, 0
        %v1560 = vperm.slane %v1528, 0
        %v1561 = vperm.slane %v1529, 0
        %v1562 = vperm.slane %v1530, 0
        %v1563 = vperm.slane %v1531, 0
        %v1564 = vperm.slane %v1532, 0
        %v1565 = vperm.slane %v1533, 0
        %v1566 = vperm.slane %v1534, 0
        %vm1567 = vcmp.eq.s32.totalorder %v523, %v1535
        %vm1568 = vcmp.eq.s32.totalorder %v523, %v1536
        %vm1569 = vcmp.eq.s32.totalorder %v523, %v1537
        %vm1570 = vcmp.eq.s32.totalorder %v523, %v1538
        %vm1571 = vcmp.eq.s32.totalorder %v523, %v1539
        %vm1572 = vcmp.eq.s32.totalorder %v523, %v1540
        %vm1573 = vcmp.eq.s32.totalorder %v523, %v1541
        %vm1574 = vcmp.eq.s32.totalorder %v523, %v1542
        %vm1575 = vcmp.eq.s32.totalorder %v523, %v1543
        %vm1576 = vcmp.eq.s32.totalorder %v523, %v1544
        %vm1577 = vcmp.eq.s32.totalorder %v523, %v1545
        %vm1578 = vcmp.eq.s32.totalorder %v523, %v1546
        %vm1579 = vcmp.eq.s32.totalorder %v523, %v1547
        %vm1580 = vcmp.eq.s32.totalorder %v523, %v1548
        %vm1581 = vcmp.eq.s32.totalorder %v523, %v1549
        %vm1582 = vcmp.eq.s32.totalorder %v523, %v1550
        %vm1583 = vcmp.eq.s32.totalorder %v523, %v1551
        %vm1584 = vcmp.eq.s32.totalorder %v523, %v1552
        %vm1585 = vcmp.eq.s32.totalorder %v523, %v1553
        %vm1586 = vcmp.eq.s32.totalorder %v523, %v1554
        %vm1587 = vcmp.eq.s32.totalorder %v523, %v1555
        %vm1588 = vcmp.eq.s32.totalorder %v523, %v1556
        %vm1589 = vcmp.eq.s32.totalorder %v523, %v1557
        %vm1590 = vcmp.eq.s32.totalorder %v523, %v1558
        %vm1591 = vcmp.eq.s32.totalorder %v523, %v1559
        %vm1592 = vcmp.eq.s32.totalorder %v523, %v1560
        %vm1593 = vcmp.eq.s32.totalorder %v523, %v1561
        %vm1594 = vcmp.eq.s32.totalorder %v523, %v1562
        %vm1595 = vcmp.eq.s32.totalorder %v523, %v1563
        %vm1596 = vcmp.eq.s32.totalorder %v523, %v1564
        %vm1597 = vcmp.eq.s32.totalorder %v523, %v1565
        %vm1598 = vcmp.eq.s32.totalorder %v523, %v1566
        %vm1599 = vcmp.eq.s32.totalorder %v524, %v1535
        %vm1600 = vcmp.eq.s32.totalorder %v524, %v1536
        %vm1601 = vcmp.eq.s32.totalorder %v524, %v1537
        %vm1602 = vcmp.eq.s32.totalorder %v524, %v1538
        %vm1603 = vcmp.eq.s32.totalorder %v524, %v1539
        %vm1604 = vcmp.eq.s32.totalorder %v524, %v1540
        %vm1605 = vcmp.eq.s32.totalorder %v524, %v1541
        %vm1606 = vcmp.eq.s32.totalorder %v524, %v1542
        %vm1607 = vcmp.eq.s32.totalorder %v524, %v1543
        %vm1608 = vcmp.eq.s32.totalorder %v524, %v1544
        %vm1609 = vcmp.eq.s32.totalorder %v524, %v1545
        %vm1610 = vcmp.eq.s32.totalorder %v524, %v1546
        %vm1611 = vcmp.eq.s32.totalorder %v524, %v1547
        %vm1612 = vcmp.eq.s32.totalorder %v524, %v1548
        %vm1613 = vcmp.eq.s32.totalorder %v524, %v1549
        %vm1614 = vcmp.eq.s32.totalorder %v524, %v1550
        %vm1615 = vcmp.eq.s32.totalorder %v524, %v1551
        %vm1616 = vcmp.eq.s32.totalorder %v524, %v1552
        %vm1617 = vcmp.eq.s32.totalorder %v524, %v1553
        %vm1618 = vcmp.eq.s32.totalorder %v524, %v1554
        %vm1619 = vcmp.eq.s32.totalorder %v524, %v1555
        %vm1620 = vcmp.eq.s32.totalorder %v524, %v1556
        %vm1621 = vcmp.eq.s32.totalorder %v524, %v1557
        %vm1622 = vcmp.eq.s32.totalorder %v524, %v1558
        %vm1623 = vcmp.eq.s32.totalorder %v524, %v1559
        %vm1624 = vcmp.eq.s32.totalorder %v524, %v1560
        %vm1625 = vcmp.eq.s32.totalorder %v524, %v1561
        %vm1626 = vcmp.eq.s32.totalorder %v524, %v1562
        %vm1627 = vcmp.eq.s32.totalorder %v524, %v1563
        %vm1628 = vcmp.eq.s32.totalorder %v524, %v1564
        %vm1629 = vcmp.eq.s32.totalorder %v524, %v1565
        %vm1630 = vcmp.eq.s32.totalorder %v524, %v1566
        %v1639 = vperm.slane %v402, 0
        %v1640 = vperm.slane %v402, 2
        %v1641 = vperm.slane %v402, 4
        %v1642 = vperm.slane %v402, 6
        %v1643 = vperm.slane %v403, 0
        %v1644 = vperm.slane %v403, 2
        %v1645 = vperm.slane %v403, 4
        %v1646 = vperm.slane %v403, 6
        %v1647 = vperm.slane %v404, 0
        %v1648 = vperm.slane %v404, 2
        %v1649 = vperm.slane %v404, 4
        %v1650 = vperm.slane %v404, 6
        %v1651 = vperm.slane %v405, 0
        %v1652 = vperm.slane %v405, 2
        %v1653 = vperm.slane %v405, 4
        %v1654 = vperm.slane %v405, 6
        %v1655 = vperm.slane %v406, 0
        %v1656 = vperm.slane %v406, 2
        %v1657 = vperm.slane %v406, 4
        %v1658 = vperm.slane %v406, 6
        %v1659 = vperm.slane %v407, 0
        %v1660 = vperm.slane %v407, 2
        %v1661 = vperm.slane %v407, 4
        %v1662 = vperm.slane %v407, 6
        %v1663 = vperm.slane %v408, 0
        %v1664 = vperm.slane %v408, 2
        %v1665 = vperm.slane %v408, 4
        %v1666 = vperm.slane %v408, 6
        %v1667 = vperm.slane %v409, 0
        %v1668 = vperm.slane %v409, 2
        %v1669 = vperm.slane %v409, 4
        %v1670 = vperm.slane %v409, 6
        %v1703 = vperm.slane %v1639, 0
        %v1704 = vperm.slane %v1640, 0
        %v1705 = vperm.slane %v1641, 0
        %v1706 = vperm.slane %v1642, 0
        %v1707 = vperm.slane %v1643, 0
        %v1708 = vperm.slane %v1644, 0
        %v1709 = vperm.slane %v1645, 0
        %v1710 = vperm.slane %v1646, 0
        %v1711 = vperm.slane %v1647, 0
        %v1712 = vperm.slane %v1648, 0
        %v1713 = vperm.slane %v1649, 0
        %v1714 = vperm.slane %v1650, 0
        %v1715 = vperm.slane %v1651, 0
        %v1716 = vperm.slane %v1652, 0
        %v1717 = vperm.slane %v1653, 0
        %v1718 = vperm.slane %v1654, 0
        %v1719 = vperm.slane %v1655, 0
        %v1720 = vperm.slane %v1656, 0
        %v1721 = vperm.slane %v1657, 0
        %v1722 = vperm.slane %v1658, 0
        %v1723 = vperm.slane %v1659, 0
        %v1724 = vperm.slane %v1660, 0
        %v1725 = vperm.slane %v1661, 0
        %v1726 = vperm.slane %v1662, 0
        %v1727 = vperm.slane %v1663, 0
        %v1728 = vperm.slane %v1664, 0
        %v1729 = vperm.slane %v1665, 0
        %v1730 = vperm.slane %v1666, 0
        %v1731 = vperm.slane %v1667, 0
        %v1732 = vperm.slane %v1668, 0
        %v1733 = vperm.slane %v1669, 0
        %v1734 = vperm.slane %v1670, 0
        %v1735 = vsel %vm1567, %v1703, 0.0
        %v1736 = vsel %vm1568, %v1704, 0.0
        %v1737 = vsel %vm1569, %v1705, 0.0
        %v1738 = vsel %vm1570, %v1706, 0.0
        %v1739 = vsel %vm1571, %v1707, 0.0
        %v1740 = vsel %vm1572, %v1708, 0.0
        %v1741 = vsel %vm1573, %v1709, 0.0
        %v1742 = vsel %vm1574, %v1710, 0.0
        %v1743 = vsel %vm1575, %v1711, 0.0
        %v1744 = vsel %vm1576, %v1712, 0.0
        %v1745 = vsel %vm1577, %v1713, 0.0
        %v1746 = vsel %vm1578, %v1714, 0.0
        %v1747 = vsel %vm1579, %v1715, 0.0
        %v1748 = vsel %vm1580, %v1716, 0.0
        %v1749 = vsel %vm1581, %v1717, 0.0
        %v1750 = vsel %vm1582, %v1718, 0.0
        %v1751 = vsel %vm1583, %v1719, 0.0
        %v1752 = vsel %vm1584, %v1720, 0.0
        %v1753 = vsel %vm1585, %v1721, 0.0
        %v1754 = vsel %vm1586, %v1722, 0.0
        %v1755 = vsel %vm1587, %v1723, 0.0
        %v1756 = vsel %vm1588, %v1724, 0.0
        %v1757 = vsel %vm1589, %v1725, 0.0
        %v1758 = vsel %vm1590, %v1726, 0.0
        %v1759 = vsel %vm1591, %v1727, 0.0
        %v1760 = vsel %vm1592, %v1728, 0.0
        %v1761 = vsel %vm1593, %v1729, 0.0
        %v1762 = vsel %vm1594, %v1730, 0.0
        %v1763 = vsel %vm1595, %v1731, 0.0
        %v1764 = vsel %vm1596, %v1732, 0.0
        %v1765 = vsel %vm1597, %v1733, 0.0
        %v1766 = vsel %vm1598, %v1734, 0.0
        %v1767 = vsel %vm1599, %v1703, 0.0
        %v1768 = vsel %vm1600, %v1704, 0.0
        %v1769 = vsel %vm1601, %v1705, 0.0
        %v1770 = vsel %vm1602, %v1706, 0.0
        %v1771 = vsel %vm1603, %v1707, 0.0
        %v1772 = vsel %vm1604, %v1708, 0.0
        %v1773 = vsel %vm1605, %v1709, 0.0
        %v1774 = vsel %vm1606, %v1710, 0.0
        %v1775 = vsel %vm1607, %v1711, 0.0
        %v1776 = vsel %vm1608, %v1712, 0.0
        %v1777 = vsel %vm1609, %v1713, 0.0
        %v1778 = vsel %vm1610, %v1714, 0.0
        %v1779 = vsel %vm1611, %v1715, 0.0
        %v1780 = vsel %vm1612, %v1716, 0.0
        %v1781 = vsel %vm1613, %v1717, 0.0
        %v1782 = vsel %vm1614, %v1718, 0.0
        %v1783 = vsel %vm1615, %v1719, 0.0
        %v1784 = vsel %vm1616, %v1720, 0.0
        %v1785 = vsel %vm1617, %v1721, 0.0
        %v1786 = vsel %vm1618, %v1722, 0.0
        %v1787 = vsel %vm1619, %v1723, 0.0
        %v1788 = vsel %vm1620, %v1724, 0.0
        %v1789 = vsel %vm1621, %v1725, 0.0
        %v1790 = vsel %vm1622, %v1726, 0.0
        %v1791 = vsel %vm1623, %v1727, 0.0
        %v1792 = vsel %vm1624, %v1728, 0.0
        %v1793 = vsel %vm1625, %v1729, 0.0
        %v1794 = vsel %vm1626, %v1730, 0.0
        %v1795 = vsel %vm1627, %v1731, 0.0
        %v1796 = vsel %vm1628, %v1732, 0.0
        %v1797 = vsel %vm1629, %v1733, 0.0
        %v1798 = vsel %vm1630, %v1734, 0.0
        %v1799 = vperm.slane %v514, 0
        %v1800 = vperm.slane %v514, 2
        %v1801 = vperm.slane %v514, 4
        %v1802 = vperm.slane %v514, 6
        %v1803 = vperm.slane %v515, 0
        %v1804 = vperm.slane %v515, 2
        %v1805 = vperm.slane %v515, 4
        %v1806 = vperm.slane %v515, 6
        %v1807 = vperm.slane %v516, 0
        %v1808 = vperm.slane %v516, 2
        %v1809 = vperm.slane %v516, 4
        %v1810 = vperm.slane %v516, 6
        %v1811 = vperm.slane %v517, 0
        %v1812 = vperm.slane %v517, 2
        %v1813 = vperm.slane %v517, 4
        %v1814 = vperm.slane %v517, 6
        %v1815 = vperm.slane %v518, 0
        %v1816 = vperm.slane %v518, 2
        %v1817 = vperm.slane %v518, 4
        %v1818 = vperm.slane %v518, 6
        %v1819 = vperm.slane %v519, 0
        %v1820 = vperm.slane %v519, 2
        %v1821 = vperm.slane %v519, 4
        %v1822 = vperm.slane %v519, 6
        %v1823 = vperm.slane %v520, 0
        %v1824 = vperm.slane %v520, 2
        %v1825 = vperm.slane %v520, 4
        %v1826 = vperm.slane %v520, 6
        %v1827 = vperm.slane %v521, 0
        %v1828 = vperm.slane %v521, 2
        %v1829 = vperm.slane %v521, 4
        %v1830 = vperm.slane %v521, 6
        %v1831 = vperm.slane %v1799, 0
        %v1832 = vperm.slane %v1800, 0
        %v1833 = vperm.slane %v1801, 0
        %v1834 = vperm.slane %v1802, 0
        %v1835 = vperm.slane %v1803, 0
        %v1836 = vperm.slane %v1804, 0
        %v1837 = vperm.slane %v1805, 0
        %v1838 = vperm.slane %v1806, 0
        %v1839 = vperm.slane %v1807, 0
        %v1840 = vperm.slane %v1808, 0
        %v1841 = vperm.slane %v1809, 0
        %v1842 = vperm.slane %v1810, 0
        %v1843 = vperm.slane %v1811, 0
        %v1844 = vperm.slane %v1812, 0
        %v1845 = vperm.slane %v1813, 0
        %v1846 = vperm.slane %v1814, 0
        %v1847 = vperm.slane %v1815, 0
        %v1848 = vperm.slane %v1816, 0
        %v1849 = vperm.slane %v1817, 0
        %v1850 = vperm.slane %v1818, 0
        %v1851 = vperm.slane %v1819, 0
        %v1852 = vperm.slane %v1820, 0
        %v1853 = vperm.slane %v1821, 0
        %v1854 = vperm.slane %v1822, 0
        %v1855 = vperm.slane %v1823, 0
        %v1856 = vperm.slane %v1824, 0
        %v1857 = vperm.slane %v1825, 0
        %v1858 = vperm.slane %v1826, 0
        %v1859 = vperm.slane %v1827, 0
        %v1860 = vperm.slane %v1828, 0
        %v1861 = vperm.slane %v1829, 0
        %v1862 = vperm.slane %v1830, 0
        %vm1863 = vcmp.eq.s32.totalorder %v523, %v1831
        %vm1864 = vcmp.eq.s32.totalorder %v523, %v1832
        %vm1865 = vcmp.eq.s32.totalorder %v523, %v1833
        %vm1866 = vcmp.eq.s32.totalorder %v523, %v1834
        %vm1867 = vcmp.eq.s32.totalorder %v523, %v1835
        %vm1868 = vcmp.eq.s32.totalorder %v523, %v1836
        %vm1869 = vcmp.eq.s32.totalorder %v523, %v1837
        %vm1870 = vcmp.eq.s32.totalorder %v523, %v1838
        %vm1871 = vcmp.eq.s32.totalorder %v523, %v1839
        %vm1872 = vcmp.eq.s32.totalorder %v523, %v1840
        %vm1873 = vcmp.eq.s32.totalorder %v523, %v1841
        %vm1874 = vcmp.eq.s32.totalorder %v523, %v1842
        %vm1875 = vcmp.eq.s32.totalorder %v523, %v1843
        %vm1876 = vcmp.eq.s32.totalorder %v523, %v1844
        %vm1877 = vcmp.eq.s32.totalorder %v523, %v1845
        %vm1878 = vcmp.eq.s32.totalorder %v523, %v1846
        %vm1879 = vcmp.eq.s32.totalorder %v523, %v1847
        %vm1880 = vcmp.eq.s32.totalorder %v523, %v1848
        %vm1881 = vcmp.eq.s32.totalorder %v523, %v1849
        %vm1882 = vcmp.eq.s32.totalorder %v523, %v1850
        %vm1883 = vcmp.eq.s32.totalorder %v523, %v1851
        %vm1884 = vcmp.eq.s32.totalorder %v523, %v1852
        %vm1885 = vcmp.eq.s32.totalorder %v523, %v1853
        %vm1886 = vcmp.eq.s32.totalorder %v523, %v1854
        %vm1887 = vcmp.eq.s32.totalorder %v523, %v1855
        %vm1888 = vcmp.eq.s32.totalorder %v523, %v1856
        %vm1889 = vcmp.eq.s32.totalorder %v523, %v1857
        %vm1890 = vcmp.eq.s32.totalorder %v523, %v1858
        %vm1891 = vcmp.eq.s32.totalorder %v523, %v1859
        %vm1892 = vcmp.eq.s32.totalorder %v523, %v1860
        %vm1893 = vcmp.eq.s32.totalorder %v523, %v1861
        %vm1894 = vcmp.eq.s32.totalorder %v523, %v1862
        %vm1895 = vcmp.eq.s32.totalorder %v524, %v1831
        %vm1896 = vcmp.eq.s32.totalorder %v524, %v1832
        %vm1897 = vcmp.eq.s32.totalorder %v524, %v1833
        %vm1898 = vcmp.eq.s32.totalorder %v524, %v1834
        %vm1899 = vcmp.eq.s32.totalorder %v524, %v1835
        %vm1900 = vcmp.eq.s32.totalorder %v524, %v1836
        %vm1901 = vcmp.eq.s32.totalorder %v524, %v1837
        %vm1902 = vcmp.eq.s32.totalorder %v524, %v1838
        %vm1903 = vcmp.eq.s32.totalorder %v524, %v1839
        %vm1904 = vcmp.eq.s32.totalorder %v524, %v1840
        %vm1905 = vcmp.eq.s32.totalorder %v524, %v1841
        %vm1906 = vcmp.eq.s32.totalorder %v524, %v1842
        %vm1907 = vcmp.eq.s32.totalorder %v524, %v1843
        %vm1908 = vcmp.eq.s32.totalorder %v524, %v1844
        %vm1909 = vcmp.eq.s32.totalorder %v524, %v1845
        %vm1910 = vcmp.eq.s32.totalorder %v524, %v1846
        %vm1911 = vcmp.eq.s32.totalorder %v524, %v1847
        %vm1912 = vcmp.eq.s32.totalorder %v524, %v1848
        %vm1913 = vcmp.eq.s32.totalorder %v524, %v1849
        %vm1914 = vcmp.eq.s32.totalorder %v524, %v1850
        %vm1915 = vcmp.eq.s32.totalorder %v524, %v1851
        %vm1916 = vcmp.eq.s32.totalorder %v524, %v1852
        %vm1917 = vcmp.eq.s32.totalorder %v524, %v1853
        %vm1918 = vcmp.eq.s32.totalorder %v524, %v1854
        %vm1919 = vcmp.eq.s32.totalorder %v524, %v1855
        %vm1920 = vcmp.eq.s32.totalorder %v524, %v1856
        %vm1921 = vcmp.eq.s32.totalorder %v524, %v1857
        %vm1922 = vcmp.eq.s32.totalorder %v524, %v1858
        %vm1923 = vcmp.eq.s32.totalorder %v524, %v1859
        %vm1924 = vcmp.eq.s32.totalorder %v524, %v1860
        %vm1925 = vcmp.eq.s32.totalorder %v524, %v1861
        %vm1926 = vcmp.eq.s32.totalorder %v524, %v1862
        %v1935 = vperm.slane %v410, 0
        %v1936 = vperm.slane %v410, 2
        %v1937 = vperm.slane %v410, 4
        %v1938 = vperm.slane %v410, 6
        %v1939 = vperm.slane %v411, 0
        %v1940 = vperm.slane %v411, 2
        %v1941 = vperm.slane %v411, 4
        %v1942 = vperm.slane %v411, 6
        %v1943 = vperm.slane %v412, 0
        %v1944 = vperm.slane %v412, 2
        %v1945 = vperm.slane %v412, 4
        %v1946 = vperm.slane %v412, 6
        %v1947 = vperm.slane %v413, 0
        %v1948 = vperm.slane %v413, 2
        %v1949 = vperm.slane %v413, 4
        %v1950 = vperm.slane %v413, 6
        %v1951 = vperm.slane %v414, 0
        %v1952 = vperm.slane %v414, 2
        %v1953 = vperm.slane %v414, 4
        %v1954 = vperm.slane %v414, 6
        %v1955 = vperm.slane %v415, 0
        %v1956 = vperm.slane %v415, 2
        %v1957 = vperm.slane %v415, 4
        %v1958 = vperm.slane %v415, 6
        %v1959 = vperm.slane %v416, 0
        %v1960 = vperm.slane %v416, 2
        %v1961 = vperm.slane %v416, 4
        %v1962 = vperm.slane %v416, 6
        %v1963 = vperm.slane %v417, 0
        %v1964 = vperm.slane %v417, 2
        %v1965 = vperm.slane %v417, 4
        %v1966 = vperm.slane %v417, 6
        %v1999 = vperm.slane %v1935, 0
        %v2000 = vperm.slane %v1936, 0
        %v2001 = vperm.slane %v1937, 0
        %v2002 = vperm.slane %v1938, 0
        %v2003 = vperm.slane %v1939, 0
        %v2004 = vperm.slane %v1940, 0
        %v2005 = vperm.slane %v1941, 0
        %v2006 = vperm.slane %v1942, 0
        %v2007 = vperm.slane %v1943, 0
        %v2008 = vperm.slane %v1944, 0
        %v2009 = vperm.slane %v1945, 0
        %v2010 = vperm.slane %v1946, 0
        %v2011 = vperm.slane %v1947, 0
        %v2012 = vperm.slane %v1948, 0
        %v2013 = vperm.slane %v1949, 0
        %v2014 = vperm.slane %v1950, 0
        %v2015 = vperm.slane %v1951, 0
        %v2016 = vperm.slane %v1952, 0
        %v2017 = vperm.slane %v1953, 0
        %v2018 = vperm.slane %v1954, 0
        %v2019 = vperm.slane %v1955, 0
        %v2020 = vperm.slane %v1956, 0
        %v2021 = vperm.slane %v1957, 0
        %v2022 = vperm.slane %v1958, 0
        %v2023 = vperm.slane %v1959, 0
        %v2024 = vperm.slane %v1960, 0
        %v2025 = vperm.slane %v1961, 0
        %v2026 = vperm.slane %v1962, 0
        %v2027 = vperm.slane %v1963, 0
        %v2028 = vperm.slane %v1964, 0
        %v2029 = vperm.slane %v1965, 0
        %v2030 = vperm.slane %v1966, 0
        %v2031 = vsel %vm1863, %v1999, 0.0
        %v2032 = vsel %vm1864, %v2000, 0.0
        %v2033 = vsel %vm1865, %v2001, 0.0
        %v2034 = vsel %vm1866, %v2002, 0.0
        %v2035 = vsel %vm1867, %v2003, 0.0
        %v2036 = vsel %vm1868, %v2004, 0.0
        %v2037 = vsel %vm1869, %v2005, 0.0
        %v2038 = vsel %vm1870, %v2006, 0.0
        %v2039 = vsel %vm1871, %v2007, 0.0
        %v2040 = vsel %vm1872, %v2008, 0.0
        %v2041 = vsel %vm1873, %v2009, 0.0
        %v2042 = vsel %vm1874, %v2010, 0.0
        %v2043 = vsel %vm1875, %v2011, 0.0
        %v2044 = vsel %vm1876, %v2012, 0.0
        %v2045 = vsel %vm1877, %v2013, 0.0
        %v2046 = vsel %vm1878, %v2014, 0.0
        %v2047 = vsel %vm1879, %v2015, 0.0
        %v2048 = vsel %vm1880, %v2016, 0.0
        %v2049 = vsel %vm1881, %v2017, 0.0
        %v2050 = vsel %vm1882, %v2018, 0.0
        %v2051 = vsel %vm1883, %v2019, 0.0
        %v2052 = vsel %vm1884, %v2020, 0.0
        %v2053 = vsel %vm1885, %v2021, 0.0
        %v2054 = vsel %vm1886, %v2022, 0.0
        %v2055 = vsel %vm1887, %v2023, 0.0
        %v2056 = vsel %vm1888, %v2024, 0.0
        %v2057 = vsel %vm1889, %v2025, 0.0
        %v2058 = vsel %vm1890, %v2026, 0.0
        %v2059 = vsel %vm1891, %v2027, 0.0
        %v2060 = vsel %vm1892, %v2028, 0.0
        %v2061 = vsel %vm1893, %v2029, 0.0
        %v2062 = vsel %vm1894, %v2030, 0.0
        %v2063 = vsel %vm1895, %v1999, 0.0
        %v2064 = vsel %vm1896, %v2000, 0.0
        %v2065 = vsel %vm1897, %v2001, 0.0
        %v2066 = vsel %vm1898, %v2002, 0.0
        %v2067 = vsel %vm1899, %v2003, 0.0
        %v2068 = vsel %vm1900, %v2004, 0.0
        %v2069 = vsel %vm1901, %v2005, 0.0
        %v2070 = vsel %vm1902, %v2006, 0.0
        %v2071 = vsel %vm1903, %v2007, 0.0
        %v2072 = vsel %vm1904, %v2008, 0.0
        %v2073 = vsel %vm1905, %v2009, 0.0
        %v2074 = vsel %vm1906, %v2010, 0.0
        %v2075 = vsel %vm1907, %v2011, 0.0
        %v2076 = vsel %vm1908, %v2012, 0.0
        %v2077 = vsel %vm1909, %v2013, 0.0
        %v2078 = vsel %vm1910, %v2014, 0.0
        %v2079 = vsel %vm1911, %v2015, 0.0
        %v2080 = vsel %vm1912, %v2016, 0.0
        %v2081 = vsel %vm1913, %v2017, 0.0
        %v2082 = vsel %vm1914, %v2018, 0.0
        %v2083 = vsel %vm1915, %v2019, 0.0
        %v2084 = vsel %vm1916, %v2020, 0.0
        %v2085 = vsel %vm1917, %v2021, 0.0
        %v2086 = vsel %vm1918, %v2022, 0.0
        %v2087 = vsel %vm1919, %v2023, 0.0
        %v2088 = vsel %vm1920, %v2024, 0.0
        %v2089 = vsel %vm1921, %v2025, 0.0
        %v2090 = vsel %vm1922, %v2026, 0.0
        %v2091 = vsel %vm1923, %v2027, 0.0
        %v2092 = vsel %vm1924, %v2028, 0.0
        %v2093 = vsel %vm1925, %v2029, 0.0
        %v2094 = vsel %vm1926, %v2030, 0.0
        %v2095 = vadd.f32 %v1735, %v2031
        %v2096 = vadd.f32 %v1736, %v2032
        %v2097 = vadd.f32 %v1737, %v2033
        %v2098 = vadd.f32 %v1738, %v2034
        %v2099 = vadd.f32 %v1739, %v2035
        %v2100 = vadd.f32 %v1740, %v2036
        %v2101 = vadd.f32 %v1741, %v2037
        %v2102 = vadd.f32 %v1742, %v2038
        %v2103 = vadd.f32 %v1743, %v2039
        %v2104 = vadd.f32 %v1744, %v2040
        %v2105 = vadd.f32 %v1745, %v2041
        %v2106 = vadd.f32 %v1746, %v2042
        %v2107 = vadd.f32 %v1747, %v2043
        %v2108 = vadd.f32 %v1748, %v2044
        %v2109 = vadd.f32 %v1749, %v2045
        %v2110 = vadd.f32 %v1750, %v2046
        %v2111 = vadd.f32 %v1751, %v2047
        %v2112 = vadd.f32 %v1752, %v2048
        %v2113 = vadd.f32 %v1753, %v2049
        %v2114 = vadd.f32 %v1754, %v2050
        %v2115 = vadd.f32 %v1755, %v2051
        %v2116 = vadd.f32 %v1756, %v2052
        %v2117 = vadd.f32 %v1757, %v2053
        %v2118 = vadd.f32 %v1758, %v2054
        %v2119 = vadd.f32 %v1759, %v2055
        %v2120 = vadd.f32 %v1760, %v2056
        %v2121 = vadd.f32 %v1761, %v2057
        %v2122 = vadd.f32 %v1762, %v2058
        %v2123 = vadd.f32 %v1763, %v2059
        %v2124 = vadd.f32 %v1764, %v2060
        %v2125 = vadd.f32 %v1765, %v2061
        %v2126 = vadd.f32 %v1766, %v2062
        %v2127 = vadd.f32 %v1767, %v2063
        %v2128 = vadd.f32 %v1768, %v2064
        %v2129 = vadd.f32 %v1769, %v2065
        %v2130 = vadd.f32 %v1770, %v2066
        %v2131 = vadd.f32 %v1771, %v2067
        %v2132 = vadd.f32 %v1772, %v2068
        %v2133 = vadd.f32 %v1773, %v2069
        %v2134 = vadd.f32 %v1774, %v2070
        %v2135 = vadd.f32 %v1775, %v2071
        %v2136 = vadd.f32 %v1776, %v2072
        %v2137 = vadd.f32 %v1777, %v2073
        %v2138 = vadd.f32 %v1778, %v2074
        %v2139 = vadd.f32 %v1779, %v2075
        %v2140 = vadd.f32 %v1780, %v2076
        %v2141 = vadd.f32 %v1781, %v2077
        %v2142 = vadd.f32 %v1782, %v2078
        %v2143 = vadd.f32 %v1783, %v2079
        %v2144 = vadd.f32 %v1784, %v2080
        %v2145 = vadd.f32 %v1785, %v2081
        %v2146 = vadd.f32 %v1786, %v2082
        %v2147 = vadd.f32 %v1787, %v2083
        %v2148 = vadd.f32 %v1788, %v2084
        %v2149 = vadd.f32 %v1789, %v2085
        %v2150 = vadd.f32 %v1790, %v2086
        %v2151 = vadd.f32 %v1791, %v2087
        %v2152 = vadd.f32 %v1792, %v2088
        %v2153 = vadd.f32 %v1793, %v2089
        %v2154 = vadd.f32 %v1794, %v2090
        %v2155 = vadd.f32 %v1795, %v2091
        %v2156 = vadd.f32 %v1796, %v2092
        %v2157 = vadd.f32 %v1797, %v2093
        %v2158 = vadd.f32 %v1798, %v2094
        %v2167 = vperm.slane %v498, 1
        %v2168 = vperm.slane %v498, 3
        %v2169 = vperm.slane %v498, 5
        %v2170 = vperm.slane %v498, 7
        %v2171 = vperm.slane %v499, 1
        %v2172 = vperm.slane %v499, 3
        %v2173 = vperm.slane %v499, 5
        %v2174 = vperm.slane %v499, 7
        %v2175 = vperm.slane %v500, 1
        %v2176 = vperm.slane %v500, 3
        %v2177 = vperm.slane %v500, 5
        %v2178 = vperm.slane %v500, 7
        %v2179 = vperm.slane %v501, 1
        %v2180 = vperm.slane %v501, 3
        %v2181 = vperm.slane %v501, 5
        %v2182 = vperm.slane %v501, 7
        %v2183 = vperm.slane %v502, 1
        %v2184 = vperm.slane %v502, 3
        %v2185 = vperm.slane %v502, 5
        %v2186 = vperm.slane %v502, 7
        %v2187 = vperm.slane %v503, 1
        %v2188 = vperm.slane %v503, 3
        %v2189 = vperm.slane %v503, 5
        %v2190 = vperm.slane %v503, 7
        %v2191 = vperm.slane %v504, 1
        %v2192 = vperm.slane %v504, 3
        %v2193 = vperm.slane %v504, 5
        %v2194 = vperm.slane %v504, 7
        %v2195 = vperm.slane %v505, 1
        %v2196 = vperm.slane %v505, 3
        %v2197 = vperm.slane %v505, 5
        %v2198 = vperm.slane %v505, 7
        %v2231 = vperm.slane %v2167, 1
        %v2232 = vperm.slane %v2168, 1
        %v2233 = vperm.slane %v2169, 1
        %v2234 = vperm.slane %v2170, 1
        %v2235 = vperm.slane %v2171, 1
        %v2236 = vperm.slane %v2172, 1
        %v2237 = vperm.slane %v2173, 1
        %v2238 = vperm.slane %v2174, 1
        %v2239 = vperm.slane %v2175, 1
        %v2240 = vperm.slane %v2176, 1
        %v2241 = vperm.slane %v2177, 1
        %v2242 = vperm.slane %v2178, 1
        %v2243 = vperm.slane %v2179, 1
        %v2244 = vperm.slane %v2180, 1
        %v2245 = vperm.slane %v2181, 1
        %v2246 = vperm.slane %v2182, 1
        %v2247 = vperm.slane %v2183, 1
        %v2248 = vperm.slane %v2184, 1
        %v2249 = vperm.slane %v2185, 1
        %v2250 = vperm.slane %v2186, 1
        %v2251 = vperm.slane %v2187, 1
        %v2252 = vperm.slane %v2188, 1
        %v2253 = vperm.slane %v2189, 1
        %v2254 = vperm.slane %v2190, 1
        %v2255 = vperm.slane %v2191, 1
        %v2256 = vperm.slane %v2192, 1
        %v2257 = vperm.slane %v2193, 1
        %v2258 = vperm.slane %v2194, 1
        %v2259 = vperm.slane %v2195, 1
        %v2260 = vperm.slane %v2196, 1
        %v2261 = vperm.slane %v2197, 1
        %v2262 = vperm.slane %v2198, 1
        %v2263 = vmul.f32 %v2095, %v2231
        %v2264 = vmul.f32 %v2096, %v2232
        %v2265 = vmul.f32 %v2097, %v2233
        %v2266 = vmul.f32 %v2098, %v2234
        %v2267 = vmul.f32 %v2099, %v2235
        %v2268 = vmul.f32 %v2100, %v2236
        %v2269 = vmul.f32 %v2101, %v2237
        %v2270 = vmul.f32 %v2102, %v2238
        %v2271 = vmul.f32 %v2103, %v2239
        %v2272 = vmul.f32 %v2104, %v2240
        %v2273 = vmul.f32 %v2105, %v2241
        %v2274 = vmul.f32 %v2106, %v2242
        %v2275 = vmul.f32 %v2107, %v2243
        %v2276 = vmul.f32 %v2108, %v2244
        %v2277 = vmul.f32 %v2109, %v2245
        %v2278 = vmul.f32 %v2110, %v2246
        %v2279 = vmul.f32 %v2111, %v2247
        %v2280 = vmul.f32 %v2112, %v2248
        %v2281 = vmul.f32 %v2113, %v2249
        %v2282 = vmul.f32 %v2114, %v2250
        %v2283 = vmul.f32 %v2115, %v2251
        %v2284 = vmul.f32 %v2116, %v2252
        %v2285 = vmul.f32 %v2117, %v2253
        %v2286 = vmul.f32 %v2118, %v2254
        %v2287 = vmul.f32 %v2119, %v2255
        %v2288 = vmul.f32 %v2120, %v2256
        %v2289 = vmul.f32 %v2121, %v2257
        %v2290 = vmul.f32 %v2122, %v2258
        %v2291 = vmul.f32 %v2123, %v2259
        %v2292 = vmul.f32 %v2124, %v2260
        %v2293 = vmul.f32 %v2125, %v2261
        %v2294 = vmul.f32 %v2126, %v2262
        %v2295 = vmul.f32 %v2127, %v2231
        %v2296 = vmul.f32 %v2128, %v2232
        %v2297 = vmul.f32 %v2129, %v2233
        %v2298 = vmul.f32 %v2130, %v2234
        %v2299 = vmul.f32 %v2131, %v2235
        %v2300 = vmul.f32 %v2132, %v2236
        %v2301 = vmul.f32 %v2133, %v2237
        %v2302 = vmul.f32 %v2134, %v2238
        %v2303 = vmul.f32 %v2135, %v2239
        %v2304 = vmul.f32 %v2136, %v2240
        %v2305 = vmul.f32 %v2137, %v2241
        %v2306 = vmul.f32 %v2138, %v2242
        %v2307 = vmul.f32 %v2139, %v2243
        %v2308 = vmul.f32 %v2140, %v2244
        %v2309 = vmul.f32 %v2141, %v2245
        %v2310 = vmul.f32 %v2142, %v2246
        %v2311 = vmul.f32 %v2143, %v2247
        %v2312 = vmul.f32 %v2144, %v2248
        %v2313 = vmul.f32 %v2145, %v2249
        %v2314 = vmul.f32 %v2146, %v2250
        %v2315 = vmul.f32 %v2147, %v2251
        %v2316 = vmul.f32 %v2148, %v2252
        %v2317 = vmul.f32 %v2149, %v2253
        %v2318 = vmul.f32 %v2150, %v2254
        %v2319 = vmul.f32 %v2151, %v2255
        %v2320 = vmul.f32 %v2152, %v2256
        %v2321 = vmul.f32 %v2153, %v2257
        %v2322 = vmul.f32 %v2154, %v2258
        %v2323 = vmul.f32 %v2155, %v2259
        %v2324 = vmul.f32 %v2156, %v2260
        %v2325 = vmul.f32 %v2157, %v2261
        %v2326 = vmul.f32 %v2158, %v2262
        %v2327 = vld [vmem:[%s207] sm:$0xff]
        %v2328 = vld [vmem:[%s207 + $0x8] sm:$0xff]
        %v2329 = vld [vmem:[%s207 + $0x10] sm:$0xff]
        %v2330 = vld [vmem:[%s207 + $0x18] sm:$0xff]
        %v2331 = vld [vmem:[%s207 + $0x20] sm:$0xff]
        %v2332 = vld [vmem:[%s207 + $0x28] sm:$0xff]
        %vm2333 = vcmask 261120
        %v2335 = vsel %vm2333, %v2327, 0
        %v2338 = vsel %vm2333, %v2328, 0
        %v2341 = vsel %vm2333, %v2329, 0
        %v2344 = vsel %vm2333, %v2330, 0
        %v2347 = vsel %vm2333, %v2331, 0
        %v2350 = vsel %vm2333, %v2332, 0
        %2352 = vmatpush.msra.mxu0 0.0
        %2353 = vmatpush.msra.mxu0 0.0
        %2354 = vmatpush.msra.mxu0 0.0
        %2355 = vmatpush.msra.mxu0 0.0
        %2356 = vmatpush.msra.mxu0 0.0
        %2357 = vmatpush.msra.mxu0 0.0
        %2358 = vmatpush.msra.mxu0 0.0
        %2359 = vmatpush.msra.mxu0 0.0
        %2360 = vmatpush.msra.mxu0 0.0
        %2361 = vmatpush.msra.mxu0 0.0
        %2362 = vmatpush.msra.mxu0 0.0
        %2363 = vmatpush.msra.mxu0 0.0
        %2364 = vmatpush.msra.mxu0 %v1471
        %2365 = vmatpush.msra.mxu0 %v1439
        %2366 = vmatpush.msra.mxu0 %v1407
        %2367 = vmatpush.msra.mxu0 %v1375
        %2368 = vmatmul.f32.gmra.mxu0 %v2335
        %v2369 = vpop.f32.mrf.mxu0
        %v2370 = vadd.f32 0.0, %v2369
        %2371 = vmatmul.f32.gmra.mxu0 %v2338
        %v2372 = vpop.f32.mrf.mxu0
        %v2373 = vadd.f32 0.0, %v2372
        %2374 = vmatmul.f32.gmra.mxu0 %v2341
        %v2375 = vpop.f32.mrf.mxu0
        %v2376 = vadd.f32 0.0, %v2375
        %2377 = vmatmul.f32.gmra.mxu0 %v2344
        %v2378 = vpop.f32.mrf.mxu0
        %v2379 = vadd.f32 0.0, %v2378
        %2380 = vmatmul.f32.gmra.mxu0 %v2347
        %v2381 = vpop.f32.mrf.mxu0
        %v2382 = vadd.f32 0.0, %v2381
        %2383 = vmatmul.f32.gmra.mxu0 %v2350
        %v2384 = vpop.f32.mrf.mxu0
        %v2385 = vadd.f32 0.0, %v2384
        %2386 = vdwg.mxu0
        %2387 = vmatpush.msra.mxu0 0.0
        %2388 = vmatpush.msra.mxu0 0.0
        %2389 = vmatpush.msra.mxu0 0.0
        %2390 = vmatpush.msra.mxu0 0.0
        %2391 = vmatpush.msra.mxu0 0.0
        %2392 = vmatpush.msra.mxu0 0.0
        %2393 = vmatpush.msra.mxu0 0.0
        %2394 = vmatpush.msra.mxu0 0.0
        %2395 = vmatpush.msra.mxu0 0.0
        %2396 = vmatpush.msra.mxu0 0.0
        %2397 = vmatpush.msra.mxu0 0.0
        %2398 = vmatpush.msra.mxu0 0.0
        %2399 = vmatpush.msra.mxu0 %v1472
        %2400 = vmatpush.msra.mxu0 %v1440
        %2401 = vmatpush.msra.mxu0 %v1408
        %2402 = vmatpush.msra.mxu0 %v1376
        %2403 = vmatmul.f32.gmra.mxu0 %v2335
        %v2404 = vpop.f32.mrf.mxu0
        %v2405 = vadd.f32 0.0, %v2404
        %2406 = vmatmul.f32.gmra.mxu0 %v2338
        %v2407 = vpop.f32.mrf.mxu0
        %v2408 = vadd.f32 0.0, %v2407
        %2409 = vmatmul.f32.gmra.mxu0 %v2341
        %v2410 = vpop.f32.mrf.mxu0
        %v2411 = vadd.f32 0.0, %v2410
        %2412 = vmatmul.f32.gmra.mxu0 %v2344
        %v2413 = vpop.f32.mrf.mxu0
        %v2414 = vadd.f32 0.0, %v2413
        %2415 = vmatmul.f32.gmra.mxu0 %v2347
        %v2416 = vpop.f32.mrf.mxu0
        %v2417 = vadd.f32 0.0, %v2416
        %2418 = vmatmul.f32.gmra.mxu0 %v2350
        %v2419 = vpop.f32.mrf.mxu0
        %v2420 = vadd.f32 0.0, %v2419
        %2421 = vdwg.mxu0
        %2422 = vmatpush.msra.mxu0 0.0
        %2423 = vmatpush.msra.mxu0 0.0
        %2424 = vmatpush.msra.mxu0 0.0
        %2425 = vmatpush.msra.mxu0 0.0
        %2426 = vmatpush.msra.mxu0 0.0
        %2427 = vmatpush.msra.mxu0 0.0
        %2428 = vmatpush.msra.mxu0 0.0
        %2429 = vmatpush.msra.mxu0 0.0
        %2430 = vmatpush.msra.mxu0 0.0
        %2431 = vmatpush.msra.mxu0 0.0
        %2432 = vmatpush.msra.mxu0 0.0
        %2433 = vmatpush.msra.mxu0 0.0
        %2434 = vmatpush.msra.mxu0 %v1473
        %2435 = vmatpush.msra.mxu0 %v1441
        %2436 = vmatpush.msra.mxu0 %v1409
        %2437 = vmatpush.msra.mxu0 %v1377
        %2438 = vmatmul.f32.gmra.mxu0 %v2335
        %v2439 = vpop.f32.mrf.mxu0
        %v2440 = vadd.f32 0.0, %v2439
        %2441 = vmatmul.f32.gmra.mxu0 %v2338
        %v2442 = vpop.f32.mrf.mxu0
        %v2443 = vadd.f32 0.0, %v2442
        %2444 = vmatmul.f32.gmra.mxu0 %v2341
        %v2445 = vpop.f32.mrf.mxu0
        %v2446 = vadd.f32 0.0, %v2445
        %2447 = vmatmul.f32.gmra.mxu0 %v2344
        %v2448 = vpop.f32.mrf.mxu0
        %v2449 = vadd.f32 0.0, %v2448
        %2450 = vmatmul.f32.gmra.mxu0 %v2347
        %v2451 = vpop.f32.mrf.mxu0
        %v2452 = vadd.f32 0.0, %v2451
        %2453 = vmatmul.f32.gmra.mxu0 %v2350
        %v2454 = vpop.f32.mrf.mxu0
        %v2455 = vadd.f32 0.0, %v2454
        %2456 = vdwg.mxu0
        %2457 = vmatpush.msra.mxu0 0.0
        %2458 = vmatpush.msra.mxu0 0.0
        %2459 = vmatpush.msra.mxu0 0.0
        %2460 = vmatpush.msra.mxu0 0.0
        %2461 = vmatpush.msra.mxu0 0.0
        %2462 = vmatpush.msra.mxu0 0.0
        %2463 = vmatpush.msra.mxu0 0.0
        %2464 = vmatpush.msra.mxu0 0.0
        %2465 = vmatpush.msra.mxu0 0.0
        %2466 = vmatpush.msra.mxu0 0.0
        %2467 = vmatpush.msra.mxu0 0.0
        %2468 = vmatpush.msra.mxu0 0.0
        %2469 = vmatpush.msra.mxu0 %v1474
        %2470 = vmatpush.msra.mxu0 %v1442
        %2471 = vmatpush.msra.mxu0 %v1410
        %2472 = vmatpush.msra.mxu0 %v1378
        %2473 = vmatmul.f32.gmra.mxu0 %v2335
        %v2474 = vpop.f32.mrf.mxu0
        %v2475 = vadd.f32 0.0, %v2474
        %2476 = vmatmul.f32.gmra.mxu0 %v2338
        %v2477 = vpop.f32.mrf.mxu0
        %v2478 = vadd.f32 0.0, %v2477
        %2479 = vmatmul.f32.gmra.mxu0 %v2341
        %v2480 = vpop.f32.mrf.mxu0
        %v2481 = vadd.f32 0.0, %v2480
        %2482 = vmatmul.f32.gmra.mxu0 %v2344
        %v2483 = vpop.f32.mrf.mxu0
        %v2484 = vadd.f32 0.0, %v2483
        %2485 = vmatmul.f32.gmra.mxu0 %v2347
        %v2486 = vpop.f32.mrf.mxu0
        %v2487 = vadd.f32 0.0, %v2486
        %2488 = vmatmul.f32.gmra.mxu0 %v2350
        %v2489 = vpop.f32.mrf.mxu0
        %v2490 = vadd.f32 0.0, %v2489
        %2491 = vdwg.mxu0
        %2492 = vmatpush.msra.mxu0 0.0
        %2493 = vmatpush.msra.mxu0 0.0
        %2494 = vmatpush.msra.mxu0 0.0
        %2495 = vmatpush.msra.mxu0 0.0
        %2496 = vmatpush.msra.mxu0 0.0
        %2497 = vmatpush.msra.mxu0 0.0
        %2498 = vmatpush.msra.mxu0 0.0
        %2499 = vmatpush.msra.mxu0 0.0
        %2500 = vmatpush.msra.mxu0 0.0
        %2501 = vmatpush.msra.mxu0 0.0
        %2502 = vmatpush.msra.mxu0 0.0
        %2503 = vmatpush.msra.mxu0 0.0
        %2504 = vmatpush.msra.mxu0 %v1475
        %2505 = vmatpush.msra.mxu0 %v1443
        %2506 = vmatpush.msra.mxu0 %v1411
        %2507 = vmatpush.msra.mxu0 %v1379
        %2508 = vmatmul.f32.gmra.mxu0 %v2335
        %v2509 = vpop.f32.mrf.mxu0
        %v2510 = vadd.f32 0.0, %v2509
        %2511 = vmatmul.f32.gmra.mxu0 %v2338
        %v2512 = vpop.f32.mrf.mxu0
        %v2513 = vadd.f32 0.0, %v2512
        %2514 = vmatmul.f32.gmra.mxu0 %v2341
        %v2515 = vpop.f32.mrf.mxu0
        %v2516 = vadd.f32 0.0, %v2515
        %2517 = vmatmul.f32.gmra.mxu0 %v2344
        %v2518 = vpop.f32.mrf.mxu0
        %v2519 = vadd.f32 0.0, %v2518
        %2520 = vmatmul.f32.gmra.mxu0 %v2347
        %v2521 = vpop.f32.mrf.mxu0
        %v2522 = vadd.f32 0.0, %v2521
        %2523 = vmatmul.f32.gmra.mxu0 %v2350
        %v2524 = vpop.f32.mrf.mxu0
        %v2525 = vadd.f32 0.0, %v2524
        %2526 = vdwg.mxu0
        %2527 = vmatpush.msra.mxu0 0.0
        %2528 = vmatpush.msra.mxu0 0.0
        %2529 = vmatpush.msra.mxu0 0.0
        %2530 = vmatpush.msra.mxu0 0.0
        %2531 = vmatpush.msra.mxu0 0.0
        %2532 = vmatpush.msra.mxu0 0.0
        %2533 = vmatpush.msra.mxu0 0.0
        %2534 = vmatpush.msra.mxu0 0.0
        %2535 = vmatpush.msra.mxu0 0.0
        %2536 = vmatpush.msra.mxu0 0.0
        %2537 = vmatpush.msra.mxu0 0.0
        %2538 = vmatpush.msra.mxu0 0.0
        %2539 = vmatpush.msra.mxu0 %v1476
        %2540 = vmatpush.msra.mxu0 %v1444
        %2541 = vmatpush.msra.mxu0 %v1412
        %2542 = vmatpush.msra.mxu0 %v1380
        %2543 = vmatmul.f32.gmra.mxu0 %v2335
        %v2544 = vpop.f32.mrf.mxu0
        %v2545 = vadd.f32 0.0, %v2544
        %2546 = vmatmul.f32.gmra.mxu0 %v2338
        %v2547 = vpop.f32.mrf.mxu0
        %v2548 = vadd.f32 0.0, %v2547
        %2549 = vmatmul.f32.gmra.mxu0 %v2341
        %v2550 = vpop.f32.mrf.mxu0
        %v2551 = vadd.f32 0.0, %v2550
        %2552 = vmatmul.f32.gmra.mxu0 %v2344
        %v2553 = vpop.f32.mrf.mxu0
        %v2554 = vadd.f32 0.0, %v2553
        %2555 = vmatmul.f32.gmra.mxu0 %v2347
        %v2556 = vpop.f32.mrf.mxu0
        %v2557 = vadd.f32 0.0, %v2556
        %2558 = vmatmul.f32.gmra.mxu0 %v2350
        %v2559 = vpop.f32.mrf.mxu0
        %v2560 = vadd.f32 0.0, %v2559
        %2561 = vdwg.mxu0
        %2562 = vmatpush.msra.mxu0 0.0
        %2563 = vmatpush.msra.mxu0 0.0
        %2564 = vmatpush.msra.mxu0 0.0
        %2565 = vmatpush.msra.mxu0 0.0
        %2566 = vmatpush.msra.mxu0 0.0
        %2567 = vmatpush.msra.mxu0 0.0
        %2568 = vmatpush.msra.mxu0 0.0
        %2569 = vmatpush.msra.mxu0 0.0
        %2570 = vmatpush.msra.mxu0 0.0
        %2571 = vmatpush.msra.mxu0 0.0
        %2572 = vmatpush.msra.mxu0 0.0
        %2573 = vmatpush.msra.mxu0 0.0
        %2574 = vmatpush.msra.mxu0 %v1477
        %2575 = vmatpush.msra.mxu0 %v1445
        %2576 = vmatpush.msra.mxu0 %v1413
        %2577 = vmatpush.msra.mxu0 %v1381
        %2578 = vmatmul.f32.gmra.mxu0 %v2335
        %v2579 = vpop.f32.mrf.mxu0
        %v2580 = vadd.f32 0.0, %v2579
        %2581 = vmatmul.f32.gmra.mxu0 %v2338
        %v2582 = vpop.f32.mrf.mxu0
        %v2583 = vadd.f32 0.0, %v2582
        %2584 = vmatmul.f32.gmra.mxu0 %v2341
        %v2585 = vpop.f32.mrf.mxu0
        %v2586 = vadd.f32 0.0, %v2585
        %2587 = vmatmul.f32.gmra.mxu0 %v2344
        %v2588 = vpop.f32.mrf.mxu0
        %v2589 = vadd.f32 0.0, %v2588
        %2590 = vmatmul.f32.gmra.mxu0 %v2347
        %v2591 = vpop.f32.mrf.mxu0
        %v2592 = vadd.f32 0.0, %v2591
        %2593 = vmatmul.f32.gmra.mxu0 %v2350
        %v2594 = vpop.f32.mrf.mxu0
        %v2595 = vadd.f32 0.0, %v2594
        %2596 = vdwg.mxu0
        %2597 = vmatpush.msra.mxu0 0.0
        %2598 = vmatpush.msra.mxu0 0.0
        %2599 = vmatpush.msra.mxu0 0.0
        %2600 = vmatpush.msra.mxu0 0.0
        %2601 = vmatpush.msra.mxu0 0.0
        %2602 = vmatpush.msra.mxu0 0.0
        %2603 = vmatpush.msra.mxu0 0.0
        %2604 = vmatpush.msra.mxu0 0.0
        %2605 = vmatpush.msra.mxu0 0.0
        %2606 = vmatpush.msra.mxu0 0.0
        %2607 = vmatpush.msra.mxu0 0.0
        %2608 = vmatpush.msra.mxu0 0.0
        %2609 = vmatpush.msra.mxu0 %v1478
        %2610 = vmatpush.msra.mxu0 %v1446
        %2611 = vmatpush.msra.mxu0 %v1414
        %2612 = vmatpush.msra.mxu0 %v1382
        %2613 = vmatmul.f32.gmra.mxu0 %v2335
        %v2614 = vpop.f32.mrf.mxu0
        %v2615 = vadd.f32 0.0, %v2614
        %2616 = vmatmul.f32.gmra.mxu0 %v2338
        %v2617 = vpop.f32.mrf.mxu0
        %v2618 = vadd.f32 0.0, %v2617
        %2619 = vmatmul.f32.gmra.mxu0 %v2341
        %v2620 = vpop.f32.mrf.mxu0
        %v2621 = vadd.f32 0.0, %v2620
        %2622 = vmatmul.f32.gmra.mxu0 %v2344
        %v2623 = vpop.f32.mrf.mxu0
        %v2624 = vadd.f32 0.0, %v2623
        %2625 = vmatmul.f32.gmra.mxu0 %v2347
        %v2626 = vpop.f32.mrf.mxu0
        %v2627 = vadd.f32 0.0, %v2626
        %2628 = vmatmul.f32.gmra.mxu0 %v2350
        %v2629 = vpop.f32.mrf.mxu0
        %v2630 = vadd.f32 0.0, %v2629
        %2631 = vdwg.mxu0
        %2632 = vmatpush.msra.mxu0 0.0
        %2633 = vmatpush.msra.mxu0 0.0
        %2634 = vmatpush.msra.mxu0 0.0
        %2635 = vmatpush.msra.mxu0 0.0
        %2636 = vmatpush.msra.mxu0 0.0
        %2637 = vmatpush.msra.mxu0 0.0
        %2638 = vmatpush.msra.mxu0 0.0
        %2639 = vmatpush.msra.mxu0 0.0
        %2640 = vmatpush.msra.mxu0 0.0
        %2641 = vmatpush.msra.mxu0 0.0
        %2642 = vmatpush.msra.mxu0 0.0
        %2643 = vmatpush.msra.mxu0 0.0
        %2644 = vmatpush.msra.mxu0 %v1479
        %2645 = vmatpush.msra.mxu0 %v1447
        %2646 = vmatpush.msra.mxu0 %v1415
        %2647 = vmatpush.msra.mxu0 %v1383
        %2648 = vmatmul.f32.gmra.mxu0 %v2335
        %v2649 = vpop.f32.mrf.mxu0
        %v2650 = vadd.f32 0.0, %v2649
        %2651 = vmatmul.f32.gmra.mxu0 %v2338
        %v2652 = vpop.f32.mrf.mxu0
        %v2653 = vadd.f32 0.0, %v2652
        %2654 = vmatmul.f32.gmra.mxu0 %v2341
        %v2655 = vpop.f32.mrf.mxu0
        %v2656 = vadd.f32 0.0, %v2655
        %2657 = vmatmul.f32.gmra.mxu0 %v2344
        %v2658 = vpop.f32.mrf.mxu0
        %v2659 = vadd.f32 0.0, %v2658
        %2660 = vmatmul.f32.gmra.mxu0 %v2347
        %v2661 = vpop.f32.mrf.mxu0
        %v2662 = vadd.f32 0.0, %v2661
        %2663 = vmatmul.f32.gmra.mxu0 %v2350
        %v2664 = vpop.f32.mrf.mxu0
        %v2665 = vadd.f32 0.0, %v2664
        %2666 = vdwg.mxu0
        %2667 = vmatpush.msra.mxu0 0.0
        %2668 = vmatpush.msra.mxu0 0.0
        %2669 = vmatpush.msra.mxu0 0.0
        %2670 = vmatpush.msra.mxu0 0.0
        %2671 = vmatpush.msra.mxu0 0.0
        %2672 = vmatpush.msra.mxu0 0.0
        %2673 = vmatpush.msra.mxu0 0.0
        %2674 = vmatpush.msra.mxu0 0.0
        %2675 = vmatpush.msra.mxu0 0.0
        %2676 = vmatpush.msra.mxu0 0.0
        %2677 = vmatpush.msra.mxu0 0.0
        %2678 = vmatpush.msra.mxu0 0.0
        %2679 = vmatpush.msra.mxu0 %v1480
        %2680 = vmatpush.msra.mxu0 %v1448
        %2681 = vmatpush.msra.mxu0 %v1416
        %2682 = vmatpush.msra.mxu0 %v1384
        %2683 = vmatmul.f32.gmra.mxu0 %v2335
        %v2684 = vpop.f32.mrf.mxu0
        %v2685 = vadd.f32 0.0, %v2684
        %2686 = vmatmul.f32.gmra.mxu0 %v2338
        %v2687 = vpop.f32.mrf.mxu0
        %v2688 = vadd.f32 0.0, %v2687
        %2689 = vmatmul.f32.gmra.mxu0 %v2341
        %v2690 = vpop.f32.mrf.mxu0
        %v2691 = vadd.f32 0.0, %v2690
        %2692 = vmatmul.f32.gmra.mxu0 %v2344
        %v2693 = vpop.f32.mrf.mxu0
        %v2694 = vadd.f32 0.0, %v2693
        %2695 = vmatmul.f32.gmra.mxu0 %v2347
        %v2696 = vpop.f32.mrf.mxu0
        %v2697 = vadd.f32 0.0, %v2696
        %2698 = vmatmul.f32.gmra.mxu0 %v2350
        %v2699 = vpop.f32.mrf.mxu0
        %v2700 = vadd.f32 0.0, %v2699
        %2701 = vdwg.mxu0
        %2702 = vmatpush.msra.mxu0 0.0
        %2703 = vmatpush.msra.mxu0 0.0
        %2704 = vmatpush.msra.mxu0 0.0
        %2705 = vmatpush.msra.mxu0 0.0
        %2706 = vmatpush.msra.mxu0 0.0
        %2707 = vmatpush.msra.mxu0 0.0
        %2708 = vmatpush.msra.mxu0 0.0
        %2709 = vmatpush.msra.mxu0 0.0
        %2710 = vmatpush.msra.mxu0 0.0
        %2711 = vmatpush.msra.mxu0 0.0
        %2712 = vmatpush.msra.mxu0 0.0
        %2713 = vmatpush.msra.mxu0 0.0
        %2714 = vmatpush.msra.mxu0 %v1481
        %2715 = vmatpush.msra.mxu0 %v1449
        %2716 = vmatpush.msra.mxu0 %v1417
        %2717 = vmatpush.msra.mxu0 %v1385
        %2718 = vmatmul.f32.gmra.mxu0 %v2335
        %v2719 = vpop.f32.mrf.mxu0
        %v2720 = vadd.f32 0.0, %v2719
        %2721 = vmatmul.f32.gmra.mxu0 %v2338
        %v2722 = vpop.f32.mrf.mxu0
        %v2723 = vadd.f32 0.0, %v2722
        %2724 = vmatmul.f32.gmra.mxu0 %v2341
        %v2725 = vpop.f32.mrf.mxu0
        %v2726 = vadd.f32 0.0, %v2725
        %2727 = vmatmul.f32.gmra.mxu0 %v2344
        %v2728 = vpop.f32.mrf.mxu0
        %v2729 = vadd.f32 0.0, %v2728
        %2730 = vmatmul.f32.gmra.mxu0 %v2347
        %v2731 = vpop.f32.mrf.mxu0
        %v2732 = vadd.f32 0.0, %v2731
        %2733 = vmatmul.f32.gmra.mxu0 %v2350
        %v2734 = vpop.f32.mrf.mxu0
        %v2735 = vadd.f32 0.0, %v2734
        %2736 = vdwg.mxu0
        %2737 = vmatpush.msra.mxu0 0.0
        %2738 = vmatpush.msra.mxu0 0.0
        %2739 = vmatpush.msra.mxu0 0.0
        %2740 = vmatpush.msra.mxu0 0.0
        %2741 = vmatpush.msra.mxu0 0.0
        %2742 = vmatpush.msra.mxu0 0.0
        %2743 = vmatpush.msra.mxu0 0.0
        %2744 = vmatpush.msra.mxu0 0.0
        %2745 = vmatpush.msra.mxu0 0.0
        %2746 = vmatpush.msra.mxu0 0.0
        %2747 = vmatpush.msra.mxu0 0.0
        %2748 = vmatpush.msra.mxu0 0.0
        %2749 = vmatpush.msra.mxu0 %v1482
        %2750 = vmatpush.msra.mxu0 %v1450
        %2751 = vmatpush.msra.mxu0 %v1418
        %2752 = vmatpush.msra.mxu0 %v1386
        %2753 = vmatmul.f32.gmra.mxu0 %v2335
        %v2754 = vpop.f32.mrf.mxu0
        %v2755 = vadd.f32 0.0, %v2754
        %2756 = vmatmul.f32.gmra.mxu0 %v2338
        %v2757 = vpop.f32.mrf.mxu0
        %v2758 = vadd.f32 0.0, %v2757
        %2759 = vmatmul.f32.gmra.mxu0 %v2341
        %v2760 = vpop.f32.mrf.mxu0
        %v2761 = vadd.f32 0.0, %v2760
        %2762 = vmatmul.f32.gmra.mxu0 %v2344
        %v2763 = vpop.f32.mrf.mxu0
        %v2764 = vadd.f32 0.0, %v2763
        %2765 = vmatmul.f32.gmra.mxu0 %v2347
        %v2766 = vpop.f32.mrf.mxu0
        %v2767 = vadd.f32 0.0, %v2766
        %2768 = vmatmul.f32.gmra.mxu0 %v2350
        %v2769 = vpop.f32.mrf.mxu0
        %v2770 = vadd.f32 0.0, %v2769
        %2771 = vdwg.mxu0
        %2772 = vmatpush.msra.mxu0 0.0
        %2773 = vmatpush.msra.mxu0 0.0
        %2774 = vmatpush.msra.mxu0 0.0
        %2775 = vmatpush.msra.mxu0 0.0
        %2776 = vmatpush.msra.mxu0 0.0
        %2777 = vmatpush.msra.mxu0 0.0
        %2778 = vmatpush.msra.mxu0 0.0
        %2779 = vmatpush.msra.mxu0 0.0
        %2780 = vmatpush.msra.mxu0 0.0
        %2781 = vmatpush.msra.mxu0 0.0
        %2782 = vmatpush.msra.mxu0 0.0
        %2783 = vmatpush.msra.mxu0 0.0
        %2784 = vmatpush.msra.mxu0 %v1483
        %2785 = vmatpush.msra.mxu0 %v1451
        %2786 = vmatpush.msra.mxu0 %v1419
        %2787 = vmatpush.msra.mxu0 %v1387
        %2788 = vmatmul.f32.gmra.mxu0 %v2335
        %v2789 = vpop.f32.mrf.mxu0
        %v2790 = vadd.f32 0.0, %v2789
        %2791 = vmatmul.f32.gmra.mxu0 %v2338
        %v2792 = vpop.f32.mrf.mxu0
        %v2793 = vadd.f32 0.0, %v2792
        %2794 = vmatmul.f32.gmra.mxu0 %v2341
        %v2795 = vpop.f32.mrf.mxu0
        %v2796 = vadd.f32 0.0, %v2795
        %2797 = vmatmul.f32.gmra.mxu0 %v2344
        %v2798 = vpop.f32.mrf.mxu0
        %v2799 = vadd.f32 0.0, %v2798
        %2800 = vmatmul.f32.gmra.mxu0 %v2347
        %v2801 = vpop.f32.mrf.mxu0
        %v2802 = vadd.f32 0.0, %v2801
        %2803 = vmatmul.f32.gmra.mxu0 %v2350
        %v2804 = vpop.f32.mrf.mxu0
        %v2805 = vadd.f32 0.0, %v2804
        %2806 = vdwg.mxu0
        %2807 = vmatpush.msra.mxu0 0.0
        %2808 = vmatpush.msra.mxu0 0.0
        %2809 = vmatpush.msra.mxu0 0.0
        %2810 = vmatpush.msra.mxu0 0.0
        %2811 = vmatpush.msra.mxu0 0.0
        %2812 = vmatpush.msra.mxu0 0.0
        %2813 = vmatpush.msra.mxu0 0.0
        %2814 = vmatpush.msra.mxu0 0.0
        %2815 = vmatpush.msra.mxu0 0.0
        %2816 = vmatpush.msra.mxu0 0.0
        %2817 = vmatpush.msra.mxu0 0.0
        %2818 = vmatpush.msra.mxu0 0.0
        %2819 = vmatpush.msra.mxu0 %v1484
        %2820 = vmatpush.msra.mxu0 %v1452
        %2821 = vmatpush.msra.mxu0 %v1420
        %2822 = vmatpush.msra.mxu0 %v1388
        %2823 = vmatmul.f32.gmra.mxu0 %v2335
        %v2824 = vpop.f32.mrf.mxu0
        %v2825 = vadd.f32 0.0, %v2824
        %2826 = vmatmul.f32.gmra.mxu0 %v2338
        %v2827 = vpop.f32.mrf.mxu0
        %v2828 = vadd.f32 0.0, %v2827
        %2829 = vmatmul.f32.gmra.mxu0 %v2341
        %v2830 = vpop.f32.mrf.mxu0
        %v2831 = vadd.f32 0.0, %v2830
        %2832 = vmatmul.f32.gmra.mxu0 %v2344
        %v2833 = vpop.f32.mrf.mxu0
        %v2834 = vadd.f32 0.0, %v2833
        %2835 = vmatmul.f32.gmra.mxu0 %v2347
        %v2836 = vpop.f32.mrf.mxu0
        %v2837 = vadd.f32 0.0, %v2836
        %2838 = vmatmul.f32.gmra.mxu0 %v2350
        %v2839 = vpop.f32.mrf.mxu0
        %v2840 = vadd.f32 0.0, %v2839
        %2841 = vdwg.mxu0
        %2842 = vmatpush.msra.mxu0 0.0
        %2843 = vmatpush.msra.mxu0 0.0
        %2844 = vmatpush.msra.mxu0 0.0
        %2845 = vmatpush.msra.mxu0 0.0
        %2846 = vmatpush.msra.mxu0 0.0
        %2847 = vmatpush.msra.mxu0 0.0
        %2848 = vmatpush.msra.mxu0 0.0
        %2849 = vmatpush.msra.mxu0 0.0
        %2850 = vmatpush.msra.mxu0 0.0
        %2851 = vmatpush.msra.mxu0 0.0
        %2852 = vmatpush.msra.mxu0 0.0
        %2853 = vmatpush.msra.mxu0 0.0
        %2854 = vmatpush.msra.mxu0 %v1485
        %2855 = vmatpush.msra.mxu0 %v1453
        %2856 = vmatpush.msra.mxu0 %v1421
        %2857 = vmatpush.msra.mxu0 %v1389
        %2858 = vmatmul.f32.gmra.mxu0 %v2335
        %v2859 = vpop.f32.mrf.mxu0
        %v2860 = vadd.f32 0.0, %v2859
        %2861 = vmatmul.f32.gmra.mxu0 %v2338
        %v2862 = vpop.f32.mrf.mxu0
        %v2863 = vadd.f32 0.0, %v2862
        %2864 = vmatmul.f32.gmra.mxu0 %v2341
        %v2865 = vpop.f32.mrf.mxu0
        %v2866 = vadd.f32 0.0, %v2865
        %2867 = vmatmul.f32.gmra.mxu0 %v2344
        %v2868 = vpop.f32.mrf.mxu0
        %v2869 = vadd.f32 0.0, %v2868
        %2870 = vmatmul.f32.gmra.mxu0 %v2347
        %v2871 = vpop.f32.mrf.mxu0
        %v2872 = vadd.f32 0.0, %v2871
        %2873 = vmatmul.f32.gmra.mxu0 %v2350
        %v2874 = vpop.f32.mrf.mxu0
        %v2875 = vadd.f32 0.0, %v2874
        %2876 = vdwg.mxu0
        %2877 = vmatpush.msra.mxu0 0.0
        %2878 = vmatpush.msra.mxu0 0.0
        %2879 = vmatpush.msra.mxu0 0.0
        %2880 = vmatpush.msra.mxu0 0.0
        %2881 = vmatpush.msra.mxu0 0.0
        %2882 = vmatpush.msra.mxu0 0.0
        %2883 = vmatpush.msra.mxu0 0.0
        %2884 = vmatpush.msra.mxu0 0.0
        %2885 = vmatpush.msra.mxu0 0.0
        %2886 = vmatpush.msra.mxu0 0.0
        %2887 = vmatpush.msra.mxu0 0.0
        %2888 = vmatpush.msra.mxu0 0.0
        %2889 = vmatpush.msra.mxu0 %v1486
        %2890 = vmatpush.msra.mxu0 %v1454
        %2891 = vmatpush.msra.mxu0 %v1422
        %2892 = vmatpush.msra.mxu0 %v1390
        %2893 = vmatmul.f32.gmra.mxu0 %v2335
        %v2894 = vpop.f32.mrf.mxu0
        %v2895 = vadd.f32 0.0, %v2894
        %2896 = vmatmul.f32.gmra.mxu0 %v2338
        %v2897 = vpop.f32.mrf.mxu0
        %v2898 = vadd.f32 0.0, %v2897
        %2899 = vmatmul.f32.gmra.mxu0 %v2341
        %v2900 = vpop.f32.mrf.mxu0
        %v2901 = vadd.f32 0.0, %v2900
        %2902 = vmatmul.f32.gmra.mxu0 %v2344
        %v2903 = vpop.f32.mrf.mxu0
        %v2904 = vadd.f32 0.0, %v2903
        %2905 = vmatmul.f32.gmra.mxu0 %v2347
        %v2906 = vpop.f32.mrf.mxu0
        %v2907 = vadd.f32 0.0, %v2906
        %2908 = vmatmul.f32.gmra.mxu0 %v2350
        %v2909 = vpop.f32.mrf.mxu0
        %v2910 = vadd.f32 0.0, %v2909
        %2911 = vdwg.mxu0
        %2912 = vmatpush.msra.mxu0 0.0
        %2913 = vmatpush.msra.mxu0 0.0
        %2914 = vmatpush.msra.mxu0 0.0
        %2915 = vmatpush.msra.mxu0 0.0
        %2916 = vmatpush.msra.mxu0 0.0
        %2917 = vmatpush.msra.mxu0 0.0
        %2918 = vmatpush.msra.mxu0 0.0
        %2919 = vmatpush.msra.mxu0 0.0
        %2920 = vmatpush.msra.mxu0 0.0
        %2921 = vmatpush.msra.mxu0 0.0
        %2922 = vmatpush.msra.mxu0 0.0
        %2923 = vmatpush.msra.mxu0 0.0
        %2924 = vmatpush.msra.mxu0 %v1487
        %2925 = vmatpush.msra.mxu0 %v1455
        %2926 = vmatpush.msra.mxu0 %v1423
        %2927 = vmatpush.msra.mxu0 %v1391
        %2928 = vmatmul.f32.gmra.mxu0 %v2335
        %v2929 = vpop.f32.mrf.mxu0
        %v2930 = vadd.f32 0.0, %v2929
        %2931 = vmatmul.f32.gmra.mxu0 %v2338
        %v2932 = vpop.f32.mrf.mxu0
        %v2933 = vadd.f32 0.0, %v2932
        %2934 = vmatmul.f32.gmra.mxu0 %v2341
        %v2935 = vpop.f32.mrf.mxu0
        %v2936 = vadd.f32 0.0, %v2935
        %2937 = vmatmul.f32.gmra.mxu0 %v2344
        %v2938 = vpop.f32.mrf.mxu0
        %v2939 = vadd.f32 0.0, %v2938
        %2940 = vmatmul.f32.gmra.mxu0 %v2347
        %v2941 = vpop.f32.mrf.mxu0
        %v2942 = vadd.f32 0.0, %v2941
        %2943 = vmatmul.f32.gmra.mxu0 %v2350
        %v2944 = vpop.f32.mrf.mxu0
        %v2945 = vadd.f32 0.0, %v2944
        %2946 = vdwg.mxu0
        %2947 = vmatpush.msra.mxu0 0.0
        %2948 = vmatpush.msra.mxu0 0.0
        %2949 = vmatpush.msra.mxu0 0.0
        %2950 = vmatpush.msra.mxu0 0.0
        %2951 = vmatpush.msra.mxu0 0.0
        %2952 = vmatpush.msra.mxu0 0.0
        %2953 = vmatpush.msra.mxu0 0.0
        %2954 = vmatpush.msra.mxu0 0.0
        %2955 = vmatpush.msra.mxu0 0.0
        %2956 = vmatpush.msra.mxu0 0.0
        %2957 = vmatpush.msra.mxu0 0.0
        %2958 = vmatpush.msra.mxu0 0.0
        %2959 = vmatpush.msra.mxu0 %v1488
        %2960 = vmatpush.msra.mxu0 %v1456
        %2961 = vmatpush.msra.mxu0 %v1424
        %2962 = vmatpush.msra.mxu0 %v1392
        %2963 = vmatmul.f32.gmra.mxu0 %v2335
        %v2964 = vpop.f32.mrf.mxu0
        %v2965 = vadd.f32 0.0, %v2964
        %2966 = vmatmul.f32.gmra.mxu0 %v2338
        %v2967 = vpop.f32.mrf.mxu0
        %v2968 = vadd.f32 0.0, %v2967
        %2969 = vmatmul.f32.gmra.mxu0 %v2341
        %v2970 = vpop.f32.mrf.mxu0
        %v2971 = vadd.f32 0.0, %v2970
        %2972 = vmatmul.f32.gmra.mxu0 %v2344
        %v2973 = vpop.f32.mrf.mxu0
        %v2974 = vadd.f32 0.0, %v2973
        %2975 = vmatmul.f32.gmra.mxu0 %v2347
        %v2976 = vpop.f32.mrf.mxu0
        %v2977 = vadd.f32 0.0, %v2976
        %2978 = vmatmul.f32.gmra.mxu0 %v2350
        %v2979 = vpop.f32.mrf.mxu0
        %v2980 = vadd.f32 0.0, %v2979
        %2981 = vdwg.mxu0
        %2982 = vmatpush.msra.mxu0 0.0
        %2983 = vmatpush.msra.mxu0 0.0
        %2984 = vmatpush.msra.mxu0 0.0
        %2985 = vmatpush.msra.mxu0 0.0
        %2986 = vmatpush.msra.mxu0 0.0
        %2987 = vmatpush.msra.mxu0 0.0
        %2988 = vmatpush.msra.mxu0 0.0
        %2989 = vmatpush.msra.mxu0 0.0
        %2990 = vmatpush.msra.mxu0 0.0
        %2991 = vmatpush.msra.mxu0 0.0
        %2992 = vmatpush.msra.mxu0 0.0
        %2993 = vmatpush.msra.mxu0 0.0
        %2994 = vmatpush.msra.mxu0 %v1489
        %2995 = vmatpush.msra.mxu0 %v1457
        %2996 = vmatpush.msra.mxu0 %v1425
        %2997 = vmatpush.msra.mxu0 %v1393
        %2998 = vmatmul.f32.gmra.mxu0 %v2335
        %v2999 = vpop.f32.mrf.mxu0
        %v3000 = vadd.f32 0.0, %v2999
        %3001 = vmatmul.f32.gmra.mxu0 %v2338
        %v3002 = vpop.f32.mrf.mxu0
        %v3003 = vadd.f32 0.0, %v3002
        %3004 = vmatmul.f32.gmra.mxu0 %v2341
        %v3005 = vpop.f32.mrf.mxu0
        %v3006 = vadd.f32 0.0, %v3005
        %3007 = vmatmul.f32.gmra.mxu0 %v2344
        %v3008 = vpop.f32.mrf.mxu0
        %v3009 = vadd.f32 0.0, %v3008
        %3010 = vmatmul.f32.gmra.mxu0 %v2347
        %v3011 = vpop.f32.mrf.mxu0
        %v3012 = vadd.f32 0.0, %v3011
        %3013 = vmatmul.f32.gmra.mxu0 %v2350
        %v3014 = vpop.f32.mrf.mxu0
        %v3015 = vadd.f32 0.0, %v3014
        %3016 = vdwg.mxu0
        %3017 = vmatpush.msra.mxu0 0.0
        %3018 = vmatpush.msra.mxu0 0.0
        %3019 = vmatpush.msra.mxu0 0.0
        %3020 = vmatpush.msra.mxu0 0.0
        %3021 = vmatpush.msra.mxu0 0.0
        %3022 = vmatpush.msra.mxu0 0.0
        %3023 = vmatpush.msra.mxu0 0.0
        %3024 = vmatpush.msra.mxu0 0.0
        %3025 = vmatpush.msra.mxu0 0.0
        %3026 = vmatpush.msra.mxu0 0.0
        %3027 = vmatpush.msra.mxu0 0.0
        %3028 = vmatpush.msra.mxu0 0.0
        %3029 = vmatpush.msra.mxu0 %v1490
        %3030 = vmatpush.msra.mxu0 %v1458
        %3031 = vmatpush.msra.mxu0 %v1426
        %3032 = vmatpush.msra.mxu0 %v1394
        %3033 = vmatmul.f32.gmra.mxu0 %v2335
        %v3034 = vpop.f32.mrf.mxu0
        %v3035 = vadd.f32 0.0, %v3034
        %3036 = vmatmul.f32.gmra.mxu0 %v2338
        %v3037 = vpop.f32.mrf.mxu0
        %v3038 = vadd.f32 0.0, %v3037
        %3039 = vmatmul.f32.gmra.mxu0 %v2341
        %v3040 = vpop.f32.mrf.mxu0
        %v3041 = vadd.f32 0.0, %v3040
        %3042 = vmatmul.f32.gmra.mxu0 %v2344
        %v3043 = vpop.f32.mrf.mxu0
        %v3044 = vadd.f32 0.0, %v3043
        %3045 = vmatmul.f32.gmra.mxu0 %v2347
        %v3046 = vpop.f32.mrf.mxu0
        %v3047 = vadd.f32 0.0, %v3046
        %3048 = vmatmul.f32.gmra.mxu0 %v2350
        %v3049 = vpop.f32.mrf.mxu0
        %v3050 = vadd.f32 0.0, %v3049
        %3051 = vdwg.mxu0
        %3052 = vmatpush.msra.mxu0 0.0
        %3053 = vmatpush.msra.mxu0 0.0
        %3054 = vmatpush.msra.mxu0 0.0
        %3055 = vmatpush.msra.mxu0 0.0
        %3056 = vmatpush.msra.mxu0 0.0
        %3057 = vmatpush.msra.mxu0 0.0
        %3058 = vmatpush.msra.mxu0 0.0
        %3059 = vmatpush.msra.mxu0 0.0
        %3060 = vmatpush.msra.mxu0 0.0
        %3061 = vmatpush.msra.mxu0 0.0
        %3062 = vmatpush.msra.mxu0 0.0
        %3063 = vmatpush.msra.mxu0 0.0
        %3064 = vmatpush.msra.mxu0 %v1491
        %3065 = vmatpush.msra.mxu0 %v1459
        %3066 = vmatpush.msra.mxu0 %v1427
        %3067 = vmatpush.msra.mxu0 %v1395
        %3068 = vmatmul.f32.gmra.mxu0 %v2335
        %v3069 = vpop.f32.mrf.mxu0
        %v3070 = vadd.f32 0.0, %v3069
        %3071 = vmatmul.f32.gmra.mxu0 %v2338
        %v3072 = vpop.f32.mrf.mxu0
        %v3073 = vadd.f32 0.0, %v3072
        %3074 = vmatmul.f32.gmra.mxu0 %v2341
        %v3075 = vpop.f32.mrf.mxu0
        %v3076 = vadd.f32 0.0, %v3075
        %3077 = vmatmul.f32.gmra.mxu0 %v2344
        %v3078 = vpop.f32.mrf.mxu0
        %v3079 = vadd.f32 0.0, %v3078
        %3080 = vmatmul.f32.gmra.mxu0 %v2347
        %v3081 = vpop.f32.mrf.mxu0
        %v3082 = vadd.f32 0.0, %v3081
        %3083 = vmatmul.f32.gmra.mxu0 %v2350
        %v3084 = vpop.f32.mrf.mxu0
        %v3085 = vadd.f32 0.0, %v3084
        %3086 = vdwg.mxu0
        %3087 = vmatpush.msra.mxu0 0.0
        %3088 = vmatpush.msra.mxu0 0.0
        %3089 = vmatpush.msra.mxu0 0.0
        %3090 = vmatpush.msra.mxu0 0.0
        %3091 = vmatpush.msra.mxu0 0.0
        %3092 = vmatpush.msra.mxu0 0.0
        %3093 = vmatpush.msra.mxu0 0.0
        %3094 = vmatpush.msra.mxu0 0.0
        %3095 = vmatpush.msra.mxu0 0.0
        %3096 = vmatpush.msra.mxu0 0.0
        %3097 = vmatpush.msra.mxu0 0.0
        %3098 = vmatpush.msra.mxu0 0.0
        %3099 = vmatpush.msra.mxu0 %v1492
        %3100 = vmatpush.msra.mxu0 %v1460
        %3101 = vmatpush.msra.mxu0 %v1428
        %3102 = vmatpush.msra.mxu0 %v1396
        %3103 = vmatmul.f32.gmra.mxu0 %v2335
        %v3104 = vpop.f32.mrf.mxu0
        %v3105 = vadd.f32 0.0, %v3104
        %3106 = vmatmul.f32.gmra.mxu0 %v2338
        %v3107 = vpop.f32.mrf.mxu0
        %v3108 = vadd.f32 0.0, %v3107
        %3109 = vmatmul.f32.gmra.mxu0 %v2341
        %v3110 = vpop.f32.mrf.mxu0
        %v3111 = vadd.f32 0.0, %v3110
        %3112 = vmatmul.f32.gmra.mxu0 %v2344
        %v3113 = vpop.f32.mrf.mxu0
        %v3114 = vadd.f32 0.0, %v3113
        %3115 = vmatmul.f32.gmra.mxu0 %v2347
        %v3116 = vpop.f32.mrf.mxu0
        %v3117 = vadd.f32 0.0, %v3116
        %3118 = vmatmul.f32.gmra.mxu0 %v2350
        %v3119 = vpop.f32.mrf.mxu0
        %v3120 = vadd.f32 0.0, %v3119
        %3121 = vdwg.mxu0
        %3122 = vmatpush.msra.mxu0 0.0
        %3123 = vmatpush.msra.mxu0 0.0
        %3124 = vmatpush.msra.mxu0 0.0
        %3125 = vmatpush.msra.mxu0 0.0
        %3126 = vmatpush.msra.mxu0 0.0
        %3127 = vmatpush.msra.mxu0 0.0
        %3128 = vmatpush.msra.mxu0 0.0
        %3129 = vmatpush.msra.mxu0 0.0
        %3130 = vmatpush.msra.mxu0 0.0
        %3131 = vmatpush.msra.mxu0 0.0
        %3132 = vmatpush.msra.mxu0 0.0
        %3133 = vmatpush.msra.mxu0 0.0
        %3134 = vmatpush.msra.mxu0 %v1493
        %3135 = vmatpush.msra.mxu0 %v1461
        %3136 = vmatpush.msra.mxu0 %v1429
        %3137 = vmatpush.msra.mxu0 %v1397
        %3138 = vmatmul.f32.gmra.mxu0 %v2335
        %v3139 = vpop.f32.mrf.mxu0
        %v3140 = vadd.f32 0.0, %v3139
        %3141 = vmatmul.f32.gmra.mxu0 %v2338
        %v3142 = vpop.f32.mrf.mxu0
        %v3143 = vadd.f32 0.0, %v3142
        %3144 = vmatmul.f32.gmra.mxu0 %v2341
        %v3145 = vpop.f32.mrf.mxu0
        %v3146 = vadd.f32 0.0, %v3145
        %3147 = vmatmul.f32.gmra.mxu0 %v2344
        %v3148 = vpop.f32.mrf.mxu0
        %v3149 = vadd.f32 0.0, %v3148
        %3150 = vmatmul.f32.gmra.mxu0 %v2347
        %v3151 = vpop.f32.mrf.mxu0
        %v3152 = vadd.f32 0.0, %v3151
        %3153 = vmatmul.f32.gmra.mxu0 %v2350
        %v3154 = vpop.f32.mrf.mxu0
        %v3155 = vadd.f32 0.0, %v3154
        %3156 = vdwg.mxu0
        %3157 = vmatpush.msra.mxu0 0.0
        %3158 = vmatpush.msra.mxu0 0.0
        %3159 = vmatpush.msra.mxu0 0.0
        %3160 = vmatpush.msra.mxu0 0.0
        %3161 = vmatpush.msra.mxu0 0.0
        %3162 = vmatpush.msra.mxu0 0.0
        %3163 = vmatpush.msra.mxu0 0.0
        %3164 = vmatpush.msra.mxu0 0.0
        %3165 = vmatpush.msra.mxu0 0.0
        %3166 = vmatpush.msra.mxu0 0.0
        %3167 = vmatpush.msra.mxu0 0.0
        %3168 = vmatpush.msra.mxu0 0.0
        %3169 = vmatpush.msra.mxu0 %v1494
        %3170 = vmatpush.msra.mxu0 %v1462
        %3171 = vmatpush.msra.mxu0 %v1430
        %3172 = vmatpush.msra.mxu0 %v1398
        %3173 = vmatmul.f32.gmra.mxu0 %v2335
        %v3174 = vpop.f32.mrf.mxu0
        %v3175 = vadd.f32 0.0, %v3174
        %3176 = vmatmul.f32.gmra.mxu0 %v2338
        %v3177 = vpop.f32.mrf.mxu0
        %v3178 = vadd.f32 0.0, %v3177
        %3179 = vmatmul.f32.gmra.mxu0 %v2341
        %v3180 = vpop.f32.mrf.mxu0
        %v3181 = vadd.f32 0.0, %v3180
        %3182 = vmatmul.f32.gmra.mxu0 %v2344
        %v3183 = vpop.f32.mrf.mxu0
        %v3184 = vadd.f32 0.0, %v3183
        %3185 = vmatmul.f32.gmra.mxu0 %v2347
        %v3186 = vpop.f32.mrf.mxu0
        %v3187 = vadd.f32 0.0, %v3186
        %3188 = vmatmul.f32.gmra.mxu0 %v2350
        %v3189 = vpop.f32.mrf.mxu0
        %v3190 = vadd.f32 0.0, %v3189
        %3191 = vdwg.mxu0
        %3192 = vmatpush.msra.mxu0 0.0
        %3193 = vmatpush.msra.mxu0 0.0
        %3194 = vmatpush.msra.mxu0 0.0
        %3195 = vmatpush.msra.mxu0 0.0
        %3196 = vmatpush.msra.mxu0 0.0
        %3197 = vmatpush.msra.mxu0 0.0
        %3198 = vmatpush.msra.mxu0 0.0
        %3199 = vmatpush.msra.mxu0 0.0
        %3200 = vmatpush.msra.mxu0 0.0
        %3201 = vmatpush.msra.mxu0 0.0
        %3202 = vmatpush.msra.mxu0 0.0
        %3203 = vmatpush.msra.mxu0 0.0
        %3204 = vmatpush.msra.mxu0 %v1495
        %3205 = vmatpush.msra.mxu0 %v1463
        %3206 = vmatpush.msra.mxu0 %v1431
        %3207 = vmatpush.msra.mxu0 %v1399
        %3208 = vmatmul.f32.gmra.mxu0 %v2335
        %v3209 = vpop.f32.mrf.mxu0
        %v3210 = vadd.f32 0.0, %v3209
        %3211 = vmatmul.f32.gmra.mxu0 %v2338
        %v3212 = vpop.f32.mrf.mxu0
        %v3213 = vadd.f32 0.0, %v3212
        %3214 = vmatmul.f32.gmra.mxu0 %v2341
        %v3215 = vpop.f32.mrf.mxu0
        %v3216 = vadd.f32 0.0, %v3215
        %3217 = vmatmul.f32.gmra.mxu0 %v2344
        %v3218 = vpop.f32.mrf.mxu0
        %v3219 = vadd.f32 0.0, %v3218
        %3220 = vmatmul.f32.gmra.mxu0 %v2347
        %v3221 = vpop.f32.mrf.mxu0
        %v3222 = vadd.f32 0.0, %v3221
        %3223 = vmatmul.f32.gmra.mxu0 %v2350
        %v3224 = vpop.f32.mrf.mxu0
        %v3225 = vadd.f32 0.0, %v3224
        %3226 = vdwg.mxu0
        %3227 = vmatpush.msra.mxu0 0.0
        %3228 = vmatpush.msra.mxu0 0.0
        %3229 = vmatpush.msra.mxu0 0.0
        %3230 = vmatpush.msra.mxu0 0.0
        %3231 = vmatpush.msra.mxu0 0.0
        %3232 = vmatpush.msra.mxu0 0.0
        %3233 = vmatpush.msra.mxu0 0.0
        %3234 = vmatpush.msra.mxu0 0.0
        %3235 = vmatpush.msra.mxu0 0.0
        %3236 = vmatpush.msra.mxu0 0.0
        %3237 = vmatpush.msra.mxu0 0.0
        %3238 = vmatpush.msra.mxu0 0.0
        %3239 = vmatpush.msra.mxu0 %v1496
        %3240 = vmatpush.msra.mxu0 %v1464
        %3241 = vmatpush.msra.mxu0 %v1432
        %3242 = vmatpush.msra.mxu0 %v1400
        %3243 = vmatmul.f32.gmra.mxu0 %v2335
        %v3244 = vpop.f32.mrf.mxu0
        %v3245 = vadd.f32 0.0, %v3244
        %3246 = vmatmul.f32.gmra.mxu0 %v2338
        %v3247 = vpop.f32.mrf.mxu0
        %v3248 = vadd.f32 0.0, %v3247
        %3249 = vmatmul.f32.gmra.mxu0 %v2341
        %v3250 = vpop.f32.mrf.mxu0
        %v3251 = vadd.f32 0.0, %v3250
        %3252 = vmatmul.f32.gmra.mxu0 %v2344
        %v3253 = vpop.f32.mrf.mxu0
        %v3254 = vadd.f32 0.0, %v3253
        %3255 = vmatmul.f32.gmra.mxu0 %v2347
        %v3256 = vpop.f32.mrf.mxu0
        %v3257 = vadd.f32 0.0, %v3256
        %3258 = vmatmul.f32.gmra.mxu0 %v2350
        %v3259 = vpop.f32.mrf.mxu0
        %v3260 = vadd.f32 0.0, %v3259
        %3261 = vdwg.mxu0
        %3262 = vmatpush.msra.mxu0 0.0
        %3263 = vmatpush.msra.mxu0 0.0
        %3264 = vmatpush.msra.mxu0 0.0
        %3265 = vmatpush.msra.mxu0 0.0
        %3266 = vmatpush.msra.mxu0 0.0
        %3267 = vmatpush.msra.mxu0 0.0
        %3268 = vmatpush.msra.mxu0 0.0
        %3269 = vmatpush.msra.mxu0 0.0
        %3270 = vmatpush.msra.mxu0 0.0
        %3271 = vmatpush.msra.mxu0 0.0
        %3272 = vmatpush.msra.mxu0 0.0
        %3273 = vmatpush.msra.mxu0 0.0
        %3274 = vmatpush.msra.mxu0 %v1497
        %3275 = vmatpush.msra.mxu0 %v1465
        %3276 = vmatpush.msra.mxu0 %v1433
        %3277 = vmatpush.msra.mxu0 %v1401
        %3278 = vmatmul.f32.gmra.mxu0 %v2335
        %v3279 = vpop.f32.mrf.mxu0
        %v3280 = vadd.f32 0.0, %v3279
        %3281 = vmatmul.f32.gmra.mxu0 %v2338
        %v3282 = vpop.f32.mrf.mxu0
        %v3283 = vadd.f32 0.0, %v3282
        %3284 = vmatmul.f32.gmra.mxu0 %v2341
        %v3285 = vpop.f32.mrf.mxu0
        %v3286 = vadd.f32 0.0, %v3285
        %3287 = vmatmul.f32.gmra.mxu0 %v2344
        %v3288 = vpop.f32.mrf.mxu0
        %v3289 = vadd.f32 0.0, %v3288
        %3290 = vmatmul.f32.gmra.mxu0 %v2347
        %v3291 = vpop.f32.mrf.mxu0
        %v3292 = vadd.f32 0.0, %v3291
        %3293 = vmatmul.f32.gmra.mxu0 %v2350
        %v3294 = vpop.f32.mrf.mxu0
        %v3295 = vadd.f32 0.0, %v3294
        %3296 = vdwg.mxu0
        %3297 = vmatpush.msra.mxu0 0.0
        %3298 = vmatpush.msra.mxu0 0.0
        %3299 = vmatpush.msra.mxu0 0.0
        %3300 = vmatpush.msra.mxu0 0.0
        %3301 = vmatpush.msra.mxu0 0.0
        %3302 = vmatpush.msra.mxu0 0.0
        %3303 = vmatpush.msra.mxu0 0.0
        %3304 = vmatpush.msra.mxu0 0.0
        %3305 = vmatpush.msra.mxu0 0.0
        %3306 = vmatpush.msra.mxu0 0.0
        %3307 = vmatpush.msra.mxu0 0.0
        %3308 = vmatpush.msra.mxu0 0.0
        %3309 = vmatpush.msra.mxu0 %v1498
        %3310 = vmatpush.msra.mxu0 %v1466
        %3311 = vmatpush.msra.mxu0 %v1434
        %3312 = vmatpush.msra.mxu0 %v1402
        %3313 = vmatmul.f32.gmra.mxu0 %v2335
        %v3314 = vpop.f32.mrf.mxu0
        %v3315 = vadd.f32 0.0, %v3314
        %3316 = vmatmul.f32.gmra.mxu0 %v2338
        %v3317 = vpop.f32.mrf.mxu0
        %v3318 = vadd.f32 0.0, %v3317
        %3319 = vmatmul.f32.gmra.mxu0 %v2341
        %v3320 = vpop.f32.mrf.mxu0
        %v3321 = vadd.f32 0.0, %v3320
        %3322 = vmatmul.f32.gmra.mxu0 %v2344
        %v3323 = vpop.f32.mrf.mxu0
        %v3324 = vadd.f32 0.0, %v3323
        %3325 = vmatmul.f32.gmra.mxu0 %v2347
        %v3326 = vpop.f32.mrf.mxu0
        %v3327 = vadd.f32 0.0, %v3326
        %3328 = vmatmul.f32.gmra.mxu0 %v2350
        %v3329 = vpop.f32.mrf.mxu0
        %v3330 = vadd.f32 0.0, %v3329
        %3331 = vdwg.mxu0
        %3332 = vmatpush.msra.mxu0 0.0
        %3333 = vmatpush.msra.mxu0 0.0
        %3334 = vmatpush.msra.mxu0 0.0
        %3335 = vmatpush.msra.mxu0 0.0
        %3336 = vmatpush.msra.mxu0 0.0
        %3337 = vmatpush.msra.mxu0 0.0
        %3338 = vmatpush.msra.mxu0 0.0
        %3339 = vmatpush.msra.mxu0 0.0
        %3340 = vmatpush.msra.mxu0 0.0
        %3341 = vmatpush.msra.mxu0 0.0
        %3342 = vmatpush.msra.mxu0 0.0
        %3343 = vmatpush.msra.mxu0 0.0
        %3344 = vmatpush.msra.mxu0 %v1499
        %3345 = vmatpush.msra.mxu0 %v1467
        %3346 = vmatpush.msra.mxu0 %v1435
        %3347 = vmatpush.msra.mxu0 %v1403
        %3348 = vmatmul.f32.gmra.mxu0 %v2335
        %v3349 = vpop.f32.mrf.mxu0
        %v3350 = vadd.f32 0.0, %v3349
        %3351 = vmatmul.f32.gmra.mxu0 %v2338
        %v3352 = vpop.f32.mrf.mxu0
        %v3353 = vadd.f32 0.0, %v3352
        %3354 = vmatmul.f32.gmra.mxu0 %v2341
        %v3355 = vpop.f32.mrf.mxu0
        %v3356 = vadd.f32 0.0, %v3355
        %3357 = vmatmul.f32.gmra.mxu0 %v2344
        %v3358 = vpop.f32.mrf.mxu0
        %v3359 = vadd.f32 0.0, %v3358
        %3360 = vmatmul.f32.gmra.mxu0 %v2347
        %v3361 = vpop.f32.mrf.mxu0
        %v3362 = vadd.f32 0.0, %v3361
        %3363 = vmatmul.f32.gmra.mxu0 %v2350
        %v3364 = vpop.f32.mrf.mxu0
        %v3365 = vadd.f32 0.0, %v3364
        %3366 = vdwg.mxu0
        %3367 = vmatpush.msra.mxu0 0.0
        %3368 = vmatpush.msra.mxu0 0.0
        %3369 = vmatpush.msra.mxu0 0.0
        %3370 = vmatpush.msra.mxu0 0.0
        %3371 = vmatpush.msra.mxu0 0.0
        %3372 = vmatpush.msra.mxu0 0.0
        %3373 = vmatpush.msra.mxu0 0.0
        %3374 = vmatpush.msra.mxu0 0.0
        %3375 = vmatpush.msra.mxu0 0.0
        %3376 = vmatpush.msra.mxu0 0.0
        %3377 = vmatpush.msra.mxu0 0.0
        %3378 = vmatpush.msra.mxu0 0.0
        %3379 = vmatpush.msra.mxu0 %v1500
        %3380 = vmatpush.msra.mxu0 %v1468
        %3381 = vmatpush.msra.mxu0 %v1436
        %3382 = vmatpush.msra.mxu0 %v1404
        %3383 = vmatmul.f32.gmra.mxu0 %v2335
        %v3384 = vpop.f32.mrf.mxu0
        %v3385 = vadd.f32 0.0, %v3384
        %3386 = vmatmul.f32.gmra.mxu0 %v2338
        %v3387 = vpop.f32.mrf.mxu0
        %v3388 = vadd.f32 0.0, %v3387
        %3389 = vmatmul.f32.gmra.mxu0 %v2341
        %v3390 = vpop.f32.mrf.mxu0
        %v3391 = vadd.f32 0.0, %v3390
        %3392 = vmatmul.f32.gmra.mxu0 %v2344
        %v3393 = vpop.f32.mrf.mxu0
        %v3394 = vadd.f32 0.0, %v3393
        %3395 = vmatmul.f32.gmra.mxu0 %v2347
        %v3396 = vpop.f32.mrf.mxu0
        %v3397 = vadd.f32 0.0, %v3396
        %3398 = vmatmul.f32.gmra.mxu0 %v2350
        %v3399 = vpop.f32.mrf.mxu0
        %v3400 = vadd.f32 0.0, %v3399
        %3401 = vdwg.mxu0
        %3402 = vmatpush.msra.mxu0 0.0
        %3403 = vmatpush.msra.mxu0 0.0
        %3404 = vmatpush.msra.mxu0 0.0
        %3405 = vmatpush.msra.mxu0 0.0
        %3406 = vmatpush.msra.mxu0 0.0
        %3407 = vmatpush.msra.mxu0 0.0
        %3408 = vmatpush.msra.mxu0 0.0
        %3409 = vmatpush.msra.mxu0 0.0
        %3410 = vmatpush.msra.mxu0 0.0
        %3411 = vmatpush.msra.mxu0 0.0
        %3412 = vmatpush.msra.mxu0 0.0
        %3413 = vmatpush.msra.mxu0 0.0
        %3414 = vmatpush.msra.mxu0 %v1501
        %3415 = vmatpush.msra.mxu0 %v1469
        %3416 = vmatpush.msra.mxu0 %v1437
        %3417 = vmatpush.msra.mxu0 %v1405
        %3418 = vmatmul.f32.gmra.mxu0 %v2335
        %v3419 = vpop.f32.mrf.mxu0
        %v3420 = vadd.f32 0.0, %v3419
        %3421 = vmatmul.f32.gmra.mxu0 %v2338
        %v3422 = vpop.f32.mrf.mxu0
        %v3423 = vadd.f32 0.0, %v3422
        %3424 = vmatmul.f32.gmra.mxu0 %v2341
        %v3425 = vpop.f32.mrf.mxu0
        %v3426 = vadd.f32 0.0, %v3425
        %3427 = vmatmul.f32.gmra.mxu0 %v2344
        %v3428 = vpop.f32.mrf.mxu0
        %v3429 = vadd.f32 0.0, %v3428
        %3430 = vmatmul.f32.gmra.mxu0 %v2347
        %v3431 = vpop.f32.mrf.mxu0
        %v3432 = vadd.f32 0.0, %v3431
        %3433 = vmatmul.f32.gmra.mxu0 %v2350
        %v3434 = vpop.f32.mrf.mxu0
        %v3435 = vadd.f32 0.0, %v3434
        %3436 = vdwg.mxu0
        %3437 = vmatpush.msra.mxu0 0.0
        %3438 = vmatpush.msra.mxu0 0.0
        %3439 = vmatpush.msra.mxu0 0.0
        %3440 = vmatpush.msra.mxu0 0.0
        %3441 = vmatpush.msra.mxu0 0.0
        %3442 = vmatpush.msra.mxu0 0.0
        %3443 = vmatpush.msra.mxu0 0.0
        %3444 = vmatpush.msra.mxu0 0.0
        %3445 = vmatpush.msra.mxu0 0.0
        %3446 = vmatpush.msra.mxu0 0.0
        %3447 = vmatpush.msra.mxu0 0.0
        %3448 = vmatpush.msra.mxu0 0.0
        %3449 = vmatpush.msra.mxu0 %v1502
        %3450 = vmatpush.msra.mxu0 %v1470
        %3451 = vmatpush.msra.mxu0 %v1438
        %3452 = vmatpush.msra.mxu0 %v1406
        %3453 = vmatmul.f32.gmra.mxu0 %v2335
        %v3454 = vpop.f32.mrf.mxu0
        %v3455 = vadd.f32 0.0, %v3454
        %3456 = vmatmul.f32.gmra.mxu0 %v2338
        %v3457 = vpop.f32.mrf.mxu0
        %v3458 = vadd.f32 0.0, %v3457
        %3459 = vmatmul.f32.gmra.mxu0 %v2341
        %v3460 = vpop.f32.mrf.mxu0
        %v3461 = vadd.f32 0.0, %v3460
        %3462 = vmatmul.f32.gmra.mxu0 %v2344
        %v3463 = vpop.f32.mrf.mxu0
        %v3464 = vadd.f32 0.0, %v3463
        %3465 = vmatmul.f32.gmra.mxu0 %v2347
        %v3466 = vpop.f32.mrf.mxu0
        %v3467 = vadd.f32 0.0, %v3466
        %3468 = vmatmul.f32.gmra.mxu0 %v2350
        %v3469 = vpop.f32.mrf.mxu0
        %v3470 = vadd.f32 0.0, %v3469
        %3471 = vdwg.mxu0
        %v3472 = vmul.f32 %v2370, %v2263
        %v3473 = vmul.f32 %v2405, %v2264
        %v3474 = vmul.f32 %v2440, %v2265
        %v3475 = vmul.f32 %v2475, %v2266
        %v3476 = vmul.f32 %v2510, %v2267
        %v3477 = vmul.f32 %v2545, %v2268
        %v3478 = vmul.f32 %v2580, %v2269
        %v3479 = vmul.f32 %v2615, %v2270
        %v3480 = vmul.f32 %v2650, %v2271
        %v3481 = vmul.f32 %v2685, %v2272
        %v3482 = vmul.f32 %v2720, %v2273
        %v3483 = vmul.f32 %v2755, %v2274
        %v3484 = vmul.f32 %v2790, %v2275
        %v3485 = vmul.f32 %v2825, %v2276
        %v3486 = vmul.f32 %v2860, %v2277
        %v3487 = vmul.f32 %v2895, %v2278
        %v3488 = vmul.f32 %v2930, %v2279
        %v3489 = vmul.f32 %v2965, %v2280
        %v3490 = vmul.f32 %v3000, %v2281
        %v3491 = vmul.f32 %v3035, %v2282
        %v3492 = vmul.f32 %v3070, %v2283
        %v3493 = vmul.f32 %v3105, %v2284
        %v3494 = vmul.f32 %v3140, %v2285
        %v3495 = vmul.f32 %v3175, %v2286
        %v3496 = vmul.f32 %v3210, %v2287
        %v3497 = vmul.f32 %v3245, %v2288
        %v3498 = vmul.f32 %v3280, %v2289
        %v3499 = vmul.f32 %v3315, %v2290
        %v3500 = vmul.f32 %v3350, %v2291
        %v3501 = vmul.f32 %v3385, %v2292
        %v3502 = vmul.f32 %v3420, %v2293
        %v3503 = vmul.f32 %v3455, %v2294
        %v3504 = vmul.f32 %v2373, %v2295
        %v3505 = vmul.f32 %v2408, %v2296
        %v3506 = vmul.f32 %v2443, %v2297
        %v3507 = vmul.f32 %v2478, %v2298
        %v3508 = vmul.f32 %v2513, %v2299
        %v3509 = vmul.f32 %v2548, %v2300
        %v3510 = vmul.f32 %v2583, %v2301
        %v3511 = vmul.f32 %v2618, %v2302
        %v3512 = vmul.f32 %v2653, %v2303
        %v3513 = vmul.f32 %v2688, %v2304
        %v3514 = vmul.f32 %v2723, %v2305
        %v3515 = vmul.f32 %v2758, %v2306
        %v3516 = vmul.f32 %v2793, %v2307
        %v3517 = vmul.f32 %v2828, %v2308
        %v3518 = vmul.f32 %v2863, %v2309
        %v3519 = vmul.f32 %v2898, %v2310
        %v3520 = vmul.f32 %v2933, %v2311
        %v3521 = vmul.f32 %v2968, %v2312
        %v3522 = vmul.f32 %v3003, %v2313
        %v3523 = vmul.f32 %v3038, %v2314
        %v3524 = vmul.f32 %v3073, %v2315
        %v3525 = vmul.f32 %v3108, %v2316
        %v3526 = vmul.f32 %v3143, %v2317
        %v3527 = vmul.f32 %v3178, %v2318
        %v3528 = vmul.f32 %v3213, %v2319
        %v3529 = vmul.f32 %v3248, %v2320
        %v3530 = vmul.f32 %v3283, %v2321
        %v3531 = vmul.f32 %v3318, %v2322
        %v3532 = vmul.f32 %v3353, %v2323
        %v3533 = vmul.f32 %v3388, %v2324
        %v3534 = vmul.f32 %v3423, %v2325
        %v3535 = vmul.f32 %v3458, %v2326
        %v3536 = vadd.f32 %v3472, %v3504
        %v3537 = vrot.slane %v3536, 4
        %v3538 = vadd.f32 %v3536, %v3537
        %v3539 = vrot.slane %v3538, 2
        %v3540 = vadd.f32 %v3538, %v3539
        %v3541 = vrot.slane %v3540, 1
        %v3542 = vadd.f32 %v3540, %v3541
        %v3543 = vadd.f32 %v3473, %v3505
        %v3544 = vrot.slane %v3543, 4
        %v3545 = vadd.f32 %v3543, %v3544
        %v3546 = vrot.slane %v3545, 2
        %v3547 = vadd.f32 %v3545, %v3546
        %v3548 = vrot.slane %v3547, 1
        %v3549 = vadd.f32 %v3547, %v3548
        %v3550 = vadd.f32 %v3474, %v3506
        %v3551 = vrot.slane %v3550, 4
        %v3552 = vadd.f32 %v3550, %v3551
        %v3553 = vrot.slane %v3552, 2
        %v3554 = vadd.f32 %v3552, %v3553
        %v3555 = vrot.slane %v3554, 1
        %v3556 = vadd.f32 %v3554, %v3555
        %v3557 = vadd.f32 %v3475, %v3507
        %v3558 = vrot.slane %v3557, 4
        %v3559 = vadd.f32 %v3557, %v3558
        %v3560 = vrot.slane %v3559, 2
        %v3561 = vadd.f32 %v3559, %v3560
        %v3562 = vrot.slane %v3561, 1
        %v3563 = vadd.f32 %v3561, %v3562
        %v3564 = vadd.f32 %v3476, %v3508
        %v3565 = vrot.slane %v3564, 4
        %v3566 = vadd.f32 %v3564, %v3565
        %v3567 = vrot.slane %v3566, 2
        %v3568 = vadd.f32 %v3566, %v3567
        %v3569 = vrot.slane %v3568, 1
        %v3570 = vadd.f32 %v3568, %v3569
        %v3571 = vadd.f32 %v3477, %v3509
        %v3572 = vrot.slane %v3571, 4
        %v3573 = vadd.f32 %v3571, %v3572
        %v3574 = vrot.slane %v3573, 2
        %v3575 = vadd.f32 %v3573, %v3574
        %v3576 = vrot.slane %v3575, 1
        %v3577 = vadd.f32 %v3575, %v3576
        %v3578 = vadd.f32 %v3478, %v3510
        %v3579 = vrot.slane %v3578, 4
        %v3580 = vadd.f32 %v3578, %v3579
        %v3581 = vrot.slane %v3580, 2
        %v3582 = vadd.f32 %v3580, %v3581
        %v3583 = vrot.slane %v3582, 1
        %v3584 = vadd.f32 %v3582, %v3583
        %v3585 = vadd.f32 %v3479, %v3511
        %v3586 = vrot.slane %v3585, 4
        %v3587 = vadd.f32 %v3585, %v3586
        %v3588 = vrot.slane %v3587, 2
        %v3589 = vadd.f32 %v3587, %v3588
        %v3590 = vrot.slane %v3589, 1
        %v3591 = vadd.f32 %v3589, %v3590
        %v3592 = vadd.f32 %v3480, %v3512
        %v3593 = vrot.slane %v3592, 4
        %v3594 = vadd.f32 %v3592, %v3593
        %v3595 = vrot.slane %v3594, 2
        %v3596 = vadd.f32 %v3594, %v3595
        %v3597 = vrot.slane %v3596, 1
        %v3598 = vadd.f32 %v3596, %v3597
        %v3599 = vadd.f32 %v3481, %v3513
        %v3600 = vrot.slane %v3599, 4
        %v3601 = vadd.f32 %v3599, %v3600
        %v3602 = vrot.slane %v3601, 2
        %v3603 = vadd.f32 %v3601, %v3602
        %v3604 = vrot.slane %v3603, 1
        %v3605 = vadd.f32 %v3603, %v3604
        %v3606 = vadd.f32 %v3482, %v3514
        %v3607 = vrot.slane %v3606, 4
        %v3608 = vadd.f32 %v3606, %v3607
        %v3609 = vrot.slane %v3608, 2
        %v3610 = vadd.f32 %v3608, %v3609
        %v3611 = vrot.slane %v3610, 1
        %v3612 = vadd.f32 %v3610, %v3611
        %v3613 = vadd.f32 %v3483, %v3515
        %v3614 = vrot.slane %v3613, 4
        %v3615 = vadd.f32 %v3613, %v3614
        %v3616 = vrot.slane %v3615, 2
        %v3617 = vadd.f32 %v3615, %v3616
        %v3618 = vrot.slane %v3617, 1
        %v3619 = vadd.f32 %v3617, %v3618
        %v3620 = vadd.f32 %v3484, %v3516
        %v3621 = vrot.slane %v3620, 4
        %v3622 = vadd.f32 %v3620, %v3621
        %v3623 = vrot.slane %v3622, 2
        %v3624 = vadd.f32 %v3622, %v3623
        %v3625 = vrot.slane %v3624, 1
        %v3626 = vadd.f32 %v3624, %v3625
        %v3627 = vadd.f32 %v3485, %v3517
        %v3628 = vrot.slane %v3627, 4
        %v3629 = vadd.f32 %v3627, %v3628
        %v3630 = vrot.slane %v3629, 2
        %v3631 = vadd.f32 %v3629, %v3630
        %v3632 = vrot.slane %v3631, 1
        %v3633 = vadd.f32 %v3631, %v3632
        %v3634 = vadd.f32 %v3486, %v3518
        %v3635 = vrot.slane %v3634, 4
        %v3636 = vadd.f32 %v3634, %v3635
        %v3637 = vrot.slane %v3636, 2
        %v3638 = vadd.f32 %v3636, %v3637
        %v3639 = vrot.slane %v3638, 1
        %v3640 = vadd.f32 %v3638, %v3639
        %v3641 = vadd.f32 %v3487, %v3519
        %v3642 = vrot.slane %v3641, 4
        %v3643 = vadd.f32 %v3641, %v3642
        %v3644 = vrot.slane %v3643, 2
        %v3645 = vadd.f32 %v3643, %v3644
        %v3646 = vrot.slane %v3645, 1
        %v3647 = vadd.f32 %v3645, %v3646
        %v3648 = vadd.f32 %v3488, %v3520
        %v3649 = vrot.slane %v3648, 4
        %v3650 = vadd.f32 %v3648, %v3649
        %v3651 = vrot.slane %v3650, 2
        %v3652 = vadd.f32 %v3650, %v3651
        %v3653 = vrot.slane %v3652, 1
        %v3654 = vadd.f32 %v3652, %v3653
        %v3655 = vadd.f32 %v3489, %v3521
        %v3656 = vrot.slane %v3655, 4
        %v3657 = vadd.f32 %v3655, %v3656
        %v3658 = vrot.slane %v3657, 2
        %v3659 = vadd.f32 %v3657, %v3658
        %v3660 = vrot.slane %v3659, 1
        %v3661 = vadd.f32 %v3659, %v3660
        %v3662 = vadd.f32 %v3490, %v3522
        %v3663 = vrot.slane %v3662, 4
        %v3664 = vadd.f32 %v3662, %v3663
        %v3665 = vrot.slane %v3664, 2
        %v3666 = vadd.f32 %v3664, %v3665
        %v3667 = vrot.slane %v3666, 1
        %v3668 = vadd.f32 %v3666, %v3667
        %v3669 = vadd.f32 %v3491, %v3523
        %v3670 = vrot.slane %v3669, 4
        %v3671 = vadd.f32 %v3669, %v3670
        %v3672 = vrot.slane %v3671, 2
        %v3673 = vadd.f32 %v3671, %v3672
        %v3674 = vrot.slane %v3673, 1
        %v3675 = vadd.f32 %v3673, %v3674
        %v3676 = vadd.f32 %v3492, %v3524
        %v3677 = vrot.slane %v3676, 4
        %v3678 = vadd.f32 %v3676, %v3677
        %v3679 = vrot.slane %v3678, 2
        %v3680 = vadd.f32 %v3678, %v3679
        %v3681 = vrot.slane %v3680, 1
        %v3682 = vadd.f32 %v3680, %v3681
        %v3683 = vadd.f32 %v3493, %v3525
        %v3684 = vrot.slane %v3683, 4
        %v3685 = vadd.f32 %v3683, %v3684
        %v3686 = vrot.slane %v3685, 2
        %v3687 = vadd.f32 %v3685, %v3686
        %v3688 = vrot.slane %v3687, 1
        %v3689 = vadd.f32 %v3687, %v3688
        %v3690 = vadd.f32 %v3494, %v3526
        %v3691 = vrot.slane %v3690, 4
        %v3692 = vadd.f32 %v3690, %v3691
        %v3693 = vrot.slane %v3692, 2
        %v3694 = vadd.f32 %v3692, %v3693
        %v3695 = vrot.slane %v3694, 1
        %v3696 = vadd.f32 %v3694, %v3695
        %v3697 = vadd.f32 %v3495, %v3527
        %v3698 = vrot.slane %v3697, 4
        %v3699 = vadd.f32 %v3697, %v3698
        %v3700 = vrot.slane %v3699, 2
        %v3701 = vadd.f32 %v3699, %v3700
        %v3702 = vrot.slane %v3701, 1
        %v3703 = vadd.f32 %v3701, %v3702
        %v3704 = vadd.f32 %v3496, %v3528
        %v3705 = vrot.slane %v3704, 4
        %v3706 = vadd.f32 %v3704, %v3705
        %v3707 = vrot.slane %v3706, 2
        %v3708 = vadd.f32 %v3706, %v3707
        %v3709 = vrot.slane %v3708, 1
        %v3710 = vadd.f32 %v3708, %v3709
        %v3711 = vadd.f32 %v3497, %v3529
        %v3712 = vrot.slane %v3711, 4
        %v3713 = vadd.f32 %v3711, %v3712
        %v3714 = vrot.slane %v3713, 2
        %v3715 = vadd.f32 %v3713, %v3714
        %v3716 = vrot.slane %v3715, 1
        %v3717 = vadd.f32 %v3715, %v3716
        %v3718 = vadd.f32 %v3498, %v3530
        %v3719 = vrot.slane %v3718, 4
        %v3720 = vadd.f32 %v3718, %v3719
        %v3721 = vrot.slane %v3720, 2
        %v3722 = vadd.f32 %v3720, %v3721
        %v3723 = vrot.slane %v3722, 1
        %v3724 = vadd.f32 %v3722, %v3723
        %v3725 = vadd.f32 %v3499, %v3531
        %v3726 = vrot.slane %v3725, 4
        %v3727 = vadd.f32 %v3725, %v3726
        %v3728 = vrot.slane %v3727, 2
        %v3729 = vadd.f32 %v3727, %v3728
        %v3730 = vrot.slane %v3729, 1
        %v3731 = vadd.f32 %v3729, %v3730
        %v3732 = vadd.f32 %v3500, %v3532
        %v3733 = vrot.slane %v3732, 4
        %v3734 = vadd.f32 %v3732, %v3733
        %v3735 = vrot.slane %v3734, 2
        %v3736 = vadd.f32 %v3734, %v3735
        %v3737 = vrot.slane %v3736, 1
        %v3738 = vadd.f32 %v3736, %v3737
        %v3739 = vadd.f32 %v3501, %v3533
        %v3740 = vrot.slane %v3739, 4
        %v3741 = vadd.f32 %v3739, %v3740
        %v3742 = vrot.slane %v3741, 2
        %v3743 = vadd.f32 %v3741, %v3742
        %v3744 = vrot.slane %v3743, 1
        %v3745 = vadd.f32 %v3743, %v3744
        %v3746 = vadd.f32 %v3502, %v3534
        %v3747 = vrot.slane %v3746, 4
        %v3748 = vadd.f32 %v3746, %v3747
        %v3749 = vrot.slane %v3748, 2
        %v3750 = vadd.f32 %v3748, %v3749
        %v3751 = vrot.slane %v3750, 1
        %v3752 = vadd.f32 %v3750, %v3751
        %v3753 = vadd.f32 %v3503, %v3535
        %v3754 = vrot.slane %v3753, 4
        %v3755 = vadd.f32 %v3753, %v3754
        %v3756 = vrot.slane %v3755, 2
        %v3757 = vadd.f32 %v3755, %v3756
        %v3758 = vrot.slane %v3757, 1
        %v3759 = vadd.f32 %v3757, %v3758
        %v3760 = vmul.f32 %v2376, %v2263
        %v3761 = vmul.f32 %v2411, %v2264
        %v3762 = vmul.f32 %v2446, %v2265
        %v3763 = vmul.f32 %v2481, %v2266
        %v3764 = vmul.f32 %v2516, %v2267
        %v3765 = vmul.f32 %v2551, %v2268
        %v3766 = vmul.f32 %v2586, %v2269
        %v3767 = vmul.f32 %v2621, %v2270
        %v3768 = vmul.f32 %v2656, %v2271
        %v3769 = vmul.f32 %v2691, %v2272
        %v3770 = vmul.f32 %v2726, %v2273
        %v3771 = vmul.f32 %v2761, %v2274
        %v3772 = vmul.f32 %v2796, %v2275
        %v3773 = vmul.f32 %v2831, %v2276
        %v3774 = vmul.f32 %v2866, %v2277
        %v3775 = vmul.f32 %v2901, %v2278
        %v3776 = vmul.f32 %v2936, %v2279
        %v3777 = vmul.f32 %v2971, %v2280
        %v3778 = vmul.f32 %v3006, %v2281
        %v3779 = vmul.f32 %v3041, %v2282
        %v3780 = vmul.f32 %v3076, %v2283
        %v3781 = vmul.f32 %v3111, %v2284
        %v3782 = vmul.f32 %v3146, %v2285
        %v3783 = vmul.f32 %v3181, %v2286
        %v3784 = vmul.f32 %v3216, %v2287
        %v3785 = vmul.f32 %v3251, %v2288
        %v3786 = vmul.f32 %v3286, %v2289
        %v3787 = vmul.f32 %v3321, %v2290
        %v3788 = vmul.f32 %v3356, %v2291
        %v3789 = vmul.f32 %v3391, %v2292
        %v3790 = vmul.f32 %v3426, %v2293
        %v3791 = vmul.f32 %v3461, %v2294
        %v3792 = vmul.f32 %v2379, %v2295
        %v3793 = vmul.f32 %v2414, %v2296
        %v3794 = vmul.f32 %v2449, %v2297
        %v3795 = vmul.f32 %v2484, %v2298
        %v3796 = vmul.f32 %v2519, %v2299
        %v3797 = vmul.f32 %v2554, %v2300
        %v3798 = vmul.f32 %v2589, %v2301
        %v3799 = vmul.f32 %v2624, %v2302
        %v3800 = vmul.f32 %v2659, %v2303
        %v3801 = vmul.f32 %v2694, %v2304
        %v3802 = vmul.f32 %v2729, %v2305
        %v3803 = vmul.f32 %v2764, %v2306
        %v3804 = vmul.f32 %v2799, %v2307
        %v3805 = vmul.f32 %v2834, %v2308
        %v3806 = vmul.f32 %v2869, %v2309
        %v3807 = vmul.f32 %v2904, %v2310
        %v3808 = vmul.f32 %v2939, %v2311
        %v3809 = vmul.f32 %v2974, %v2312
        %v3810 = vmul.f32 %v3009, %v2313
        %v3811 = vmul.f32 %v3044, %v2314
        %v3812 = vmul.f32 %v3079, %v2315
        %v3813 = vmul.f32 %v3114, %v2316
        %v3814 = vmul.f32 %v3149, %v2317
        %v3815 = vmul.f32 %v3184, %v2318
        %v3816 = vmul.f32 %v3219, %v2319
        %v3817 = vmul.f32 %v3254, %v2320
        %v3818 = vmul.f32 %v3289, %v2321
        %v3819 = vmul.f32 %v3324, %v2322
        %v3820 = vmul.f32 %v3359, %v2323
        %v3821 = vmul.f32 %v3394, %v2324
        %v3822 = vmul.f32 %v3429, %v2325
        %v3823 = vmul.f32 %v3464, %v2326
        %v3824 = vadd.f32 %v3760, %v3792
        %v3825 = vrot.slane %v3824, 4
        %v3826 = vadd.f32 %v3824, %v3825
        %v3827 = vrot.slane %v3826, 2
        %v3828 = vadd.f32 %v3826, %v3827
        %v3829 = vrot.slane %v3828, 1
        %v3830 = vadd.f32 %v3828, %v3829
        %v3831 = vadd.f32 %v3761, %v3793
        %v3832 = vrot.slane %v3831, 4
        %v3833 = vadd.f32 %v3831, %v3832
        %v3834 = vrot.slane %v3833, 2
        %v3835 = vadd.f32 %v3833, %v3834
        %v3836 = vrot.slane %v3835, 1
        %v3837 = vadd.f32 %v3835, %v3836
        %v3838 = vadd.f32 %v3762, %v3794
        %v3839 = vrot.slane %v3838, 4
        %v3840 = vadd.f32 %v3838, %v3839
        %v3841 = vrot.slane %v3840, 2
        %v3842 = vadd.f32 %v3840, %v3841
        %v3843 = vrot.slane %v3842, 1
        %v3844 = vadd.f32 %v3842, %v3843
        %v3845 = vadd.f32 %v3763, %v3795
        %v3846 = vrot.slane %v3845, 4
        %v3847 = vadd.f32 %v3845, %v3846
        %v3848 = vrot.slane %v3847, 2
        %v3849 = vadd.f32 %v3847, %v3848
        %v3850 = vrot.slane %v3849, 1
        %v3851 = vadd.f32 %v3849, %v3850
        %v3852 = vadd.f32 %v3764, %v3796
        %v3853 = vrot.slane %v3852, 4
        %v3854 = vadd.f32 %v3852, %v3853
        %v3855 = vrot.slane %v3854, 2
        %v3856 = vadd.f32 %v3854, %v3855
        %v3857 = vrot.slane %v3856, 1
        %v3858 = vadd.f32 %v3856, %v3857
        %v3859 = vadd.f32 %v3765, %v3797
        %v3860 = vrot.slane %v3859, 4
        %v3861 = vadd.f32 %v3859, %v3860
        %v3862 = vrot.slane %v3861, 2
        %v3863 = vadd.f32 %v3861, %v3862
        %v3864 = vrot.slane %v3863, 1
        %v3865 = vadd.f32 %v3863, %v3864
        %v3866 = vadd.f32 %v3766, %v3798
        %v3867 = vrot.slane %v3866, 4
        %v3868 = vadd.f32 %v3866, %v3867
        %v3869 = vrot.slane %v3868, 2
        %v3870 = vadd.f32 %v3868, %v3869
        %v3871 = vrot.slane %v3870, 1
        %v3872 = vadd.f32 %v3870, %v3871
        %v3873 = vadd.f32 %v3767, %v3799
        %v3874 = vrot.slane %v3873, 4
        %v3875 = vadd.f32 %v3873, %v3874
        %v3876 = vrot.slane %v3875, 2
        %v3877 = vadd.f32 %v3875, %v3876
        %v3878 = vrot.slane %v3877, 1
        %v3879 = vadd.f32 %v3877, %v3878
        %v3880 = vadd.f32 %v3768, %v3800
        %v3881 = vrot.slane %v3880, 4
        %v3882 = vadd.f32 %v3880, %v3881
        %v3883 = vrot.slane %v3882, 2
        %v3884 = vadd.f32 %v3882, %v3883
        %v3885 = vrot.slane %v3884, 1
        %v3886 = vadd.f32 %v3884, %v3885
        %v3887 = vadd.f32 %v3769, %v3801
        %v3888 = vrot.slane %v3887, 4
        %v3889 = vadd.f32 %v3887, %v3888
        %v3890 = vrot.slane %v3889, 2
        %v3891 = vadd.f32 %v3889, %v3890
        %v3892 = vrot.slane %v3891, 1
        %v3893 = vadd.f32 %v3891, %v3892
        %v3894 = vadd.f32 %v3770, %v3802
        %v3895 = vrot.slane %v3894, 4
        %v3896 = vadd.f32 %v3894, %v3895
        %v3897 = vrot.slane %v3896, 2
        %v3898 = vadd.f32 %v3896, %v3897
        %v3899 = vrot.slane %v3898, 1
        %v3900 = vadd.f32 %v3898, %v3899
        %v3901 = vadd.f32 %v3771, %v3803
        %v3902 = vrot.slane %v3901, 4
        %v3903 = vadd.f32 %v3901, %v3902
        %v3904 = vrot.slane %v3903, 2
        %v3905 = vadd.f32 %v3903, %v3904
        %v3906 = vrot.slane %v3905, 1
        %v3907 = vadd.f32 %v3905, %v3906
        %v3908 = vadd.f32 %v3772, %v3804
        %v3909 = vrot.slane %v3908, 4
        %v3910 = vadd.f32 %v3908, %v3909
        %v3911 = vrot.slane %v3910, 2
        %v3912 = vadd.f32 %v3910, %v3911
        %v3913 = vrot.slane %v3912, 1
        %v3914 = vadd.f32 %v3912, %v3913
        %v3915 = vadd.f32 %v3773, %v3805
        %v3916 = vrot.slane %v3915, 4
        %v3917 = vadd.f32 %v3915, %v3916
        %v3918 = vrot.slane %v3917, 2
        %v3919 = vadd.f32 %v3917, %v3918
        %v3920 = vrot.slane %v3919, 1
        %v3921 = vadd.f32 %v3919, %v3920
        %v3922 = vadd.f32 %v3774, %v3806
        %v3923 = vrot.slane %v3922, 4
        %v3924 = vadd.f32 %v3922, %v3923
        %v3925 = vrot.slane %v3924, 2
        %v3926 = vadd.f32 %v3924, %v3925
        %v3927 = vrot.slane %v3926, 1
        %v3928 = vadd.f32 %v3926, %v3927
        %v3929 = vadd.f32 %v3775, %v3807
        %v3930 = vrot.slane %v3929, 4
        %v3931 = vadd.f32 %v3929, %v3930
        %v3932 = vrot.slane %v3931, 2
        %v3933 = vadd.f32 %v3931, %v3932
        %v3934 = vrot.slane %v3933, 1
        %v3935 = vadd.f32 %v3933, %v3934
        %v3936 = vadd.f32 %v3776, %v3808
        %v3937 = vrot.slane %v3936, 4
        %v3938 = vadd.f32 %v3936, %v3937
        %v3939 = vrot.slane %v3938, 2
        %v3940 = vadd.f32 %v3938, %v3939
        %v3941 = vrot.slane %v3940, 1
        %v3942 = vadd.f32 %v3940, %v3941
        %v3943 = vadd.f32 %v3777, %v3809
        %v3944 = vrot.slane %v3943, 4
        %v3945 = vadd.f32 %v3943, %v3944
        %v3946 = vrot.slane %v3945, 2
        %v3947 = vadd.f32 %v3945, %v3946
        %v3948 = vrot.slane %v3947, 1
        %v3949 = vadd.f32 %v3947, %v3948
        %v3950 = vadd.f32 %v3778, %v3810
        %v3951 = vrot.slane %v3950, 4
        %v3952 = vadd.f32 %v3950, %v3951
        %v3953 = vrot.slane %v3952, 2
        %v3954 = vadd.f32 %v3952, %v3953
        %v3955 = vrot.slane %v3954, 1
        %v3956 = vadd.f32 %v3954, %v3955
        %v3957 = vadd.f32 %v3779, %v3811
        %v3958 = vrot.slane %v3957, 4
        %v3959 = vadd.f32 %v3957, %v3958
        %v3960 = vrot.slane %v3959, 2
        %v3961 = vadd.f32 %v3959, %v3960
        %v3962 = vrot.slane %v3961, 1
        %v3963 = vadd.f32 %v3961, %v3962
        %v3964 = vadd.f32 %v3780, %v3812
        %v3965 = vrot.slane %v3964, 4
        %v3966 = vadd.f32 %v3964, %v3965
        %v3967 = vrot.slane %v3966, 2
        %v3968 = vadd.f32 %v3966, %v3967
        %v3969 = vrot.slane %v3968, 1
        %v3970 = vadd.f32 %v3968, %v3969
        %v3971 = vadd.f32 %v3781, %v3813
        %v3972 = vrot.slane %v3971, 4
        %v3973 = vadd.f32 %v3971, %v3972
        %v3974 = vrot.slane %v3973, 2
        %v3975 = vadd.f32 %v3973, %v3974
        %v3976 = vrot.slane %v3975, 1
        %v3977 = vadd.f32 %v3975, %v3976
        %v3978 = vadd.f32 %v3782, %v3814
        %v3979 = vrot.slane %v3978, 4
        %v3980 = vadd.f32 %v3978, %v3979
        %v3981 = vrot.slane %v3980, 2
        %v3982 = vadd.f32 %v3980, %v3981
        %v3983 = vrot.slane %v3982, 1
        %v3984 = vadd.f32 %v3982, %v3983
        %v3985 = vadd.f32 %v3783, %v3815
        %v3986 = vrot.slane %v3985, 4
        %v3987 = vadd.f32 %v3985, %v3986
        %v3988 = vrot.slane %v3987, 2
        %v3989 = vadd.f32 %v3987, %v3988
        %v3990 = vrot.slane %v3989, 1
        %v3991 = vadd.f32 %v3989, %v3990
        %v3992 = vadd.f32 %v3784, %v3816
        %v3993 = vrot.slane %v3992, 4
        %v3994 = vadd.f32 %v3992, %v3993
        %v3995 = vrot.slane %v3994, 2
        %v3996 = vadd.f32 %v3994, %v3995
        %v3997 = vrot.slane %v3996, 1
        %v3998 = vadd.f32 %v3996, %v3997
        %v3999 = vadd.f32 %v3785, %v3817
        %v4000 = vrot.slane %v3999, 4
        %v4001 = vadd.f32 %v3999, %v4000
        %v4002 = vrot.slane %v4001, 2
        %v4003 = vadd.f32 %v4001, %v4002
        %v4004 = vrot.slane %v4003, 1
        %v4005 = vadd.f32 %v4003, %v4004
        %v4006 = vadd.f32 %v3786, %v3818
        %v4007 = vrot.slane %v4006, 4
        %v4008 = vadd.f32 %v4006, %v4007
        %v4009 = vrot.slane %v4008, 2
        %v4010 = vadd.f32 %v4008, %v4009
        %v4011 = vrot.slane %v4010, 1
        %v4012 = vadd.f32 %v4010, %v4011
        %v4013 = vadd.f32 %v3787, %v3819
        %v4014 = vrot.slane %v4013, 4
        %v4015 = vadd.f32 %v4013, %v4014
        %v4016 = vrot.slane %v4015, 2
        %v4017 = vadd.f32 %v4015, %v4016
        %v4018 = vrot.slane %v4017, 1
        %v4019 = vadd.f32 %v4017, %v4018
        %v4020 = vadd.f32 %v3788, %v3820
        %v4021 = vrot.slane %v4020, 4
        %v4022 = vadd.f32 %v4020, %v4021
        %v4023 = vrot.slane %v4022, 2
        %v4024 = vadd.f32 %v4022, %v4023
        %v4025 = vrot.slane %v4024, 1
        %v4026 = vadd.f32 %v4024, %v4025
        %v4027 = vadd.f32 %v3789, %v3821
        %v4028 = vrot.slane %v4027, 4
        %v4029 = vadd.f32 %v4027, %v4028
        %v4030 = vrot.slane %v4029, 2
        %v4031 = vadd.f32 %v4029, %v4030
        %v4032 = vrot.slane %v4031, 1
        %v4033 = vadd.f32 %v4031, %v4032
        %v4034 = vadd.f32 %v3790, %v3822
        %v4035 = vrot.slane %v4034, 4
        %v4036 = vadd.f32 %v4034, %v4035
        %v4037 = vrot.slane %v4036, 2
        %v4038 = vadd.f32 %v4036, %v4037
        %v4039 = vrot.slane %v4038, 1
        %v4040 = vadd.f32 %v4038, %v4039
        %v4041 = vadd.f32 %v3791, %v3823
        %v4042 = vrot.slane %v4041, 4
        %v4043 = vadd.f32 %v4041, %v4042
        %v4044 = vrot.slane %v4043, 2
        %v4045 = vadd.f32 %v4043, %v4044
        %v4046 = vrot.slane %v4045, 1
        %v4047 = vadd.f32 %v4045, %v4046
        %v4048 = vmul.f32 %v2382, %v2263
        %v4049 = vmul.f32 %v2417, %v2264
        %v4050 = vmul.f32 %v2452, %v2265
        %v4051 = vmul.f32 %v2487, %v2266
        %v4052 = vmul.f32 %v2522, %v2267
        %v4053 = vmul.f32 %v2557, %v2268
        %v4054 = vmul.f32 %v2592, %v2269
        %v4055 = vmul.f32 %v2627, %v2270
        %v4056 = vmul.f32 %v2662, %v2271
        %v4057 = vmul.f32 %v2697, %v2272
        %v4058 = vmul.f32 %v2732, %v2273
        %v4059 = vmul.f32 %v2767, %v2274
        %v4060 = vmul.f32 %v2802, %v2275
        %v4061 = vmul.f32 %v2837, %v2276
        %v4062 = vmul.f32 %v2872, %v2277
        %v4063 = vmul.f32 %v2907, %v2278
        %v4064 = vmul.f32 %v2942, %v2279
        %v4065 = vmul.f32 %v2977, %v2280
        %v4066 = vmul.f32 %v3012, %v2281
        %v4067 = vmul.f32 %v3047, %v2282
        %v4068 = vmul.f32 %v3082, %v2283
        %v4069 = vmul.f32 %v3117, %v2284
        %v4070 = vmul.f32 %v3152, %v2285
        %v4071 = vmul.f32 %v3187, %v2286
        %v4072 = vmul.f32 %v3222, %v2287
        %v4073 = vmul.f32 %v3257, %v2288
        %v4074 = vmul.f32 %v3292, %v2289
        %v4075 = vmul.f32 %v3327, %v2290
        %v4076 = vmul.f32 %v3362, %v2291
        %v4077 = vmul.f32 %v3397, %v2292
        %v4078 = vmul.f32 %v3432, %v2293
        %v4079 = vmul.f32 %v3467, %v2294
        %v4080 = vmul.f32 %v2385, %v2295
        %v4081 = vmul.f32 %v2420, %v2296
        %v4082 = vmul.f32 %v2455, %v2297
        %v4083 = vmul.f32 %v2490, %v2298
        %v4084 = vmul.f32 %v2525, %v2299
        %v4085 = vmul.f32 %v2560, %v2300
        %v4086 = vmul.f32 %v2595, %v2301
        %v4087 = vmul.f32 %v2630, %v2302
        %v4088 = vmul.f32 %v2665, %v2303
        %v4089 = vmul.f32 %v2700, %v2304
        %v4090 = vmul.f32 %v2735, %v2305
        %v4091 = vmul.f32 %v2770, %v2306
        %v4092 = vmul.f32 %v2805, %v2307
        %v4093 = vmul.f32 %v2840, %v2308
        %v4094 = vmul.f32 %v2875, %v2309
        %v4095 = vmul.f32 %v2910, %v2310
        %v4096 = vmul.f32 %v2945, %v2311
        %v4097 = vmul.f32 %v2980, %v2312
        %v4098 = vmul.f32 %v3015, %v2313
        %v4099 = vmul.f32 %v3050, %v2314
        %v4100 = vmul.f32 %v3085, %v2315
        %v4101 = vmul.f32 %v3120, %v2316
        %v4102 = vmul.f32 %v3155, %v2317
        %v4103 = vmul.f32 %v3190, %v2318
        %v4104 = vmul.f32 %v3225, %v2319
        %v4105 = vmul.f32 %v3260, %v2320
        %v4106 = vmul.f32 %v3295, %v2321
        %v4107 = vmul.f32 %v3330, %v2322
        %v4108 = vmul.f32 %v3365, %v2323
        %v4109 = vmul.f32 %v3400, %v2324
        %v4110 = vmul.f32 %v3435, %v2325
        %v4111 = vmul.f32 %v3470, %v2326
        %v4112 = vadd.f32 %v4048, %v4080
        %v4113 = vrot.slane %v4112, 4
        %v4114 = vadd.f32 %v4112, %v4113
        %v4115 = vrot.slane %v4114, 2
        %v4116 = vadd.f32 %v4114, %v4115
        %v4117 = vrot.slane %v4116, 1
        %v4118 = vadd.f32 %v4116, %v4117
        %v4119 = vadd.f32 %v4049, %v4081
        %v4120 = vrot.slane %v4119, 4
        %v4121 = vadd.f32 %v4119, %v4120
        %v4122 = vrot.slane %v4121, 2
        %v4123 = vadd.f32 %v4121, %v4122
        %v4124 = vrot.slane %v4123, 1
        %v4125 = vadd.f32 %v4123, %v4124
        %v4126 = vadd.f32 %v4050, %v4082
        %v4127 = vrot.slane %v4126, 4
        %v4128 = vadd.f32 %v4126, %v4127
        %v4129 = vrot.slane %v4128, 2
        %v4130 = vadd.f32 %v4128, %v4129
        %v4131 = vrot.slane %v4130, 1
        %v4132 = vadd.f32 %v4130, %v4131
        %v4133 = vadd.f32 %v4051, %v4083
        %v4134 = vrot.slane %v4133, 4
        %v4135 = vadd.f32 %v4133, %v4134
        %v4136 = vrot.slane %v4135, 2
        %v4137 = vadd.f32 %v4135, %v4136
        %v4138 = vrot.slane %v4137, 1
        %v4139 = vadd.f32 %v4137, %v4138
        %v4140 = vadd.f32 %v4052, %v4084
        %v4141 = vrot.slane %v4140, 4
        %v4142 = vadd.f32 %v4140, %v4141
        %v4143 = vrot.slane %v4142, 2
        %v4144 = vadd.f32 %v4142, %v4143
        %v4145 = vrot.slane %v4144, 1
        %v4146 = vadd.f32 %v4144, %v4145
        %v4147 = vadd.f32 %v4053, %v4085
        %v4148 = vrot.slane %v4147, 4
        %v4149 = vadd.f32 %v4147, %v4148
        %v4150 = vrot.slane %v4149, 2
        %v4151 = vadd.f32 %v4149, %v4150
        %v4152 = vrot.slane %v4151, 1
        %v4153 = vadd.f32 %v4151, %v4152
        %v4154 = vadd.f32 %v4054, %v4086
        %v4155 = vrot.slane %v4154, 4
        %v4156 = vadd.f32 %v4154, %v4155
        %v4157 = vrot.slane %v4156, 2
        %v4158 = vadd.f32 %v4156, %v4157
        %v4159 = vrot.slane %v4158, 1
        %v4160 = vadd.f32 %v4158, %v4159
        %v4161 = vadd.f32 %v4055, %v4087
        %v4162 = vrot.slane %v4161, 4
        %v4163 = vadd.f32 %v4161, %v4162
        %v4164 = vrot.slane %v4163, 2
        %v4165 = vadd.f32 %v4163, %v4164
        %v4166 = vrot.slane %v4165, 1
        %v4167 = vadd.f32 %v4165, %v4166
        %v4168 = vadd.f32 %v4056, %v4088
        %v4169 = vrot.slane %v4168, 4
        %v4170 = vadd.f32 %v4168, %v4169
        %v4171 = vrot.slane %v4170, 2
        %v4172 = vadd.f32 %v4170, %v4171
        %v4173 = vrot.slane %v4172, 1
        %v4174 = vadd.f32 %v4172, %v4173
        %v4175 = vadd.f32 %v4057, %v4089
        %v4176 = vrot.slane %v4175, 4
        %v4177 = vadd.f32 %v4175, %v4176
        %v4178 = vrot.slane %v4177, 2
        %v4179 = vadd.f32 %v4177, %v4178
        %v4180 = vrot.slane %v4179, 1
        %v4181 = vadd.f32 %v4179, %v4180
        %v4182 = vadd.f32 %v4058, %v4090
        %v4183 = vrot.slane %v4182, 4
        %v4184 = vadd.f32 %v4182, %v4183
        %v4185 = vrot.slane %v4184, 2
        %v4186 = vadd.f32 %v4184, %v4185
        %v4187 = vrot.slane %v4186, 1
        %v4188 = vadd.f32 %v4186, %v4187
        %v4189 = vadd.f32 %v4059, %v4091
        %v4190 = vrot.slane %v4189, 4
        %v4191 = vadd.f32 %v4189, %v4190
        %v4192 = vrot.slane %v4191, 2
        %v4193 = vadd.f32 %v4191, %v4192
        %v4194 = vrot.slane %v4193, 1
        %v4195 = vadd.f32 %v4193, %v4194
        %v4196 = vadd.f32 %v4060, %v4092
        %v4197 = vrot.slane %v4196, 4
        %v4198 = vadd.f32 %v4196, %v4197
        %v4199 = vrot.slane %v4198, 2
        %v4200 = vadd.f32 %v4198, %v4199
        %v4201 = vrot.slane %v4200, 1
        %v4202 = vadd.f32 %v4200, %v4201
        %v4203 = vadd.f32 %v4061, %v4093
        %v4204 = vrot.slane %v4203, 4
        %v4205 = vadd.f32 %v4203, %v4204
        %v4206 = vrot.slane %v4205, 2
        %v4207 = vadd.f32 %v4205, %v4206
        %v4208 = vrot.slane %v4207, 1
        %v4209 = vadd.f32 %v4207, %v4208
        %v4210 = vadd.f32 %v4062, %v4094
        %v4211 = vrot.slane %v4210, 4
        %v4212 = vadd.f32 %v4210, %v4211
        %v4213 = vrot.slane %v4212, 2
        %v4214 = vadd.f32 %v4212, %v4213
        %v4215 = vrot.slane %v4214, 1
        %v4216 = vadd.f32 %v4214, %v4215
        %v4217 = vadd.f32 %v4063, %v4095
        %v4218 = vrot.slane %v4217, 4
        %v4219 = vadd.f32 %v4217, %v4218
        %v4220 = vrot.slane %v4219, 2
        %v4221 = vadd.f32 %v4219, %v4220
        %v4222 = vrot.slane %v4221, 1
        %v4223 = vadd.f32 %v4221, %v4222
        %v4224 = vadd.f32 %v4064, %v4096
        %v4225 = vrot.slane %v4224, 4
        %v4226 = vadd.f32 %v4224, %v4225
        %v4227 = vrot.slane %v4226, 2
        %v4228 = vadd.f32 %v4226, %v4227
        %v4229 = vrot.slane %v4228, 1
        %v4230 = vadd.f32 %v4228, %v4229
        %v4231 = vadd.f32 %v4065, %v4097
        %v4232 = vrot.slane %v4231, 4
        %v4233 = vadd.f32 %v4231, %v4232
        %v4234 = vrot.slane %v4233, 2
        %v4235 = vadd.f32 %v4233, %v4234
        %v4236 = vrot.slane %v4235, 1
        %v4237 = vadd.f32 %v4235, %v4236
        %v4238 = vadd.f32 %v4066, %v4098
        %v4239 = vrot.slane %v4238, 4
        %v4240 = vadd.f32 %v4238, %v4239
        %v4241 = vrot.slane %v4240, 2
        %v4242 = vadd.f32 %v4240, %v4241
        %v4243 = vrot.slane %v4242, 1
        %v4244 = vadd.f32 %v4242, %v4243
        %v4245 = vadd.f32 %v4067, %v4099
        %v4246 = vrot.slane %v4245, 4
        %v4247 = vadd.f32 %v4245, %v4246
        %v4248 = vrot.slane %v4247, 2
        %v4249 = vadd.f32 %v4247, %v4248
        %v4250 = vrot.slane %v4249, 1
        %v4251 = vadd.f32 %v4249, %v4250
        %v4252 = vadd.f32 %v4068, %v4100
        %v4253 = vrot.slane %v4252, 4
        %v4254 = vadd.f32 %v4252, %v4253
        %v4255 = vrot.slane %v4254, 2
        %v4256 = vadd.f32 %v4254, %v4255
        %v4257 = vrot.slane %v4256, 1
        %v4258 = vadd.f32 %v4256, %v4257
        %v4259 = vadd.f32 %v4069, %v4101
        %v4260 = vrot.slane %v4259, 4
        %v4261 = vadd.f32 %v4259, %v4260
        %v4262 = vrot.slane %v4261, 2
        %v4263 = vadd.f32 %v4261, %v4262
        %v4264 = vrot.slane %v4263, 1
        %v4265 = vadd.f32 %v4263, %v4264
        %v4266 = vadd.f32 %v4070, %v4102
        %v4267 = vrot.slane %v4266, 4
        %v4268 = vadd.f32 %v4266, %v4267
        %v4269 = vrot.slane %v4268, 2
        %v4270 = vadd.f32 %v4268, %v4269
        %v4271 = vrot.slane %v4270, 1
        %v4272 = vadd.f32 %v4270, %v4271
        %v4273 = vadd.f32 %v4071, %v4103
        %v4274 = vrot.slane %v4273, 4
        %v4275 = vadd.f32 %v4273, %v4274
        %v4276 = vrot.slane %v4275, 2
        %v4277 = vadd.f32 %v4275, %v4276
        %v4278 = vrot.slane %v4277, 1
        %v4279 = vadd.f32 %v4277, %v4278
        %v4280 = vadd.f32 %v4072, %v4104
        %v4281 = vrot.slane %v4280, 4
        %v4282 = vadd.f32 %v4280, %v4281
        %v4283 = vrot.slane %v4282, 2
        %v4284 = vadd.f32 %v4282, %v4283
        %v4285 = vrot.slane %v4284, 1
        %v4286 = vadd.f32 %v4284, %v4285
        %v4287 = vadd.f32 %v4073, %v4105
        %v4288 = vrot.slane %v4287, 4
        %v4289 = vadd.f32 %v4287, %v4288
        %v4290 = vrot.slane %v4289, 2
        %v4291 = vadd.f32 %v4289, %v4290
        %v4292 = vrot.slane %v4291, 1
        %v4293 = vadd.f32 %v4291, %v4292
        %v4294 = vadd.f32 %v4074, %v4106
        %v4295 = vrot.slane %v4294, 4
        %v4296 = vadd.f32 %v4294, %v4295
        %v4297 = vrot.slane %v4296, 2
        %v4298 = vadd.f32 %v4296, %v4297
        %v4299 = vrot.slane %v4298, 1
        %v4300 = vadd.f32 %v4298, %v4299
        %v4301 = vadd.f32 %v4075, %v4107
        %v4302 = vrot.slane %v4301, 4
        %v4303 = vadd.f32 %v4301, %v4302
        %v4304 = vrot.slane %v4303, 2
        %v4305 = vadd.f32 %v4303, %v4304
        %v4306 = vrot.slane %v4305, 1
        %v4307 = vadd.f32 %v4305, %v4306
        %v4308 = vadd.f32 %v4076, %v4108
        %v4309 = vrot.slane %v4308, 4
        %v4310 = vadd.f32 %v4308, %v4309
        %v4311 = vrot.slane %v4310, 2
        %v4312 = vadd.f32 %v4310, %v4311
        %v4313 = vrot.slane %v4312, 1
        %v4314 = vadd.f32 %v4312, %v4313
        %v4315 = vadd.f32 %v4077, %v4109
        %v4316 = vrot.slane %v4315, 4
        %v4317 = vadd.f32 %v4315, %v4316
        %v4318 = vrot.slane %v4317, 2
        %v4319 = vadd.f32 %v4317, %v4318
        %v4320 = vrot.slane %v4319, 1
        %v4321 = vadd.f32 %v4319, %v4320
        %v4322 = vadd.f32 %v4078, %v4110
        %v4323 = vrot.slane %v4322, 4
        %v4324 = vadd.f32 %v4322, %v4323
        %v4325 = vrot.slane %v4324, 2
        %v4326 = vadd.f32 %v4324, %v4325
        %v4327 = vrot.slane %v4326, 1
        %v4328 = vadd.f32 %v4326, %v4327
        %v4329 = vadd.f32 %v4079, %v4111
        %v4330 = vrot.slane %v4329, 4
        %v4331 = vadd.f32 %v4329, %v4330
        %v4332 = vrot.slane %v4331, 2
        %v4333 = vadd.f32 %v4331, %v4332
        %v4334 = vrot.slane %v4333, 1
        %v4335 = vadd.f32 %v4333, %v4334
        %vm4336 = vcmask 1040384
        %v4337 = vsel %vm4336, %v3542, %v3549
        %vm4338 = vcmask 1041408
        %v4339 = vsel %vm4338, %v4337, %v3556
        %vm4340 = vcmask 1042432
        %v4341 = vsel %vm4340, %v4339, %v3563
        %vm4342 = vcmask 1043456
        %v4343 = vsel %vm4342, %v4341, %v3570
        %vm4344 = vcmask 1044480
        %v4345 = vsel %vm4344, %v4343, %v3577
        %vm4346 = vcmask 1045504
        %v4347 = vsel %vm4346, %v4345, %v3584
        %vm4348 = vcmask 1046528
        %v4349 = vsel %vm4348, %v4347, %v3591
        %v4350 = vsel %vm4336, %v3598, %v3605
        %v4351 = vsel %vm4338, %v4350, %v3612
        %v4352 = vsel %vm4340, %v4351, %v3619
        %v4353 = vsel %vm4342, %v4352, %v3626
        %v4354 = vsel %vm4344, %v4353, %v3633
        %v4355 = vsel %vm4346, %v4354, %v3640
        %v4356 = vsel %vm4348, %v4355, %v3647
        %v4357 = vsel %vm4336, %v3654, %v3661
        %v4358 = vsel %vm4338, %v4357, %v3668
        %v4359 = vsel %vm4340, %v4358, %v3675
        %v4360 = vsel %vm4342, %v4359, %v3682
        %v4361 = vsel %vm4344, %v4360, %v3689
        %v4362 = vsel %vm4346, %v4361, %v3696
        %v4363 = vsel %vm4348, %v4362, %v3703
        %v4364 = vsel %vm4336, %v3710, %v3717
        %v4365 = vsel %vm4338, %v4364, %v3724
        %v4366 = vsel %vm4340, %v4365, %v3731
        %v4367 = vsel %vm4342, %v4366, %v3738
        %v4368 = vsel %vm4344, %v4367, %v3745
        %v4369 = vsel %vm4346, %v4368, %v3752
        %v4370 = vsel %vm4348, %v4369, %v3759
        %v4371 = vsel %vm4336, %v3830, %v3837
        %v4372 = vsel %vm4338, %v4371, %v3844
        %v4373 = vsel %vm4340, %v4372, %v3851
        %v4374 = vsel %vm4342, %v4373, %v3858
        %v4375 = vsel %vm4344, %v4374, %v3865
        %v4376 = vsel %vm4346, %v4375, %v3872
        %v4377 = vsel %vm4348, %v4376, %v3879
        %v4378 = vsel %vm4336, %v3886, %v3893
        %v4379 = vsel %vm4338, %v4378, %v3900
        %v4380 = vsel %vm4340, %v4379, %v3907
        %v4381 = vsel %vm4342, %v4380, %v3914
        %v4382 = vsel %vm4344, %v4381, %v3921
        %v4383 = vsel %vm4346, %v4382, %v3928
        %v4384 = vsel %vm4348, %v4383, %v3935
        %v4385 = vsel %vm4336, %v3942, %v3949
        %v4386 = vsel %vm4338, %v4385, %v3956
        %v4387 = vsel %vm4340, %v4386, %v3963
        %v4388 = vsel %vm4342, %v4387, %v3970
        %v4389 = vsel %vm4344, %v4388, %v3977
        %v4390 = vsel %vm4346, %v4389, %v3984
        %v4391 = vsel %vm4348, %v4390, %v3991
        %v4392 = vsel %vm4336, %v3998, %v4005
        %v4393 = vsel %vm4338, %v4392, %v4012
        %v4394 = vsel %vm4340, %v4393, %v4019
        %v4395 = vsel %vm4342, %v4394, %v4026
        %v4396 = vsel %vm4344, %v4395, %v4033
        %v4397 = vsel %vm4346, %v4396, %v4040
        %v4398 = vsel %vm4348, %v4397, %v4047
        %v4399 = vsel %vm4336, %v4118, %v4125
        %v4400 = vsel %vm4338, %v4399, %v4132
        %v4401 = vsel %vm4340, %v4400, %v4139
        %v4402 = vsel %vm4342, %v4401, %v4146
        %v4403 = vsel %vm4344, %v4402, %v4153
        %v4404 = vsel %vm4346, %v4403, %v4160
        %v4405 = vsel %vm4348, %v4404, %v4167
        %v4406 = vsel %vm4336, %v4174, %v4181
        %v4407 = vsel %vm4338, %v4406, %v4188
        %v4408 = vsel %vm4340, %v4407, %v4195
        %v4409 = vsel %vm4342, %v4408, %v4202
        %v4410 = vsel %vm4344, %v4409, %v4209
        %v4411 = vsel %vm4346, %v4410, %v4216
        %v4412 = vsel %vm4348, %v4411, %v4223
        %v4413 = vsel %vm4336, %v4230, %v4237
        %v4414 = vsel %vm4338, %v4413, %v4244
        %v4415 = vsel %vm4340, %v4414, %v4251
        %v4416 = vsel %vm4342, %v4415, %v4258
        %v4417 = vsel %vm4344, %v4416, %v4265
        %v4418 = vsel %vm4346, %v4417, %v4272
        %v4419 = vsel %vm4348, %v4418, %v4279
        %v4420 = vsel %vm4336, %v4286, %v4293
        %v4421 = vsel %vm4338, %v4420, %v4300
        %v4422 = vsel %vm4340, %v4421, %v4307
        %v4423 = vsel %vm4342, %v4422, %v4314
        %v4424 = vsel %vm4344, %v4423, %v4321
        %v4425 = vsel %vm4346, %v4424, %v4328
        %v4426 = vsel %vm4348, %v4425, %v4335
        %v4427 = vld [vmem:[%s2] sm:$0xff]
        %v4428 = vld [vmem:[%s2 + $0x8] sm:$0xff]
        %v4429 = vld [vmem:[%s2 + $0x10] sm:$0xff]
        %v4430 = vld [vmem:[%s2 + $0x18] sm:$0xff]
        %v4431 = vld [vmem:[%s2 + $0x20] sm:$0xff]
        %v4432 = vld [vmem:[%s2 + $0x28] sm:$0xff]
        %v4433 = vld [vmem:[%s2 + $0x30] sm:$0xff]
        %v4434 = vld [vmem:[%s2 + $0x38] sm:$0xff]
        %v4435 = vld [vmem:[%s2 + $0x40] sm:$0xff]
        %v4436 = vld [vmem:[%s2 + $0x48] sm:$0xff]
        %v4437 = vld [vmem:[%s2 + $0x50] sm:$0xff]
        %v4438 = vld [vmem:[%s2 + $0x58] sm:$0xff]
        %v4439 = vld [vmem:[%s2 + $0x60] sm:$0xff]
        %v4440 = vld [vmem:[%s2 + $0x68] sm:$0xff]
        %v4441 = vld [vmem:[%s2 + $0x70] sm:$0xff]
        %v4442 = vld [vmem:[%s2 + $0x78] sm:$0xff]
        %4443 = vmatpush.msra.mxu0 %v4442
        %4444 = vmatpush.msra.mxu0 %v4441
        %4445 = vmatpush.msra.mxu0 %v4440
        %4446 = vmatpush.msra.mxu0 %v4439
        %4447 = vmatpush.msra.mxu0 %v4438
        %4448 = vmatpush.msra.mxu0 %v4437
        %4449 = vmatpush.msra.mxu0 %v4436
        %4450 = vmatpush.msra.mxu0 %v4435
        %4451 = vmatpush.msra.mxu0 %v4434
        %4452 = vmatpush.msra.mxu0 %v4433
        %4453 = vmatpush.msra.mxu0 %v4432
        %4454 = vmatpush.msra.mxu0 %v4431
        %4455 = vmatpush.msra.mxu0 %v4430
        %4456 = vmatpush.msra.mxu0 %v4429
        %4457 = vmatpush.msra.mxu0 %v4428
        %4458 = vmatpush.msra.mxu0 %v4427
        %4459 = vmatmul.f32.gmra.mxu0 %v4349
        %v4460 = vpop.f32.mrf.mxu0
        %v4461 = vadd.f32 0.0, %v4460
        %4462 = vmatmul.f32.gmra.mxu0 %v4356
        %v4463 = vpop.f32.mrf.mxu0
        %v4464 = vadd.f32 0.0, %v4463
        %4465 = vmatmul.f32.gmra.mxu0 %v4363
        %v4466 = vpop.f32.mrf.mxu0
        %v4467 = vadd.f32 0.0, %v4466
        %4468 = vmatmul.f32.gmra.mxu0 %v4370
        %v4469 = vpop.f32.mrf.mxu0
        %v4470 = vadd.f32 0.0, %v4469
        %4471 = vmatmul.f32.gmra.mxu0 %v4377
        %v4472 = vpop.f32.mrf.mxu0
        %v4473 = vadd.f32 0.0, %v4472
        %4474 = vmatmul.f32.gmra.mxu0 %v4384
        %v4475 = vpop.f32.mrf.mxu0
        %v4476 = vadd.f32 0.0, %v4475
        %4477 = vmatmul.f32.gmra.mxu0 %v4391
        %v4478 = vpop.f32.mrf.mxu0
        %v4479 = vadd.f32 0.0, %v4478
        %4480 = vmatmul.f32.gmra.mxu0 %v4398
        %v4481 = vpop.f32.mrf.mxu0
        %v4482 = vadd.f32 0.0, %v4481
        %4483 = vmatmul.f32.gmra.mxu0 %v4405
        %v4484 = vpop.f32.mrf.mxu0
        %v4485 = vadd.f32 0.0, %v4484
        %4486 = vmatmul.f32.gmra.mxu0 %v4412
        %v4487 = vpop.f32.mrf.mxu0
        %v4488 = vadd.f32 0.0, %v4487
        %4489 = vmatmul.f32.gmra.mxu0 %v4419
        %v4490 = vpop.f32.mrf.mxu0
        %v4491 = vadd.f32 0.0, %v4490
        %4492 = vmatmul.f32.gmra.mxu0 %v4426
        %v4493 = vpop.f32.mrf.mxu0
        %v4494 = vadd.f32 0.0, %v4493
        %4495 = vdwg.mxu0
        %4496 = vst.msk [vmem:[%s202] sm:$0xff] %vm2333, %v4461
        %4497 = vst.msk [vmem:[%s202 + $0x8] sm:$0xff] %vm2333, %v4464
        %4498 = vst.msk [vmem:[%s202 + $0x10] sm:$0xff] %vm2333, %v4467
        %4499 = vst.msk [vmem:[%s202 + $0x18] sm:$0xff] %vm2333, %v4470
        %s4500 = scalar_lea.vmem %s202, 32 [#allocation2]
        %4501 = vst.msk [vmem:[%s4500] sm:$0xff] %vm2333, %v4473
        %4502 = vst.msk [vmem:[%s4500 + $0x8] sm:$0xff] %vm2333, %v4476
        %4503 = vst.msk [vmem:[%s4500 + $0x10] sm:$0xff] %vm2333, %v4479
        %4504 = vst.msk [vmem:[%s4500 + $0x18] sm:$0xff] %vm2333, %v4482
        %s4505 = scalar_lea.vmem %s202, 64 [#allocation2]
        %4506 = vst.msk [vmem:[%s4505] sm:$0xff] %vm2333, %v4485
        %4507 = vst.msk [vmem:[%s4505 + $0x8] sm:$0xff] %vm2333, %v4488
        %4508 = vst.msk [vmem:[%s4505 + $0x10] sm:$0xff] %vm2333, %v4491
        %4509 = vst.msk [vmem:[%s4505 + $0x18] sm:$0xff] %vm2333, %v4494
        %s4510 = sand.u32 %s114, 1
        %s4511 = scalar_lea.sflag [#allocation3], %s4510
        %s4512 = sand.u32 %s114, 1
        %s4513 = smul.addr %s4512, 96
        %s4514 = scalar_lea.vmem [#allocation2], %s4513
        // Predicated region
        $region33: #{model2_forward.1} parent=31 // pred_check
          %p4515 = pneg %p124
        $region34: #{model2_forward.1} parent=31 // pred_check_branch
          %4517 = sbr.rel (%p4515) target = $region36
        $region35: #{model2_forward.1} parent=31 // pred_region
          %s4518 = smul.u32 4, %s22
          %4520 = vsyncadd %s4511, 0
          %s4521 = smul.addr %s21, 12
          %s4522 = sadd.s32 %s4518, %s4521
          %s4523 = smul.addr %s4522, 8
          %s4524 = scalar_lea.hbm %s3, %s4523
          %s4525 = sshll.u32 %s4514, 4
          %s4526 = int_to_ptr.vmem [resolvable:$true] %s4525
          %s4527 = sshll.u32 %s4524, 4
          %s4528 = int_to_ptr.hbm [resolvable:$true] %s4527
          %4533 = dma.vmem_to_hbm [thread:$0]  %s4526, 1536, %s4528, %s4511, 128, 128, 8
        $region36: #{model2_forward.1} parent=31 // pred_fallthru
          _
      $region32: #{model2_forward.1} parent=5 // pred_fallthru
        _
      %p4534 = scmp.le.s32.totalorder 2, %s12
      // Predicated region
      $region37: #{model2_forward.1} parent=5 // pred_check
        %p4535 = pneg %p4534
      $region38: #{model2_forward.1} parent=5 // pred_check_branch
        %4537 = sbr.rel (%p4535) target = $region40
      $region39: #{model2_forward.1} parent=5 // pred_region
        %s4538 = ssub.s32 %s12, 2
        // Predicated region
        $region41: #{model2_forward.1} parent=39 // pred_check
          %p4539 = pneg %p130
        $region42: #{model2_forward.1} parent=39 // pred_check_branch
          %4541 = sbr.rel (%p4539) target = $region44
        $region43: #{model2_forward.1} parent=39 // pred_region
          %s4542 = sand.u32 %s115, 1
          %s4543 = scalar_lea.sflag [#allocation3], %s4542
          %s4544 = sand.u32 %s115, 1
          %s4545 = smul.addr %s4544, 96
          %s4546 = scalar_lea.vmem [#allocation2], %s4545
          %4548 = dma.done %s4543, 1536
        $region44: #{model2_forward.1} parent=39 // pred_fallthru
          _
      $region40: #{model2_forward.1} parent=5 // pred_fallthru
        _
    $region6: #{model2_forward.1} parent=1 // loop_footer
      %s16 = sadd.s32 1, %s12
    $region7: #{model2_forward.1} parent=1 // loop_footer_branch
      %11 = sbr.rel target = $region3
    $region8: #{model2_forward.1} parent=1 // loop_exit
      _
    %4549 = vsyncpa [#allocation3], 1
    %s4550 = scalar_lea.sflag [#allocation3], 1
    %4551 = vsyncpa %s4550, 1

</llo_original>
